<compile_context>
chip_gen: v6e
topology: v6e:2x2x1
jax: 0.10.0
libtpu: 0.0.40
codegen_flags: <defaults>
</compile_context>

<pallas_src>
import functools

import jax
import jax.numpy as jnp
from jax.experimental import pallas as pl
from jax.experimental.pallas import tpu as pltpu


def _ceil_to(v, m):
    return ((v + m - 1) // m) * m


def _attn_gated_kernel(x_ref, wab_ref, bab_ref, wc_ref, bc_ref, a_out_ref, *, dp):
    # Cast x to bf16 in VMEM (halves MXU operand width; f32 accumulation below).
    x = x_ref[...].astype(jnp.bfloat16)                      # (TM, L)

    # Fused branch matmul: one (TM, L) x (L, 2*DP) MXU pass, f32 accumulation.
    h = jnp.dot(x, wab_ref[...], preferred_element_type=jnp.float32)
    h = h + bab_ref[...]                                     # (1, 2*DP) broadcast

    # dp is a multiple of 128, so both slices fall on lane-tile boundaries.
    a = jnp.tanh(h[:, :dp])                                  # attention_a branch (EUP)
    b = jax.nn.sigmoid(h[:, dp:])                            # attention_b branch (EUP)
    gated = (a * b).astype(wc_ref.dtype)                     # (TM, DP) bf16

    # attention_c: (TM, DP) x (DP, C); narrow store is tiny next to the matmul.
    a_out_ref[...] = (
        jnp.dot(gated, wc_ref[...], preferred_element_type=jnp.float32)
        + bc_ref[...]
    ).astype(a_out_ref.dtype)


def attn_net_gated(x, wa, ba, wb, bb, wc, bc, *, tm=2048):
    """Gated-attention forward pass. Returns (A, x) like the PyTorch module."""
    N, L = x.shape
    D = wa.shape[1]
    C = wc.shape[1]
    DP = _ceil_to(D, 128)  # pad each branch to a 128-lane multiple

    # --- parameter packing (one-time, wrapper-side) --------------------------
    wab = jnp.zeros((L, 2 * DP), jnp.bfloat16)
    wab = wab.at[:, :D].set(wa.astype(jnp.bfloat16))
    wab = wab.at[:, DP:DP + D].set(wb.astype(jnp.bfloat16))
    bab = jnp.zeros((1, 2 * DP), jnp.float32)
    bab = bab.at[:, :D].set(ba.astype(jnp.float32).reshape(1, D))
    bab = bab.at[:, DP:DP + D].set(bb.astype(jnp.float32).reshape(1, D))
    wc_p = jnp.zeros((DP, C), jnp.bfloat16).at[:D, :].set(wc.astype(jnp.bfloat16))
    bc_p = bc.astype(jnp.float32).reshape(1, C)

    # --- tile selection -------------------------------------------------------
    # Multiple of 16 (bf16 sublane packing); for small N shrink tm so the
    # parallel grid has >= 2 (even) steps -> balanced across v7x's 2 TCs.
    tm_req = max(16, _ceil_to(min(tm, max(N, 1)), 16))
    nt_even = max(2, _ceil_to(pl.cdiv(N, tm_req), 2))
    tm = max(16, min(tm_req, _ceil_to(pl.cdiv(N, nt_even), 16)))
    nt = pl.cdiv(N, tm)

    # --- VMEM budget (dtype-accurate), capped below v7x physical VMEM --------
    cp_vmem = _ceil_to(C, 128)  # lane-padded footprint of the out block in VMEM
    vmem_bytes = (
        2 * tm * L * 4                      # x blocks (f32, double-buffered)
        + 2 * tm * cp_vmem * 4              # out blocks (f32, double-buffered)
        + 2 * L * (2 * DP) * 2              # wab (bf16, resident; 2x is worst case)
        + 2 * DP * cp_vmem * 2              # wc  (bf16)
        + 2 * 8 * (2 * DP) * 4              # bab (f32, sublane-padded)
        + 2 * 8 * cp_vmem * 4               # bc
        + tm * L * 2                        # x bf16 temp
        + tm * 2 * DP * 4                   # h (f32)
        + 2 * tm * DP * 4                   # a, b (f32)
        + tm * DP * 2                       # gated (bf16)
    )
    vmem_limit = int(1.25 * vmem_bytes) + (4 << 20)
    vmem_limit = max(32 << 20, min(vmem_limit, 48 << 20))

    kernel = functools.partial(_attn_gated_kernel, dp=DP)

    A = pl.pallas_call(
        kernel,
        out_shape=jax.ShapeDtypeStruct((N, C), jnp.float32),
        grid_spec=pl.GridSpec(
            grid=(nt,),
            in_specs=[
                pl.BlockSpec((tm, L), lambda i: (i, 0)),        # x tile (streamed)
                pl.BlockSpec((L, 2 * DP), lambda i: (0, 0)),    # fused Wa|Wb (resident)
                pl.BlockSpec((1, 2 * DP), lambda i: (0, 0)),    # fused ba|bb
                pl.BlockSpec((DP, C), lambda i: (0, 0)),        # Wc
                pl.BlockSpec((1, C), lambda i: (0, 0)),         # bc
            ],
            out_specs=pl.BlockSpec((tm, C), lambda i: (i, 0)),  # unpadded A tile
        ),
        compiler_params=pltpu.CompilerParams(
            dimension_semantics=("parallel",),
            vmem_limit_bytes=vmem_limit,
        ),
    )(x, wab, bab, wc_p, bc_p)

    return A, x


def make_params(key, L, D, n_classes):
    """Deterministic synthetic parameters matching Attn_Net_Gated shapes."""
    k = jax.random.split(key, 6)
    scale_a = 1.0 / jnp.sqrt(L)
    scale_c = 1.0 / jnp.sqrt(D)
    wa = jax.random.uniform(k[0], (L, D), jnp.float32, -scale_a, scale_a)
    ba = jax.random.uniform(k[1], (1, D), jnp.float32, -scale_a, scale_a)
    wb = jax.random.uniform(k[2], (L, D), jnp.float32, -scale_a, scale_a)
    bb = jax.random.uniform(k[3], (1, D), jnp.float32, -scale_a, scale_a)
    wc = jax.random.uniform(k[4], (D, n_classes), jnp.float32, -scale_c, scale_c)
    bc = jax.random.uniform(k[5], (1, n_classes), jnp.float32, -scale_c, scale_c)
    return wa, ba, wb, bb, wc, bc


if __name__ == "__main__":
    # Module defaults L=1024, D=256, n_classes=1; small bag size N with a
    # ragged tail so the test exercises tiling + tail masking (no N padding).
    N, L, D, n_classes = 300, 1024, 256, 1

    key = jax.random.PRNGKey(0)
    kx, kp = jax.random.split(key)
    x = jax.random.normal(kx, (N, L), dtype=jnp.float32)
    params = make_params(kp, L, D, n_classes)

    A, x_out = attn_net_gated(x, *params)
    jax.block_until_ready((A, x_out))

    # Reference check against plain f32 JAX (bf16 operands => relaxed tolerance).
    wa, ba, wb, bb, wc, bc = params
    a_ref = jnp.tanh(x @ wa + ba)
    b_ref = jax.nn.sigmoid(x @ wb + bb)
    A_ref = (a_ref * b_ref) @ wc + bc
    assert A.shape == (N, n_classes)
    assert jnp.allclose(A, A_ref, atol=5e-2, rtol=5e-2), float(jnp.max(jnp.abs(A - A_ref)))
    assert jnp.array_equal(x_out, x)

    print("KERNEL_OK")
</pallas_src>

<mosaic_0001>
module attributes {stable_mosaic.version = 11 : i64} {
  func.func @_attn_gated_kernel(%arg0: i32, %arg1: memref<160x1024xf32, #tpu.memory_space<vmem>>, %arg2: memref<1024x512xbf16, #tpu.memory_space<vmem>>, %arg3: memref<1x512xf32, #tpu.memory_space<vmem>>, %arg4: memref<256x1xbf16, #tpu.memory_space<vmem>>, %arg5: memref<1x1xf32, #tpu.memory_space<vmem>>, %arg6: memref<160x1xf32, #tpu.memory_space<vmem>>) attributes {dimension_semantics = [#tpu.dimension_semantics<parallel>], iteration_bounds = array<i64: 2>, scalar_prefetch = 0 : i64, scratch_operands = 0 : i64, tpu.core_type = #tpu.core_type<tc>, window_params = [{transform_indices = @transform_0, window_bounds = array<i64: 160, 1024>}, {pipeline_mode = #tpu.pipeline_mode<synchronous>, transform_indices = @transform_1, window_bounds = array<i64: 1024, 512>}, {pipeline_mode = #tpu.pipeline_mode<synchronous>, transform_indices = @transform_2, window_bounds = array<i64: 1, 512>}, {pipeline_mode = #tpu.pipeline_mode<synchronous>, transform_indices = @transform_3, window_bounds = array<i64: 256, 1>}, {pipeline_mode = #tpu.pipeline_mode<synchronous>, transform_indices = @transform_4, window_bounds = array<i64: 1, 1>}, {transform_indices = @transform_5, window_bounds = array<i64: 160, 1>}]} {
    %c0 = arith.constant 0 : index
    %c0_0 = arith.constant 0 : index
    %0 = vector.load %arg1[%c0, %c0_0] : memref<160x1024xf32, #tpu.memory_space<vmem>>, vector<160x1024xf32>
    %1 = arith.truncf %0 : vector<160x1024xf32> to vector<160x1024xbf16>
    %c0_1 = arith.constant 0 : index
    %c0_2 = arith.constant 0 : index
    %2 = vector.load %arg2[%c0_1, %c0_2] : memref<1024x512xbf16, #tpu.memory_space<vmem>>, vector<1024x512xbf16>
    %cst = arith.constant dense<0.000000e+00> : vector<160x512xf32>
    %3 = tpu.matmul %1, %2, %cst {dimension_numbers = #tpu.dot_dimension_numbers<[1], [0], [0], [1], [0, 0, 1, 1], [], []>} : vector<160x1024xbf16>, vector<1024x512xbf16>, vector<160x512xf32> -> vector<160x512xf32>
    %c0_3 = arith.constant 0 : index
    %c0_4 = arith.constant 0 : index
    %4 = vector.load %arg3[%c0_3, %c0_4] : memref<1x512xf32, #tpu.memory_space<vmem>>, vector<1x512xf32>
    %5 = vector.broadcast %4 : vector<1x512xf32> to vector<160x512xf32>
    %6 = arith.addf %3, %5 : vector<160x512xf32>
    %7 = vector.extract_strided_slice %6 {offsets = [0, 0], sizes = [160, 256], strides = [1, 1]} : vector<160x512xf32> to vector<160x256xf32>
    %8 = math.tanh %7 : vector<160x256xf32>
    %9 = vector.extract_strided_slice %6 {offsets = [0, 256], sizes = [160, 256], strides = [1, 1]} : vector<160x512xf32> to vector<160x256xf32>
    %10 = arith.negf %9 : vector<160x256xf32>
    %11 = math.exp %10 : vector<160x256xf32>
    %cst_5 = arith.constant 1.000000e+00 : f32
    %12 = vector.broadcast %cst_5 : f32 to vector<160x256xf32>
    %13 = arith.addf %12, %11 : vector<160x256xf32>
    %14 = arith.divf %12, %13 : vector<160x256xf32>
    %15 = arith.mulf %8, %14 : vector<160x256xf32>
    %16 = arith.truncf %15 : vector<160x256xf32> to vector<160x256xbf16>
    %c0_6 = arith.constant 0 : index
    %c0_7 = arith.constant 0 : index
    %17 = vector.load %arg4[%c0_6, %c0_7] : memref<256x1xbf16, #tpu.memory_space<vmem>>, vector<256x1xbf16>
    %cst_8 = arith.constant dense<0.000000e+00> : vector<160x1xf32>
    %18 = tpu.matmul %16, %17, %cst_8 {dimension_numbers = #tpu.dot_dimension_numbers<[1], [0], [0], [1], [0, 0, 1, 1], [], []>} : vector<160x256xbf16>, vector<256x1xbf16>, vector<160x1xf32> -> vector<160x1xf32>
    %c0_9 = arith.constant 0 : index
    %c0_10 = arith.constant 0 : index
    %19 = vector.load %arg5[%c0_9, %c0_10] : memref<1x1xf32, #tpu.memory_space<vmem>>, vector<1x1xf32>
    %20 = vector.broadcast %19 : vector<1x1xf32> to vector<160x1xf32>
    %21 = arith.addf %18, %20 : vector<160x1xf32>
    %c0_11 = arith.constant 0 : index
    %c0_12 = arith.constant 0 : index
    %22 = vector.load %arg6[%c0_11, %c0_12] : memref<160x1xf32, #tpu.memory_space<vmem>>, vector<160x1xf32>
    tpu.vector_store %arg6[%c0_11, %c0_12], %21 {strides = array<i32>} : memref<160x1xf32, #tpu.memory_space<vmem>>, vector<160x1xf32>,
    return
  }
  func.func @transform_0(%arg0: i32) -> (i32, i32) {
    %c0_i32 = arith.constant 0 : i32
    %c0_i32_0 = arith.constant 0 : i32
    return %arg0, %c0_i32 : i32, i32
  }
  func.func @transform_1(%arg0: i32) -> (i32, i32) {
    %c0_i32 = arith.constant 0 : i32
    %c0_i32_0 = arith.constant 0 : i32
    %c0_i32_1 = arith.constant 0 : i32
    return %c0_i32, %c0_i32_0 : i32, i32
  }
  func.func @transform_2(%arg0: i32) -> (i32, i32) {
    %c0_i32 = arith.constant 0 : i32
    %c0_i32_0 = arith.constant 0 : i32
    %c0_i32_1 = arith.constant 0 : i32
    return %c0_i32, %c0_i32_0 : i32, i32
  }
  func.func @transform_3(%arg0: i32) -> (i32, i32) {
    %c0_i32 = arith.constant 0 : i32
    %c0_i32_0 = arith.constant 0 : i32
    %c0_i32_1 = arith.constant 0 : i32
    return %c0_i32, %c0_i32_0 : i32, i32
  }
  func.func @transform_4(%arg0: i32) -> (i32, i32) {
    %c0_i32 = arith.constant 0 : i32
    %c0_i32_0 = arith.constant 0 : i32
    %c0_i32_1 = arith.constant 0 : i32
    return %c0_i32, %c0_i32_0 : i32, i32
  }
  func.func @transform_5(%arg0: i32) -> (i32, i32) {
    %c0_i32 = arith.constant 0 : i32
    %c0_i32_0 = arith.constant 0 : i32
    return %arg0, %c0_i32 : i32, i32
  }
}

</mosaic_0001>

<llo_original>
// kernel: tpu_custom_call.1
$region0: #{tpu_custom_call.1}
  #allocation0 [shape = 'u32[]', space=smem, size = 0x4, offset = 0x4, fixed_abs, tag = 'smem constant byte address 0x4 - core index']
  #allocation1 [shape = 'u32[144,128]{1,0:T(1,128)}', space=vmem, size = 0x12000, scoped, tag = 'internal scratch']
  #allocation2 [shape = 'f32[1,1]{1,0:T(1,128)S(1)}', space=vmem, size = 0x200, scoped, tag = 'scoped memory for tpu_custom_call.1']
  %s0 = inlined_call_operand.hbm [shape: f32[300,1024], index: 0, kind: input, shape index: {}]
  %s1 = inlined_call_operand.hbm [shape: bf16[1024,512], index: 1, kind: input, shape index: {}]
  %s2 = inlined_call_operand.hbm [shape: f32[1,512], index: 2, kind: input, shape index: {}]
  %s3 = inlined_call_operand.vmem [shape: bf16[256,1], index: 3, kind: input, shape index: {}]
  %s4 = inlined_call_operand.<no memory space> [shape: f32[1,1], index: 4, kind: input, shape index: {}]
  %s5 = inlined_call_operand.vmem [shape: f32[300,1], index: 5, kind: output, shape index: {}]
  %s6 = sld [smem:[#allocation0]]
  $region113: #{tpu_custom_call.1} parent=0
    _
  %s8 = ssub.s32 1, %s6
  %s9 = scalar_select 0, %s8, %s6
  %v10 = vstv %s4
  %11 = vst [vmem:[#allocation2] sm:$0x1] %v10
  $region1: #{tpu_custom_call.1} parent=0
    #allocation3 [shape = 'u8[1310720]{0}', space=vmem, size = 0x140000, scoped, tag = 'input window, operand 0']
    #allocation4 [shape = 's32[2]{0}', space=sflag, size = 0x8, scoped, tag = 'scoped memory for tpu_custom_call.1']
    #allocation5 [shape = 'u8[1048576]{0}', space=vmem, size = 0x100000, scoped, tag = 'input window, operand 1, single buffered']
    #allocation6 [shape = 's32[1]{0}', space=sflag, size = 0x4, scoped, tag = 'scoped memory for tpu_custom_call.1']
    #allocation7 [shape = 'u8[2048]{0}', space=vmem, size = 0x800, scoped, tag = 'input window, operand 2, single buffered']
    #allocation8 [shape = 'u8[163840]{0}', space=vmem, size = 0x28000, scoped, tag = 'output window, operand 0']
    %12 = vsyncpa [#allocation4], 0
    %s13 = scalar_lea.sflag [#allocation4], 1
    %14 = vsyncpa %s13, 0
    %15 = vsyncpa [#allocation6], 0
    loop: start=0, step=1, limit=4
    $region2: #{tpu_custom_call.1} parent=1 // loop_pre_header
      _
    $region3: #{tpu_custom_call.1} parent=1 // loop_header
      %s17 = sphi 0, %s21
      %p18 = scmp.ge.s32.totalorder %s17, 4
      %s27 = sphi 0, %s29
      %s30 = sphi 0, %s27
      %s31 = sphi 0, %s30
      %s47 = sphi 0, %s31
      %s51 = sphi 0, %s51
      %s53 = sphi 0, %s51
      %s54 = sphi 0, %s53
      %s68 = sphi 0, %s54
      %s72 = sphi 0, %s72
      %s74 = sphi 0, %s72
      %s75 = sphi 0, %s74
      %s89 = sphi 0, %s75
      %s93 = sphi 0, %s93
      %s95 = sphi 0, %s93
      %s96 = sphi 0, %s95
      %s110 = sphi 0, %s96
      %s114 = sphi 0, %s114
      %s116 = sphi 0, %s114
      %s117 = sphi 0, %s116
      %s131 = sphi 0, %s117
      %s137 = sphi 0, %s139
      %s140 = sphi 0, %s137
      %s141 = sphi 0, %s140
      %s157 = sphi 0, %s141
    $region4: #{tpu_custom_call.1} parent=1 // loop_header_branch
      %20 = sbr.rel (%p18) target = $region8
    $region5: #{tpu_custom_call.1} parent=1 // loop_body
      %s22 = ssub.s32 %s17, 1
      %s23 = ssub.s32 %s17, 2
      %s24 = sadd.s32 %s17, 1
      %s25 = ssub.s32 %s17, %s24
      %p26 = scmp.eq.s32.totalorder %s25, 0
      %s28 = sadd.s32 %s27, 1
      %s29 = scalar_select %p26, %s27, %s28
      %p32 = pneg %p26
      %p33 = scmp.eq.s32.totalorder %s17, 1
      %p34 = por %p32, %p33
      %p35 = scmp.ne.s32.totalorder %s27, %s30
      %p36 = scmp.eq.s32.totalorder %s17, 0
      %p37 = por %p35, %p36
      %p38 = scmp.ne.s32.totalorder %s27, %s30
      %p39 = scmp.eq.s32.totalorder %s22, 1
      %p40 = por %p38, %p39
      %p41 = scmp.ne.s32.totalorder %s30, %s31
      %p42 = scmp.eq.s32.totalorder %s22, 0
      %p43 = por %p41, %p42
      %p44 = scmp.ne.s32.totalorder %s30, %s31
      %p45 = scmp.eq.s32.totalorder %s23, 1
      %p46 = por %p44, %p45
      %p48 = scmp.ne.s32.totalorder %s31, %s47
      %p49 = scmp.eq.s32.totalorder %s23, 0
      %p50 = por %p48, %p49
      %s52 = sadd.s32 %s51, 1
      %p55 = scmp.eq.s32.totalorder %s17, 1
      %p56 = scmp.ne.s32.totalorder %s51, %s53
      %p57 = scmp.eq.s32.totalorder %s17, 0
      %p58 = por %p56, %p57
      %p59 = scmp.ne.s32.totalorder %s51, %s53
      %p60 = scmp.eq.s32.totalorder %s22, 1
      %p61 = por %p59, %p60
      %p62 = scmp.ne.s32.totalorder %s53, %s54
      %p63 = scmp.eq.s32.totalorder %s22, 0
      %p64 = por %p62, %p63
      %p65 = scmp.ne.s32.totalorder %s53, %s54
      %p66 = scmp.eq.s32.totalorder %s23, 1
      %p67 = por %p65, %p66
      %p69 = scmp.ne.s32.totalorder %s54, %s68
      %p70 = scmp.eq.s32.totalorder %s23, 0
      %p71 = por %p69, %p70
      %s73 = sadd.s32 %s72, 1
      %p76 = scmp.eq.s32.totalorder %s17, 1
      %p77 = scmp.ne.s32.totalorder %s72, %s74
      %p78 = scmp.eq.s32.totalorder %s17, 0
      %p79 = por %p77, %p78
      %p80 = scmp.ne.s32.totalorder %s72, %s74
      %p81 = scmp.eq.s32.totalorder %s22, 1
      %p82 = por %p80, %p81
      %p83 = scmp.ne.s32.totalorder %s74, %s75
      %p84 = scmp.eq.s32.totalorder %s22, 0
      %p85 = por %p83, %p84
      %p86 = scmp.ne.s32.totalorder %s74, %s75
      %p87 = scmp.eq.s32.totalorder %s23, 1
      %p88 = por %p86, %p87
      %p90 = scmp.ne.s32.totalorder %s75, %s89
      %p91 = scmp.eq.s32.totalorder %s23, 0
      %p92 = por %p90, %p91
      %s94 = sadd.s32 %s93, 1
      %p97 = scmp.eq.s32.totalorder %s17, 1
      %p98 = scmp.ne.s32.totalorder %s93, %s95
      %p99 = scmp.eq.s32.totalorder %s17, 0
      %p100 = por %p98, %p99
      %p101 = scmp.ne.s32.totalorder %s93, %s95
      %p102 = scmp.eq.s32.totalorder %s22, 1
      %p103 = por %p101, %p102
      %p104 = scmp.ne.s32.totalorder %s95, %s96
      %p105 = scmp.eq.s32.totalorder %s22, 0
      %p106 = por %p104, %p105
      %p107 = scmp.ne.s32.totalorder %s95, %s96
      %p108 = scmp.eq.s32.totalorder %s23, 1
      %p109 = por %p107, %p108
      %p111 = scmp.ne.s32.totalorder %s96, %s110
      %p112 = scmp.eq.s32.totalorder %s23, 0
      %p113 = por %p111, %p112
      %s115 = sadd.s32 %s114, 1
      %p118 = scmp.eq.s32.totalorder %s17, 1
      %p119 = scmp.ne.s32.totalorder %s114, %s116
      %p120 = scmp.eq.s32.totalorder %s17, 0
      %p121 = por %p119, %p120
      %p122 = scmp.ne.s32.totalorder %s114, %s116
      %p123 = scmp.eq.s32.totalorder %s22, 1
      %p124 = por %p122, %p123
      %p125 = scmp.ne.s32.totalorder %s116, %s117
      %p126 = scmp.eq.s32.totalorder %s22, 0
      %p127 = por %p125, %p126
      %p128 = scmp.ne.s32.totalorder %s116, %s117
      %p129 = scmp.eq.s32.totalorder %s23, 1
      %p130 = por %p128, %p129
      %p132 = scmp.ne.s32.totalorder %s117, %s131
      %p133 = scmp.eq.s32.totalorder %s23, 0
      %p134 = por %p132, %p133
      %s135 = ssub.s32 %s17, %s24
      %p136 = scmp.eq.s32.totalorder %s135, 0
      %s138 = sadd.s32 %s137, 1
      %s139 = scalar_select %p136, %s137, %s138
      %p142 = pneg %p136
      %p143 = scmp.eq.s32.totalorder %s17, 1
      %p144 = por %p142, %p143
      %p145 = scmp.ne.s32.totalorder %s137, %s140
      %p146 = scmp.eq.s32.totalorder %s17, 0
      %p147 = por %p145, %p146
      %p148 = scmp.ne.s32.totalorder %s137, %s140
      %p149 = scmp.eq.s32.totalorder %s22, 1
      %p150 = por %p148, %p149
      %p151 = scmp.ne.s32.totalorder %s140, %s141
      %p152 = scmp.eq.s32.totalorder %s22, 0
      %p153 = por %p151, %p152
      %p154 = scmp.ne.s32.totalorder %s140, %s141
      %p155 = scmp.eq.s32.totalorder %s23, 1
      %p156 = por %p154, %p155
      %p158 = scmp.ne.s32.totalorder %s141, %s157
      %p159 = scmp.eq.s32.totalorder %s23, 0
      %p160 = por %p158, %p159
      %p161 = scmp.le.s32.totalorder 1, %s17
      %p162 = scmp.lt.s32.totalorder %s17, 3
      %p163 = pnand %p161, %p162
      %p164 = pneg %p163
      // Predicated region
      $region9: #{tpu_custom_call.1} parent=5 // pred_check
        _
      $region10: #{tpu_custom_call.1} parent=5 // pred_check_branch
        %166 = sbr.rel (%p163) target = $region12
      $region11: #{tpu_custom_call.1} parent=5 // pred_region
        %s167 = ssub.s32 %s17, 1
        // Predicated region
        $region13: #{tpu_custom_call.1} parent=11 // pred_check
          %p168 = pneg %p64
        $region14: #{tpu_custom_call.1} parent=11 // pred_check_branch
          %170 = sbr.rel (%p168) target = $region16
        $region15: #{tpu_custom_call.1} parent=11 // pred_region
          %s172 = ssub.s32 32768, 32768
          %173 = vsyncadd [#allocation6], %s172
          %s174 = sshll.u32 [#allocation5], 4
          %s175 = int_to_ptr.vmem [resolvable:$true] %s174
          %180 = dma.hbm_to_vmem [thread:$0]  %s1, 32768, %s175, [#allocation6], 256, 256, 16
        $region16: #{tpu_custom_call.1} parent=11 // pred_fallthru
          _
        // Predicated region
        $region17: #{tpu_custom_call.1} parent=11 // pred_check
          %p181 = pneg %p85
        $region18: #{tpu_custom_call.1} parent=11 // pred_check_branch
          %183 = sbr.rel (%p181) target = $region20
        $region19: #{tpu_custom_call.1} parent=11 // pred_region
          %s185 = ssub.s32 64, 64
          %186 = vsyncadd [#allocation6], %s185
          %s188 = sshll.u32 [#allocation7], 4
          %s189 = int_to_ptr.vmem [resolvable:$true] %s188
          %191 = dma.hbm_to_vmem [thread:$0]  %s2, 64, %s189, [#allocation6]
        $region20: #{tpu_custom_call.1} parent=11 // pred_fallthru
          _
        // Predicated region
        $region21: #{tpu_custom_call.1} parent=11 // pred_check
          %p192 = pneg %p106
        $region22: #{tpu_custom_call.1} parent=11 // pred_check_branch
          %194 = sbr.rel (%p192) target = $region24
        $region23: #{tpu_custom_call.1} parent=11 // pred_region
          _
        $region24: #{tpu_custom_call.1} parent=11 // pred_fallthru
          _
        // Predicated region
        $region25: #{tpu_custom_call.1} parent=11 // pred_check
          %p195 = pneg %p127
        $region26: #{tpu_custom_call.1} parent=11 // pred_check_branch
          %197 = sbr.rel (%p195) target = $region28
        $region27: #{tpu_custom_call.1} parent=11 // pred_region
          _
        $region28: #{tpu_custom_call.1} parent=11 // pred_fallthru
          _
      $region12: #{tpu_custom_call.1} parent=5 // pred_fallthru
        _
      %p198 = scmp.lt.s32.totalorder %s17, 2
      // Predicated region
      $region29: #{tpu_custom_call.1} parent=5 // pred_check
        %p199 = pneg %p198
      $region30: #{tpu_custom_call.1} parent=5 // pred_check_branch
        %201 = sbr.rel (%p199) target = $region32
      $region31: #{tpu_custom_call.1} parent=5 // pred_region
        // Predicated region
        $region33: #{tpu_custom_call.1} parent=31 // pred_check
          %p202 = pneg %p37
        $region34: #{tpu_custom_call.1} parent=31 // pred_check_branch
          %204 = sbr.rel (%p202) target = $region36
        $region35: #{tpu_custom_call.1} parent=31 // pred_region
          %s205 = sand.u32 %s27, 1
          %s206 = scalar_lea.sflag [#allocation4], %s205
          %s207 = sand.u32 %s27, 1
          %s208 = smul.addr %s207, 1280
          %s209 = scalar_lea.vmem [#allocation3], %s208
          %s210 = smul.u32 20, %s17
          %s211 = ssub.s32 38, %s210
          %p212 = scmp.lt.s32.totalorder %s211, 20
          %s213 = scalar_select %p212, %s211, 20
          %s214 = smul.u32 128, %s213
          %s215 = smul.u32 %s214, 8
          %s217 = ssub.s32 20480, %s215
          %218 = vsyncadd %s206, %s217
          %p219 = scmp.ne.s32.totalorder 0, %s215
          %s220 = smul.addr %s210, 8
          %s221 = smul.addr %s220, 128
          %s222 = scalar_lea.hbm %s0, %s221
          %s223 = smul.u32 64, %s213
          %s224 = sshll.u32 %s209, 4
          %s225 = int_to_ptr.vmem [resolvable:$true] %s224
          %s226 = sshll.u32 %s223, 4
          %230 = dma.hbm_to_vmem [thread:$0]  (%p219), %s222, %s226, %s225, %s206, 1024, 1024, 64
        $region36: #{tpu_custom_call.1} parent=31 // pred_fallthru
          _
      $region32: #{tpu_custom_call.1} parent=5 // pred_fallthru
        _
      %p231 = scmp.le.s32.totalorder 1, %s17
      %p232 = scmp.lt.s32.totalorder %s17, 3
      %p233 = pnand %p231, %p232
      %p234 = pneg %p233
      // Predicated region
      $region37: #{tpu_custom_call.1} parent=5 // pred_check
        _
      $region38: #{tpu_custom_call.1} parent=5 // pred_check_branch
        %236 = sbr.rel (%p233) target = $region40
      $region39: #{tpu_custom_call.1} parent=5 // pred_region
        %s237 = ssub.s32 %s17, 1
        %s238 = sand.u32 %s30, 1
        %s239 = scalar_lea.sflag [#allocation4], %s238
        %s240 = sand.u32 %s30, 1
        %s241 = smul.addr %s240, 1280
        %s242 = scalar_lea.vmem [#allocation3], %s241
        // Predicated region
        $region41: #{tpu_custom_call.1} parent=39 // pred_check
          %p243 = pneg %p43
        $region42: #{tpu_custom_call.1} parent=39 // pred_check_branch
          %245 = sbr.rel (%p243) target = $region44
        $region43: #{tpu_custom_call.1} parent=39 // pred_region
          %246 = dma.done %s239, 20480
        $region44: #{tpu_custom_call.1} parent=39 // pred_fallthru
          _
        // Predicated region
        $region45: #{tpu_custom_call.1} parent=39 // pred_check
          %p247 = pneg %p64
        $region46: #{tpu_custom_call.1} parent=39 // pred_check_branch
          %249 = sbr.rel (%p247) target = $region48
        $region47: #{tpu_custom_call.1} parent=39 // pred_region
          %250 = dma.done [#allocation6], 32768
        $region48: #{tpu_custom_call.1} parent=39 // pred_fallthru
          _
        // Predicated region
        $region49: #{tpu_custom_call.1} parent=39 // pred_check
          %p251 = pneg %p85
        $region50: #{tpu_custom_call.1} parent=39 // pred_check_branch
          %253 = sbr.rel (%p251) target = $region52
        $region51: #{tpu_custom_call.1} parent=39 // pred_region
          %254 = dma.done [#allocation6], 64
        $region52: #{tpu_custom_call.1} parent=39 // pred_fallthru
          _
        %s255 = sand.u32 %s30, 1
        %s256 = scalar_lea.sflag [#allocation4], %s255
        %s257 = sand.u32 %s30, 1
        %s258 = smul.addr %s257, 1280
        %s259 = scalar_lea.vmem [#allocation3], %s258
        %p260 = pneg %p43
        %p261 = pneg %p40
        %p262 = pneg %p64
        %p263 = pneg %p61
        %p264 = pneg %p85
        %p265 = pneg %p82
        %p266 = pneg %p106
        %p267 = pneg %p103
        %p268 = pneg %p127
        %p269 = pneg %p124
        %p270 = pneg %p153
        %p271 = pneg %p150
        %s272 = sand.u32 %s140, 1
        %s273 = sand.u32 %s140, 1
        %s274 = smul.addr %s273, 160
        %s275 = scalar_lea.vmem [#allocation8], %s274
        %s276 = smul.u32 20, %s22
        %s277 = ssub.s32 38, %s276
        %p278 = scmp.lt.s32.totalorder %s277, 20
        %s279 = scalar_select %p278, %s277, 20
        %s280 = smul.u32 128, %s279
        %s281 = smul.u32 %s280, 8
        %s282 = smul.u32 20, %s22
        %s283 = ssub.s32 38, %s282
        %p284 = scmp.lt.s32.totalorder %s283, 20
        %s285 = scalar_select %p284, %s283, 20
        %s286 = smul.u32 128, %s285
        %v288 = vld [vmem:[%s242] sm:$0xff]
        %v289 = vld [vmem:[%s242 + $0x8] sm:$0xff]
        %v290 = vld [vmem:[%s242 + $0x10] sm:$0xff]
        %v291 = vld [vmem:[%s242 + $0x18] sm:$0xff]
        %v292 = vld [vmem:[%s242 + $0x20] sm:$0xff]
        %v293 = vld [vmem:[%s242 + $0x28] sm:$0xff]
        %v294 = vld [vmem:[%s242 + $0x30] sm:$0xff]
        %v295 = vld [vmem:[%s242 + $0x38] sm:$0xff]
        %v296 = vld [vmem:[%s242 + $0x40] sm:$0xff]
        %v297 = vld [vmem:[%s242 + $0x48] sm:$0xff]
        %v298 = vld [vmem:[%s242 + $0x50] sm:$0xff]
        %v299 = vld [vmem:[%s242 + $0x58] sm:$0xff]
        %v300 = vld [vmem:[%s242 + $0x60] sm:$0xff]
        %v301 = vld [vmem:[%s242 + $0x68] sm:$0xff]
        %v302 = vld [vmem:[%s242 + $0x70] sm:$0xff]
        %v303 = vld [vmem:[%s242 + $0x78] sm:$0xff]
        %v304 = vld [vmem:[%s242 + $0x80] sm:$0xff]
        %v305 = vld [vmem:[%s242 + $0x88] sm:$0xff]
        %v306 = vld [vmem:[%s242 + $0x90] sm:$0xff]
        %v307 = vld [vmem:[%s242 + $0x98] sm:$0xff]
        %v308 = vld [vmem:[%s242 + $0xa0] sm:$0xff]
        %v309 = vld [vmem:[%s242 + $0xa8] sm:$0xff]
        %v310 = vld [vmem:[%s242 + $0xb0] sm:$0xff]
        %v311 = vld [vmem:[%s242 + $0xb8] sm:$0xff]
        %v312 = vld [vmem:[%s242 + $0xc0] sm:$0xff]
        %v313 = vld [vmem:[%s242 + $0xc8] sm:$0xff]
        %v314 = vld [vmem:[%s242 + $0xd0] sm:$0xff]
        %v315 = vld [vmem:[%s242 + $0xd8] sm:$0xff]
        %v316 = vld [vmem:[%s242 + $0xe0] sm:$0xff]
        %v317 = vld [vmem:[%s242 + $0xe8] sm:$0xff]
        %v318 = vld [vmem:[%s242 + $0xf0] sm:$0xff]
        %v319 = vld [vmem:[%s242 + $0xf8] sm:$0xff]
        %v320 = vld [vmem:[%s242 + $0x100] sm:$0xff]
        %v321 = vld [vmem:[%s242 + $0x108] sm:$0xff]
        %v322 = vld [vmem:[%s242 + $0x110] sm:$0xff]
        %v323 = vld [vmem:[%s242 + $0x118] sm:$0xff]
        %v324 = vld [vmem:[%s242 + $0x120] sm:$0xff]
        %v325 = vld [vmem:[%s242 + $0x128] sm:$0xff]
        %v326 = vld [vmem:[%s242 + $0x130] sm:$0xff]
        %v327 = vld [vmem:[%s242 + $0x138] sm:$0xff]
        %v328 = vld [vmem:[%s242 + $0x140] sm:$0xff]
        %v329 = vld [vmem:[%s242 + $0x148] sm:$0xff]
        %v330 = vld [vmem:[%s242 + $0x150] sm:$0xff]
        %v331 = vld [vmem:[%s242 + $0x158] sm:$0xff]
        %v332 = vld [vmem:[%s242 + $0x160] sm:$0xff]
        %v333 = vld [vmem:[%s242 + $0x168] sm:$0xff]
        %v334 = vld [vmem:[%s242 + $0x170] sm:$0xff]
        %v335 = vld [vmem:[%s242 + $0x178] sm:$0xff]
        %v336 = vld [vmem:[%s242 + $0x180] sm:$0xff]
        %v337 = vld [vmem:[%s242 + $0x188] sm:$0xff]
        %v338 = vld [vmem:[%s242 + $0x190] sm:$0xff]
        %v339 = vld [vmem:[%s242 + $0x198] sm:$0xff]
        %v340 = vld [vmem:[%s242 + $0x1a0] sm:$0xff]
        %v341 = vld [vmem:[%s242 + $0x1a8] sm:$0xff]
        %v342 = vld [vmem:[%s242 + $0x1b0] sm:$0xff]
        %v343 = vld [vmem:[%s242 + $0x1b8] sm:$0xff]
        %v344 = vld [vmem:[%s242 + $0x1c0] sm:$0xff]
        %v345 = vld [vmem:[%s242 + $0x1c8] sm:$0xff]
        %v346 = vld [vmem:[%s242 + $0x1d0] sm:$0xff]
        %v347 = vld [vmem:[%s242 + $0x1d8] sm:$0xff]
        %v348 = vld [vmem:[%s242 + $0x1e0] sm:$0xff]
        %v349 = vld [vmem:[%s242 + $0x1e8] sm:$0xff]
        %v350 = vld [vmem:[%s242 + $0x1f0] sm:$0xff]
        %v351 = vld [vmem:[%s242 + $0x1f8] sm:$0xff]
        %v352 = vld [vmem:[%s242 + $0x200] sm:$0xff]
        %v353 = vld [vmem:[%s242 + $0x208] sm:$0xff]
        %v354 = vld [vmem:[%s242 + $0x210] sm:$0xff]
        %v355 = vld [vmem:[%s242 + $0x218] sm:$0xff]
        %v356 = vld [vmem:[%s242 + $0x220] sm:$0xff]
        %v357 = vld [vmem:[%s242 + $0x228] sm:$0xff]
        %v358 = vld [vmem:[%s242 + $0x230] sm:$0xff]
        %v359 = vld [vmem:[%s242 + $0x238] sm:$0xff]
        %v360 = vld [vmem:[%s242 + $0x240] sm:$0xff]
        %v361 = vld [vmem:[%s242 + $0x248] sm:$0xff]
        %v362 = vld [vmem:[%s242 + $0x250] sm:$0xff]
        %v363 = vld [vmem:[%s242 + $0x258] sm:$0xff]
        %v364 = vld [vmem:[%s242 + $0x260] sm:$0xff]
        %v365 = vld [vmem:[%s242 + $0x268] sm:$0xff]
        %v366 = vld [vmem:[%s242 + $0x270] sm:$0xff]
        %v367 = vld [vmem:[%s242 + $0x278] sm:$0xff]
        %v368 = vld [vmem:[%s242 + $0x280] sm:$0xff]
        %v369 = vld [vmem:[%s242 + $0x288] sm:$0xff]
        %v370 = vld [vmem:[%s242 + $0x290] sm:$0xff]
        %v371 = vld [vmem:[%s242 + $0x298] sm:$0xff]
        %v372 = vld [vmem:[%s242 + $0x2a0] sm:$0xff]
        %v373 = vld [vmem:[%s242 + $0x2a8] sm:$0xff]
        %v374 = vld [vmem:[%s242 + $0x2b0] sm:$0xff]
        %v375 = vld [vmem:[%s242 + $0x2b8] sm:$0xff]
        %v376 = vld [vmem:[%s242 + $0x2c0] sm:$0xff]
        %v377 = vld [vmem:[%s242 + $0x2c8] sm:$0xff]
        %v378 = vld [vmem:[%s242 + $0x2d0] sm:$0xff]
        %v379 = vld [vmem:[%s242 + $0x2d8] sm:$0xff]
        %v380 = vld [vmem:[%s242 + $0x2e0] sm:$0xff]
        %v381 = vld [vmem:[%s242 + $0x2e8] sm:$0xff]
        %v382 = vld [vmem:[%s242 + $0x2f0] sm:$0xff]
        %v383 = vld [vmem:[%s242 + $0x2f8] sm:$0xff]
        %v384 = vld [vmem:[%s242 + $0x300] sm:$0xff]
        %v385 = vld [vmem:[%s242 + $0x308] sm:$0xff]
        %v386 = vld [vmem:[%s242 + $0x310] sm:$0xff]
        %v387 = vld [vmem:[%s242 + $0x318] sm:$0xff]
        %v388 = vld [vmem:[%s242 + $0x320] sm:$0xff]
        %v389 = vld [vmem:[%s242 + $0x328] sm:$0xff]
        %v390 = vld [vmem:[%s242 + $0x330] sm:$0xff]
        %v391 = vld [vmem:[%s242 + $0x338] sm:$0xff]
        %v392 = vld [vmem:[%s242 + $0x340] sm:$0xff]
        %v393 = vld [vmem:[%s242 + $0x348] sm:$0xff]
        %v394 = vld [vmem:[%s242 + $0x350] sm:$0xff]
        %v395 = vld [vmem:[%s242 + $0x358] sm:$0xff]
        %v396 = vld [vmem:[%s242 + $0x360] sm:$0xff]
        %v397 = vld [vmem:[%s242 + $0x368] sm:$0xff]
        %v398 = vld [vmem:[%s242 + $0x370] sm:$0xff]
        %v399 = vld [vmem:[%s242 + $0x378] sm:$0xff]
        %v400 = vld [vmem:[%s242 + $0x380] sm:$0xff]
        %v401 = vld [vmem:[%s242 + $0x388] sm:$0xff]
        %v402 = vld [vmem:[%s242 + $0x390] sm:$0xff]
        %v403 = vld [vmem:[%s242 + $0x398] sm:$0xff]
        %v404 = vld [vmem:[%s242 + $0x3a0] sm:$0xff]
        %v405 = vld [vmem:[%s242 + $0x3a8] sm:$0xff]
        %v406 = vld [vmem:[%s242 + $0x3b0] sm:$0xff]
        %v407 = vld [vmem:[%s242 + $0x3b8] sm:$0xff]
        %v408 = vld [vmem:[%s242 + $0x3c0] sm:$0xff]
        %v409 = vld [vmem:[%s242 + $0x3c8] sm:$0xff]
        %v410 = vld [vmem:[%s242 + $0x3d0] sm:$0xff]
        %v411 = vld [vmem:[%s242 + $0x3d8] sm:$0xff]
        %v412 = vld [vmem:[%s242 + $0x3e0] sm:$0xff]
        %v413 = vld [vmem:[%s242 + $0x3e8] sm:$0xff]
        %v414 = vld [vmem:[%s242 + $0x3f0] sm:$0xff]
        %v415 = vld [vmem:[%s242 + $0x3f8] sm:$0xff]
        %v416 = vld [vmem:[%s242 + $0x400] sm:$0xff]
        %v417 = vld [vmem:[%s242 + $0x408] sm:$0xff]
        %v418 = vld [vmem:[%s242 + $0x410] sm:$0xff]
        %v419 = vld [vmem:[%s242 + $0x418] sm:$0xff]
        %v420 = vld [vmem:[%s242 + $0x420] sm:$0xff]
        %v421 = vld [vmem:[%s242 + $0x428] sm:$0xff]
        %v422 = vld [vmem:[%s242 + $0x430] sm:$0xff]
        %v423 = vld [vmem:[%s242 + $0x438] sm:$0xff]
        %v424 = vld [vmem:[%s242 + $0x440] sm:$0xff]
        %v425 = vld [vmem:[%s242 + $0x448] sm:$0xff]
        %v426 = vld [vmem:[%s242 + $0x450] sm:$0xff]
        %v427 = vld [vmem:[%s242 + $0x458] sm:$0xff]
        %v428 = vld [vmem:[%s242 + $0x460] sm:$0xff]
        %v429 = vld [vmem:[%s242 + $0x468] sm:$0xff]
        %v430 = vld [vmem:[%s242 + $0x470] sm:$0xff]
        %v431 = vld [vmem:[%s242 + $0x478] sm:$0xff]
        %v432 = vld [vmem:[%s242 + $0x480] sm:$0xff]
        %v433 = vld [vmem:[%s242 + $0x488] sm:$0xff]
        %v434 = vld [vmem:[%s242 + $0x490] sm:$0xff]
        %v435 = vld [vmem:[%s242 + $0x498] sm:$0xff]
        %v436 = vld [vmem:[%s242 + $0x4a0] sm:$0xff]
        %v437 = vld [vmem:[%s242 + $0x4a8] sm:$0xff]
        %v438 = vld [vmem:[%s242 + $0x4b0] sm:$0xff]
        %v439 = vld [vmem:[%s242 + $0x4b8] sm:$0xff]
        %v440 = vld [vmem:[%s242 + $0x4c0] sm:$0xff]
        %v441 = vld [vmem:[%s242 + $0x4c8] sm:$0xff]
        %v442 = vld [vmem:[%s242 + $0x4d0] sm:$0xff]
        %v443 = vld [vmem:[%s242 + $0x4d8] sm:$0xff]
        %v444 = vld [vmem:[%s242 + $0x4e0] sm:$0xff]
        %v445 = vld [vmem:[%s242 + $0x4e8] sm:$0xff]
        %v446 = vld [vmem:[%s242 + $0x4f0] sm:$0xff]
        %v447 = vld [vmem:[%s242 + $0x4f8] sm:$0xff]
        %v448 = vpack.c.bf16 %v296, %v288
        %v449 = vpack.c.bf16 %v297, %v289
        %v450 = vpack.c.bf16 %v298, %v290
        %v451 = vpack.c.bf16 %v299, %v291
        %v452 = vpack.c.bf16 %v300, %v292
        %v453 = vpack.c.bf16 %v301, %v293
        %v454 = vpack.c.bf16 %v302, %v294
        %v455 = vpack.c.bf16 %v303, %v295
        %v456 = vpack.c.bf16 %v312, %v304
        %v457 = vpack.c.bf16 %v313, %v305
        %v458 = vpack.c.bf16 %v314, %v306
        %v459 = vpack.c.bf16 %v315, %v307
        %v460 = vpack.c.bf16 %v316, %v308
        %v461 = vpack.c.bf16 %v317, %v309
        %v462 = vpack.c.bf16 %v318, %v310
        %v463 = vpack.c.bf16 %v319, %v311
        %v464 = vpack.c.bf16 %v328, %v320
        %v465 = vpack.c.bf16 %v329, %v321
        %v466 = vpack.c.bf16 %v330, %v322
        %v467 = vpack.c.bf16 %v331, %v323
        %v468 = vpack.c.bf16 %v332, %v324
        %v469 = vpack.c.bf16 %v333, %v325
        %v470 = vpack.c.bf16 %v334, %v326
        %v471 = vpack.c.bf16 %v335, %v327
        %v472 = vpack.c.bf16 %v344, %v336
        %v473 = vpack.c.bf16 %v345, %v337
        %v474 = vpack.c.bf16 %v346, %v338
        %v475 = vpack.c.bf16 %v347, %v339
        %v476 = vpack.c.bf16 %v348, %v340
        %v477 = vpack.c.bf16 %v349, %v341
        %v478 = vpack.c.bf16 %v350, %v342
        %v479 = vpack.c.bf16 %v351, %v343
        %v480 = vpack.c.bf16 %v360, %v352
        %v481 = vpack.c.bf16 %v361, %v353
        %v482 = vpack.c.bf16 %v362, %v354
        %v483 = vpack.c.bf16 %v363, %v355
        %v484 = vpack.c.bf16 %v364, %v356
        %v485 = vpack.c.bf16 %v365, %v357
        %v486 = vpack.c.bf16 %v366, %v358
        %v487 = vpack.c.bf16 %v367, %v359
        %v488 = vpack.c.bf16 %v376, %v368
        %v489 = vpack.c.bf16 %v377, %v369
        %v490 = vpack.c.bf16 %v378, %v370
        %v491 = vpack.c.bf16 %v379, %v371
        %v492 = vpack.c.bf16 %v380, %v372
        %v493 = vpack.c.bf16 %v381, %v373
        %v494 = vpack.c.bf16 %v382, %v374
        %v495 = vpack.c.bf16 %v383, %v375
        %v496 = vpack.c.bf16 %v392, %v384
        %v497 = vpack.c.bf16 %v393, %v385
        %v498 = vpack.c.bf16 %v394, %v386
        %v499 = vpack.c.bf16 %v395, %v387
        %v500 = vpack.c.bf16 %v396, %v388
        %v501 = vpack.c.bf16 %v397, %v389
        %v502 = vpack.c.bf16 %v398, %v390
        %v503 = vpack.c.bf16 %v399, %v391
        %v504 = vpack.c.bf16 %v408, %v400
        %v505 = vpack.c.bf16 %v409, %v401
        %v506 = vpack.c.bf16 %v410, %v402
        %v507 = vpack.c.bf16 %v411, %v403
        %v508 = vpack.c.bf16 %v412, %v404
        %v509 = vpack.c.bf16 %v413, %v405
        %v510 = vpack.c.bf16 %v414, %v406
        %v511 = vpack.c.bf16 %v415, %v407
        %v512 = vpack.c.bf16 %v424, %v416
        %v513 = vpack.c.bf16 %v425, %v417
        %v514 = vpack.c.bf16 %v426, %v418
        %v515 = vpack.c.bf16 %v427, %v419
        %v516 = vpack.c.bf16 %v428, %v420
        %v517 = vpack.c.bf16 %v429, %v421
        %v518 = vpack.c.bf16 %v430, %v422
        %v519 = vpack.c.bf16 %v431, %v423
        %v520 = vpack.c.bf16 %v440, %v432
        %v521 = vpack.c.bf16 %v441, %v433
        %v522 = vpack.c.bf16 %v442, %v434
        %v523 = vpack.c.bf16 %v443, %v435
        %v524 = vpack.c.bf16 %v444, %v436
        %v525 = vpack.c.bf16 %v445, %v437
        %v526 = vpack.c.bf16 %v446, %v438
        %v527 = vpack.c.bf16 %v447, %v439
        %v528 = vld [vmem:[#allocation5] sm:$0xff]
        %v529 = vld [vmem:[#allocation5 + $0x8] sm:$0xff]
        %v530 = vld [vmem:[#allocation5 + $0x10] sm:$0xff]
        %v531 = vld [vmem:[#allocation5 + $0x18] sm:$0xff]
        %v532 = vld [vmem:[#allocation5 + $0x20] sm:$0xff]
        %v533 = vld [vmem:[#allocation5 + $0x28] sm:$0xff]
        %v534 = vld [vmem:[#allocation5 + $0x30] sm:$0xff]
        %v535 = vld [vmem:[#allocation5 + $0x38] sm:$0xff]
        %v536 = vld [vmem:[#allocation5 + $0x40] sm:$0xff]
        %v537 = vld [vmem:[#allocation5 + $0x48] sm:$0xff]
        %v538 = vld [vmem:[#allocation5 + $0x50] sm:$0xff]
        %v539 = vld [vmem:[#allocation5 + $0x58] sm:$0xff]
        %v540 = vld [vmem:[#allocation5 + $0x60] sm:$0xff]
        %v541 = vld [vmem:[#allocation5 + $0x68] sm:$0xff]
        %v542 = vld [vmem:[#allocation5 + $0x70] sm:$0xff]
        %v543 = vld [vmem:[#allocation5 + $0x78] sm:$0xff]
        %v544 = vld [vmem:[#allocation5 + $0x80] sm:$0xff]
        %v545 = vld [vmem:[#allocation5 + $0x88] sm:$0xff]
        %v546 = vld [vmem:[#allocation5 + $0x90] sm:$0xff]
        %v547 = vld [vmem:[#allocation5 + $0x98] sm:$0xff]
        %v548 = vld [vmem:[#allocation5 + $0xa0] sm:$0xff]
        %v549 = vld [vmem:[#allocation5 + $0xa8] sm:$0xff]
        %v550 = vld [vmem:[#allocation5 + $0xb0] sm:$0xff]
        %v551 = vld [vmem:[#allocation5 + $0xb8] sm:$0xff]
        %v552 = vld [vmem:[#allocation5 + $0xc0] sm:$0xff]
        %v553 = vld [vmem:[#allocation5 + $0xc8] sm:$0xff]
        %v554 = vld [vmem:[#allocation5 + $0xd0] sm:$0xff]
        %v555 = vld [vmem:[#allocation5 + $0xd8] sm:$0xff]
        %v556 = vld [vmem:[#allocation5 + $0xe0] sm:$0xff]
        %v557 = vld [vmem:[#allocation5 + $0xe8] sm:$0xff]
        %v558 = vld [vmem:[#allocation5 + $0xf0] sm:$0xff]
        %v559 = vld [vmem:[#allocation5 + $0xf8] sm:$0xff]
        %v560 = vld [vmem:[#allocation5 + $0x100] sm:$0xff]
        %v561 = vld [vmem:[#allocation5 + $0x108] sm:$0xff]
        %v562 = vld [vmem:[#allocation5 + $0x110] sm:$0xff]
        %v563 = vld [vmem:[#allocation5 + $0x118] sm:$0xff]
        %v564 = vld [vmem:[#allocation5 + $0x120] sm:$0xff]
        %v565 = vld [vmem:[#allocation5 + $0x128] sm:$0xff]
        %v566 = vld [vmem:[#allocation5 + $0x130] sm:$0xff]
        %v567 = vld [vmem:[#allocation5 + $0x138] sm:$0xff]
        %v568 = vld [vmem:[#allocation5 + $0x140] sm:$0xff]
        %v569 = vld [vmem:[#allocation5 + $0x148] sm:$0xff]
        %v570 = vld [vmem:[#allocation5 + $0x150] sm:$0xff]
        %v571 = vld [vmem:[#allocation5 + $0x158] sm:$0xff]
        %v572 = vld [vmem:[#allocation5 + $0x160] sm:$0xff]
        %v573 = vld [vmem:[#allocation5 + $0x168] sm:$0xff]
        %v574 = vld [vmem:[#allocation5 + $0x170] sm:$0xff]
        %v575 = vld [vmem:[#allocation5 + $0x178] sm:$0xff]
        %v576 = vld [vmem:[#allocation5 + $0x180] sm:$0xff]
        %v577 = vld [vmem:[#allocation5 + $0x188] sm:$0xff]
        %v578 = vld [vmem:[#allocation5 + $0x190] sm:$0xff]
        %v579 = vld [vmem:[#allocation5 + $0x198] sm:$0xff]
        %v580 = vld [vmem:[#allocation5 + $0x1a0] sm:$0xff]
        %v581 = vld [vmem:[#allocation5 + $0x1a8] sm:$0xff]
        %v582 = vld [vmem:[#allocation5 + $0x1b0] sm:$0xff]
        %v583 = vld [vmem:[#allocation5 + $0x1b8] sm:$0xff]
        %v584 = vld [vmem:[#allocation5 + $0x1c0] sm:$0xff]
        %v585 = vld [vmem:[#allocation5 + $0x1c8] sm:$0xff]
        %v586 = vld [vmem:[#allocation5 + $0x1d0] sm:$0xff]
        %v587 = vld [vmem:[#allocation5 + $0x1d8] sm:$0xff]
        %v588 = vld [vmem:[#allocation5 + $0x1e0] sm:$0xff]
        %v589 = vld [vmem:[#allocation5 + $0x1e8] sm:$0xff]
        %v590 = vld [vmem:[#allocation5 + $0x1f0] sm:$0xff]
        %v591 = vld [vmem:[#allocation5 + $0x1f8] sm:$0xff]
        %v592 = vld [vmem:[#allocation5 + $0x200] sm:$0xff]
        %v593 = vld [vmem:[#allocation5 + $0x208] sm:$0xff]
        %v594 = vld [vmem:[#allocation5 + $0x210] sm:$0xff]
        %v595 = vld [vmem:[#allocation5 + $0x218] sm:$0xff]
        %v596 = vld [vmem:[#allocation5 + $0x220] sm:$0xff]
        %v597 = vld [vmem:[#allocation5 + $0x228] sm:$0xff]
        %v598 = vld [vmem:[#allocation5 + $0x230] sm:$0xff]
        %v599 = vld [vmem:[#allocation5 + $0x238] sm:$0xff]
        %v600 = vld [vmem:[#allocation5 + $0x240] sm:$0xff]
        %v601 = vld [vmem:[#allocation5 + $0x248] sm:$0xff]
        %v602 = vld [vmem:[#allocation5 + $0x250] sm:$0xff]
        %v603 = vld [vmem:[#allocation5 + $0x258] sm:$0xff]
        %v604 = vld [vmem:[#allocation5 + $0x260] sm:$0xff]
        %v605 = vld [vmem:[#allocation5 + $0x268] sm:$0xff]
        %v606 = vld [vmem:[#allocation5 + $0x270] sm:$0xff]
        %v607 = vld [vmem:[#allocation5 + $0x278] sm:$0xff]
        %v608 = vld [vmem:[#allocation5 + $0x280] sm:$0xff]
        %v609 = vld [vmem:[#allocation5 + $0x288] sm:$0xff]
        %v610 = vld [vmem:[#allocation5 + $0x290] sm:$0xff]
        %v611 = vld [vmem:[#allocation5 + $0x298] sm:$0xff]
        %v612 = vld [vmem:[#allocation5 + $0x2a0] sm:$0xff]
        %v613 = vld [vmem:[#allocation5 + $0x2a8] sm:$0xff]
        %v614 = vld [vmem:[#allocation5 + $0x2b0] sm:$0xff]
        %v615 = vld [vmem:[#allocation5 + $0x2b8] sm:$0xff]
        %v616 = vld [vmem:[#allocation5 + $0x2c0] sm:$0xff]
        %v617 = vld [vmem:[#allocation5 + $0x2c8] sm:$0xff]
        %v618 = vld [vmem:[#allocation5 + $0x2d0] sm:$0xff]
        %v619 = vld [vmem:[#allocation5 + $0x2d8] sm:$0xff]
        %v620 = vld [vmem:[#allocation5 + $0x2e0] sm:$0xff]
        %v621 = vld [vmem:[#allocation5 + $0x2e8] sm:$0xff]
        %v622 = vld [vmem:[#allocation5 + $0x2f0] sm:$0xff]
        %v623 = vld [vmem:[#allocation5 + $0x2f8] sm:$0xff]
        %v624 = vld [vmem:[#allocation5 + $0x300] sm:$0xff]
        %v625 = vld [vmem:[#allocation5 + $0x308] sm:$0xff]
        %v626 = vld [vmem:[#allocation5 + $0x310] sm:$0xff]
        %v627 = vld [vmem:[#allocation5 + $0x318] sm:$0xff]
        %v628 = vld [vmem:[#allocation5 + $0x320] sm:$0xff]
        %v629 = vld [vmem:[#allocation5 + $0x328] sm:$0xff]
        %v630 = vld [vmem:[#allocation5 + $0x330] sm:$0xff]
        %v631 = vld [vmem:[#allocation5 + $0x338] sm:$0xff]
        %v632 = vld [vmem:[#allocation5 + $0x340] sm:$0xff]
        %v633 = vld [vmem:[#allocation5 + $0x348] sm:$0xff]
        %v634 = vld [vmem:[#allocation5 + $0x350] sm:$0xff]
        %v635 = vld [vmem:[#allocation5 + $0x358] sm:$0xff]
        %v636 = vld [vmem:[#allocation5 + $0x360] sm:$0xff]
        %v637 = vld [vmem:[#allocation5 + $0x368] sm:$0xff]
        %v638 = vld [vmem:[#allocation5 + $0x370] sm:$0xff]
        %v639 = vld [vmem:[#allocation5 + $0x378] sm:$0xff]
        %v640 = vld [vmem:[#allocation5 + $0x380] sm:$0xff]
        %v641 = vld [vmem:[#allocation5 + $0x388] sm:$0xff]
        %v642 = vld [vmem:[#allocation5 + $0x390] sm:$0xff]
        %v643 = vld [vmem:[#allocation5 + $0x398] sm:$0xff]
        %v644 = vld [vmem:[#allocation5 + $0x3a0] sm:$0xff]
        %v645 = vld [vmem:[#allocation5 + $0x3a8] sm:$0xff]
        %v646 = vld [vmem:[#allocation5 + $0x3b0] sm:$0xff]
        %v647 = vld [vmem:[#allocation5 + $0x3b8] sm:$0xff]
        %v648 = vld [vmem:[#allocation5 + $0x3c0] sm:$0xff]
        %v649 = vld [vmem:[#allocation5 + $0x3c8] sm:$0xff]
        %v650 = vld [vmem:[#allocation5 + $0x3d0] sm:$0xff]
        %v651 = vld [vmem:[#allocation5 + $0x3d8] sm:$0xff]
        %v652 = vld [vmem:[#allocation5 + $0x3e0] sm:$0xff]
        %v653 = vld [vmem:[#allocation5 + $0x3e8] sm:$0xff]
        %v654 = vld [vmem:[#allocation5 + $0x3f0] sm:$0xff]
        %v655 = vld [vmem:[#allocation5 + $0x3f8] sm:$0xff]
        %v656 = vld [vmem:[#allocation5 + $0x400] sm:$0xff]
        %v657 = vld [vmem:[#allocation5 + $0x408] sm:$0xff]
        %v658 = vld [vmem:[#allocation5 + $0x410] sm:$0xff]
        %v659 = vld [vmem:[#allocation5 + $0x418] sm:$0xff]
        %v660 = vld [vmem:[#allocation5 + $0x420] sm:$0xff]
        %v661 = vld [vmem:[#allocation5 + $0x428] sm:$0xff]
        %v662 = vld [vmem:[#allocation5 + $0x430] sm:$0xff]
        %v663 = vld [vmem:[#allocation5 + $0x438] sm:$0xff]
        %v664 = vld [vmem:[#allocation5 + $0x440] sm:$0xff]
        %v665 = vld [vmem:[#allocation5 + $0x448] sm:$0xff]
        %v666 = vld [vmem:[#allocation5 + $0x450] sm:$0xff]
        %v667 = vld [vmem:[#allocation5 + $0x458] sm:$0xff]
        %v668 = vld [vmem:[#allocation5 + $0x460] sm:$0xff]
        %v669 = vld [vmem:[#allocation5 + $0x468] sm:$0xff]
        %v670 = vld [vmem:[#allocation5 + $0x470] sm:$0xff]
        %v671 = vld [vmem:[#allocation5 + $0x478] sm:$0xff]
        %v672 = vld [vmem:[#allocation5 + $0x480] sm:$0xff]
        %v673 = vld [vmem:[#allocation5 + $0x488] sm:$0xff]
        %v674 = vld [vmem:[#allocation5 + $0x490] sm:$0xff]
        %v675 = vld [vmem:[#allocation5 + $0x498] sm:$0xff]
        %v676 = vld [vmem:[#allocation5 + $0x4a0] sm:$0xff]
        %v677 = vld [vmem:[#allocation5 + $0x4a8] sm:$0xff]
        %v678 = vld [vmem:[#allocation5 + $0x4b0] sm:$0xff]
        %v679 = vld [vmem:[#allocation5 + $0x4b8] sm:$0xff]
        %v680 = vld [vmem:[#allocation5 + $0x4c0] sm:$0xff]
        %v681 = vld [vmem:[#allocation5 + $0x4c8] sm:$0xff]
        %v682 = vld [vmem:[#allocation5 + $0x4d0] sm:$0xff]
        %v683 = vld [vmem:[#allocation5 + $0x4d8] sm:$0xff]
        %v684 = vld [vmem:[#allocation5 + $0x4e0] sm:$0xff]
        %v685 = vld [vmem:[#allocation5 + $0x4e8] sm:$0xff]
        %v686 = vld [vmem:[#allocation5 + $0x4f0] sm:$0xff]
        %v687 = vld [vmem:[#allocation5 + $0x4f8] sm:$0xff]
        %v688 = vld [vmem:[#allocation5 + $0x500] sm:$0xff]
        %v689 = vld [vmem:[#allocation5 + $0x508] sm:$0xff]
        %v690 = vld [vmem:[#allocation5 + $0x510] sm:$0xff]
        %v691 = vld [vmem:[#allocation5 + $0x518] sm:$0xff]
        %v692 = vld [vmem:[#allocation5 + $0x520] sm:$0xff]
        %v693 = vld [vmem:[#allocation5 + $0x528] sm:$0xff]
        %v694 = vld [vmem:[#allocation5 + $0x530] sm:$0xff]
        %v695 = vld [vmem:[#allocation5 + $0x538] sm:$0xff]
        %v696 = vld [vmem:[#allocation5 + $0x540] sm:$0xff]
        %v697 = vld [vmem:[#allocation5 + $0x548] sm:$0xff]
        %v698 = vld [vmem:[#allocation5 + $0x550] sm:$0xff]
        %v699 = vld [vmem:[#allocation5 + $0x558] sm:$0xff]
        %v700 = vld [vmem:[#allocation5 + $0x560] sm:$0xff]
        %v701 = vld [vmem:[#allocation5 + $0x568] sm:$0xff]
        %v702 = vld [vmem:[#allocation5 + $0x570] sm:$0xff]
        %v703 = vld [vmem:[#allocation5 + $0x578] sm:$0xff]
        %v704 = vld [vmem:[#allocation5 + $0x580] sm:$0xff]
        %v705 = vld [vmem:[#allocation5 + $0x588] sm:$0xff]
        %v706 = vld [vmem:[#allocation5 + $0x590] sm:$0xff]
        %v707 = vld [vmem:[#allocation5 + $0x598] sm:$0xff]
        %v708 = vld [vmem:[#allocation5 + $0x5a0] sm:$0xff]
        %v709 = vld [vmem:[#allocation5 + $0x5a8] sm:$0xff]
        %v710 = vld [vmem:[#allocation5 + $0x5b0] sm:$0xff]
        %v711 = vld [vmem:[#allocation5 + $0x5b8] sm:$0xff]
        %v712 = vld [vmem:[#allocation5 + $0x5c0] sm:$0xff]
        %v713 = vld [vmem:[#allocation5 + $0x5c8] sm:$0xff]
        %v714 = vld [vmem:[#allocation5 + $0x5d0] sm:$0xff]
        %v715 = vld [vmem:[#allocation5 + $0x5d8] sm:$0xff]
        %v716 = vld [vmem:[#allocation5 + $0x5e0] sm:$0xff]
        %v717 = vld [vmem:[#allocation5 + $0x5e8] sm:$0xff]
        %v718 = vld [vmem:[#allocation5 + $0x5f0] sm:$0xff]
        %v719 = vld [vmem:[#allocation5 + $0x5f8] sm:$0xff]
        %v720 = vld [vmem:[#allocation5 + $0x600] sm:$0xff]
        %v721 = vld [vmem:[#allocation5 + $0x608] sm:$0xff]
        %v722 = vld [vmem:[#allocation5 + $0x610] sm:$0xff]
        %v723 = vld [vmem:[#allocation5 + $0x618] sm:$0xff]
        %v724 = vld [vmem:[#allocation5 + $0x620] sm:$0xff]
        %v725 = vld [vmem:[#allocation5 + $0x628] sm:$0xff]
        %v726 = vld [vmem:[#allocation5 + $0x630] sm:$0xff]
        %v727 = vld [vmem:[#allocation5 + $0x638] sm:$0xff]
        %v728 = vld [vmem:[#allocation5 + $0x640] sm:$0xff]
        %v729 = vld [vmem:[#allocation5 + $0x648] sm:$0xff]
        %v730 = vld [vmem:[#allocation5 + $0x650] sm:$0xff]
        %v731 = vld [vmem:[#allocation5 + $0x658] sm:$0xff]
        %v732 = vld [vmem:[#allocation5 + $0x660] sm:$0xff]
        %v733 = vld [vmem:[#allocation5 + $0x668] sm:$0xff]
        %v734 = vld [vmem:[#allocation5 + $0x670] sm:$0xff]
        %v735 = vld [vmem:[#allocation5 + $0x678] sm:$0xff]
        %v736 = vld [vmem:[#allocation5 + $0x680] sm:$0xff]
        %v737 = vld [vmem:[#allocation5 + $0x688] sm:$0xff]
        %v738 = vld [vmem:[#allocation5 + $0x690] sm:$0xff]
        %v739 = vld [vmem:[#allocation5 + $0x698] sm:$0xff]
        %v740 = vld [vmem:[#allocation5 + $0x6a0] sm:$0xff]
        %v741 = vld [vmem:[#allocation5 + $0x6a8] sm:$0xff]
        %v742 = vld [vmem:[#allocation5 + $0x6b0] sm:$0xff]
        %v743 = vld [vmem:[#allocation5 + $0x6b8] sm:$0xff]
        %v744 = vld [vmem:[#allocation5 + $0x6c0] sm:$0xff]
        %v745 = vld [vmem:[#allocation5 + $0x6c8] sm:$0xff]
        %v746 = vld [vmem:[#allocation5 + $0x6d0] sm:$0xff]
        %v747 = vld [vmem:[#allocation5 + $0x6d8] sm:$0xff]
        %v748 = vld [vmem:[#allocation5 + $0x6e0] sm:$0xff]
        %v749 = vld [vmem:[#allocation5 + $0x6e8] sm:$0xff]
        %v750 = vld [vmem:[#allocation5 + $0x6f0] sm:$0xff]
        %v751 = vld [vmem:[#allocation5 + $0x6f8] sm:$0xff]
        %v752 = vld [vmem:[#allocation5 + $0x700] sm:$0xff]
        %v753 = vld [vmem:[#allocation5 + $0x708] sm:$0xff]
        %v754 = vld [vmem:[#allocation5 + $0x710] sm:$0xff]
        %v755 = vld [vmem:[#allocation5 + $0x718] sm:$0xff]
        %v756 = vld [vmem:[#allocation5 + $0x720] sm:$0xff]
        %v757 = vld [vmem:[#allocation5 + $0x728] sm:$0xff]
        %v758 = vld [vmem:[#allocation5 + $0x730] sm:$0xff]
        %v759 = vld [vmem:[#allocation5 + $0x738] sm:$0xff]
        %v760 = vld [vmem:[#allocation5 + $0x740] sm:$0xff]
        %v761 = vld [vmem:[#allocation5 + $0x748] sm:$0xff]
        %v762 = vld [vmem:[#allocation5 + $0x750] sm:$0xff]
        %v763 = vld [vmem:[#allocation5 + $0x758] sm:$0xff]
        %v764 = vld [vmem:[#allocation5 + $0x760] sm:$0xff]
        %v765 = vld [vmem:[#allocation5 + $0x768] sm:$0xff]
        %v766 = vld [vmem:[#allocation5 + $0x770] sm:$0xff]
        %v767 = vld [vmem:[#allocation5 + $0x778] sm:$0xff]
        %v768 = vld [vmem:[#allocation5 + $0x780] sm:$0xff]
        %v769 = vld [vmem:[#allocation5 + $0x788] sm:$0xff]
        %v770 = vld [vmem:[#allocation5 + $0x790] sm:$0xff]
        %v771 = vld [vmem:[#allocation5 + $0x798] sm:$0xff]
        %v772 = vld [vmem:[#allocation5 + $0x7a0] sm:$0xff]
        %v773 = vld [vmem:[#allocation5 + $0x7a8] sm:$0xff]
        %v774 = vld [vmem:[#allocation5 + $0x7b0] sm:$0xff]
        %v775 = vld [vmem:[#allocation5 + $0x7b8] sm:$0xff]
        %v776 = vld [vmem:[#allocation5 + $0x7c0] sm:$0xff]
        %v777 = vld [vmem:[#allocation5 + $0x7c8] sm:$0xff]
        %v778 = vld [vmem:[#allocation5 + $0x7d0] sm:$0xff]
        %v779 = vld [vmem:[#allocation5 + $0x7d8] sm:$0xff]
        %v780 = vld [vmem:[#allocation5 + $0x7e0] sm:$0xff]
        %v781 = vld [vmem:[#allocation5 + $0x7e8] sm:$0xff]
        %v782 = vld [vmem:[#allocation5 + $0x7f0] sm:$0xff]
        %v783 = vld [vmem:[#allocation5 + $0x7f8] sm:$0xff]
        %v784 = vld [vmem:[#allocation7] sm:$0xf]
        %v786 = vlaneseq
        %v787 = vshrl.u32 %v786, 7
        %v788 = vsub.s32 0, %v787
        %v789 = vrot.slane %v784, %v788
        %v790 = vlaneseq
        %v791 = vshrl.u32 %v790, 7
        %v792 = vsub.s32 1, %v791
        %v793 = vrot.slane %v784, %v792
        %v794 = vlaneseq
        %v795 = vshrl.u32 %v794, 7
        %v796 = vsub.s32 2, %v795
        %v797 = vrot.slane %v784, %v796
        %v798 = vlaneseq
        %v799 = vshrl.u32 %v798, 7
        %v800 = vsub.s32 3, %v799
        %v801 = vrot.slane %v784, %v800
        %v1062 = vunpack.c.l.b16 %v528
        %v1063 = vunpack.c.h.b16 %v528
        %v1064 = vunpack.c.l.b16 %v529
        %v1065 = vunpack.c.h.b16 %v529
        %v1066 = vunpack.c.l.b16 %v530
        %v1067 = vunpack.c.h.b16 %v530
        %v1068 = vunpack.c.l.b16 %v531
        %v1069 = vunpack.c.h.b16 %v531
        %v1070 = vunpack.c.l.b16 %v532
        %v1071 = vunpack.c.h.b16 %v532
        %v1072 = vunpack.c.l.b16 %v533
        %v1073 = vunpack.c.h.b16 %v533
        %v1074 = vunpack.c.l.b16 %v534
        %v1075 = vunpack.c.h.b16 %v534
        %v1076 = vunpack.c.l.b16 %v535
        %v1077 = vunpack.c.h.b16 %v535
        %v1078 = vunpack.c.l.b16 %v536
        %v1079 = vunpack.c.h.b16 %v536
        %v1080 = vunpack.c.l.b16 %v537
        %v1081 = vunpack.c.h.b16 %v537
        %v1082 = vunpack.c.l.b16 %v538
        %v1083 = vunpack.c.h.b16 %v538
        %v1084 = vunpack.c.l.b16 %v539
        %v1085 = vunpack.c.h.b16 %v539
        %v1086 = vunpack.c.l.b16 %v540
        %v1087 = vunpack.c.h.b16 %v540
        %v1088 = vunpack.c.l.b16 %v541
        %v1089 = vunpack.c.h.b16 %v541
        %v1090 = vunpack.c.l.b16 %v542
        %v1091 = vunpack.c.h.b16 %v542
        %v1092 = vunpack.c.l.b16 %v543
        %v1093 = vunpack.c.h.b16 %v543
        %v1094 = vunpack.c.l.b16 %v544
        %v1095 = vunpack.c.h.b16 %v544
        %v1096 = vunpack.c.l.b16 %v545
        %v1097 = vunpack.c.h.b16 %v545
        %v1098 = vunpack.c.l.b16 %v546
        %v1099 = vunpack.c.h.b16 %v546
        %v1100 = vunpack.c.l.b16 %v547
        %v1101 = vunpack.c.h.b16 %v547
        %v1102 = vunpack.c.l.b16 %v548
        %v1103 = vunpack.c.h.b16 %v548
        %v1104 = vunpack.c.l.b16 %v549
        %v1105 = vunpack.c.h.b16 %v549
        %v1106 = vunpack.c.l.b16 %v550
        %v1107 = vunpack.c.h.b16 %v550
        %v1108 = vunpack.c.l.b16 %v551
        %v1109 = vunpack.c.h.b16 %v551
        %v1110 = vunpack.c.l.b16 %v552
        %v1111 = vunpack.c.h.b16 %v552
        %v1112 = vunpack.c.l.b16 %v553
        %v1113 = vunpack.c.h.b16 %v553
        %v1114 = vunpack.c.l.b16 %v554
        %v1115 = vunpack.c.h.b16 %v554
        %v1116 = vunpack.c.l.b16 %v555
        %v1117 = vunpack.c.h.b16 %v555
        %v1118 = vunpack.c.l.b16 %v556
        %v1119 = vunpack.c.h.b16 %v556
        %v1120 = vunpack.c.l.b16 %v557
        %v1121 = vunpack.c.h.b16 %v557
        %v1122 = vunpack.c.l.b16 %v558
        %v1123 = vunpack.c.h.b16 %v558
        %v1124 = vunpack.c.l.b16 %v559
        %v1125 = vunpack.c.h.b16 %v559
        %v1126 = vunpack.c.l.b16 %v560
        %v1127 = vunpack.c.h.b16 %v560
        %v1128 = vunpack.c.l.b16 %v561
        %v1129 = vunpack.c.h.b16 %v561
        %v1130 = vunpack.c.l.b16 %v562
        %v1131 = vunpack.c.h.b16 %v562
        %v1132 = vunpack.c.l.b16 %v563
        %v1133 = vunpack.c.h.b16 %v563
        %v1134 = vunpack.c.l.b16 %v564
        %v1135 = vunpack.c.h.b16 %v564
        %v1136 = vunpack.c.l.b16 %v565
        %v1137 = vunpack.c.h.b16 %v565
        %v1138 = vunpack.c.l.b16 %v566
        %v1139 = vunpack.c.h.b16 %v566
        %v1140 = vunpack.c.l.b16 %v567
        %v1141 = vunpack.c.h.b16 %v567
        %v1142 = vunpack.c.l.b16 %v568
        %v1143 = vunpack.c.h.b16 %v568
        %v1144 = vunpack.c.l.b16 %v569
        %v1145 = vunpack.c.h.b16 %v569
        %v1146 = vunpack.c.l.b16 %v570
        %v1147 = vunpack.c.h.b16 %v570
        %v1148 = vunpack.c.l.b16 %v571
        %v1149 = vunpack.c.h.b16 %v571
        %v1150 = vunpack.c.l.b16 %v572
        %v1151 = vunpack.c.h.b16 %v572
        %v1152 = vunpack.c.l.b16 %v573
        %v1153 = vunpack.c.h.b16 %v573
        %v1154 = vunpack.c.l.b16 %v574
        %v1155 = vunpack.c.h.b16 %v574
        %v1156 = vunpack.c.l.b16 %v575
        %v1157 = vunpack.c.h.b16 %v575
        %v1158 = vunpack.c.l.b16 %v576
        %v1159 = vunpack.c.h.b16 %v576
        %v1160 = vunpack.c.l.b16 %v577
        %v1161 = vunpack.c.h.b16 %v577
        %v1162 = vunpack.c.l.b16 %v578
        %v1163 = vunpack.c.h.b16 %v578
        %v1164 = vunpack.c.l.b16 %v579
        %v1165 = vunpack.c.h.b16 %v579
        %v1166 = vunpack.c.l.b16 %v580
        %v1167 = vunpack.c.h.b16 %v580
        %v1168 = vunpack.c.l.b16 %v581
        %v1169 = vunpack.c.h.b16 %v581
        %v1170 = vunpack.c.l.b16 %v582
        %v1171 = vunpack.c.h.b16 %v582
        %v1172 = vunpack.c.l.b16 %v583
        %v1173 = vunpack.c.h.b16 %v583
        %v1174 = vunpack.c.l.b16 %v584
        %v1175 = vunpack.c.h.b16 %v584
        %v1176 = vunpack.c.l.b16 %v585
        %v1177 = vunpack.c.h.b16 %v585
        %v1178 = vunpack.c.l.b16 %v586
        %v1179 = vunpack.c.h.b16 %v586
        %v1180 = vunpack.c.l.b16 %v587
        %v1181 = vunpack.c.h.b16 %v587
        %v1182 = vunpack.c.l.b16 %v588
        %v1183 = vunpack.c.h.b16 %v588
        %v1184 = vunpack.c.l.b16 %v589
        %v1185 = vunpack.c.h.b16 %v589
        %v1186 = vunpack.c.l.b16 %v590
        %v1187 = vunpack.c.h.b16 %v590
        %v1188 = vunpack.c.l.b16 %v591
        %v1189 = vunpack.c.h.b16 %v591
        %v1190 = vunpack.c.l.b16 %v592
        %v1191 = vunpack.c.h.b16 %v592
        %v1192 = vunpack.c.l.b16 %v593
        %v1193 = vunpack.c.h.b16 %v593
        %v1194 = vunpack.c.l.b16 %v594
        %v1195 = vunpack.c.h.b16 %v594
        %v1196 = vunpack.c.l.b16 %v595
        %v1197 = vunpack.c.h.b16 %v595
        %v1198 = vunpack.c.l.b16 %v596
        %v1199 = vunpack.c.h.b16 %v596
        %v1200 = vunpack.c.l.b16 %v597
        %v1201 = vunpack.c.h.b16 %v597
        %v1202 = vunpack.c.l.b16 %v598
        %v1203 = vunpack.c.h.b16 %v598
        %v1204 = vunpack.c.l.b16 %v599
        %v1205 = vunpack.c.h.b16 %v599
        %v1206 = vunpack.c.l.b16 %v600
        %v1207 = vunpack.c.h.b16 %v600
        %v1208 = vunpack.c.l.b16 %v601
        %v1209 = vunpack.c.h.b16 %v601
        %v1210 = vunpack.c.l.b16 %v602
        %v1211 = vunpack.c.h.b16 %v602
        %v1212 = vunpack.c.l.b16 %v603
        %v1213 = vunpack.c.h.b16 %v603
        %v1214 = vunpack.c.l.b16 %v604
        %v1215 = vunpack.c.h.b16 %v604
        %v1216 = vunpack.c.l.b16 %v605
        %v1217 = vunpack.c.h.b16 %v605
        %v1218 = vunpack.c.l.b16 %v606
        %v1219 = vunpack.c.h.b16 %v606
        %v1220 = vunpack.c.l.b16 %v607
        %v1221 = vunpack.c.h.b16 %v607
        %v1222 = vunpack.c.l.b16 %v608
        %v1223 = vunpack.c.h.b16 %v608
        %v1224 = vunpack.c.l.b16 %v609
        %v1225 = vunpack.c.h.b16 %v609
        %v1226 = vunpack.c.l.b16 %v610
        %v1227 = vunpack.c.h.b16 %v610
        %v1228 = vunpack.c.l.b16 %v611
        %v1229 = vunpack.c.h.b16 %v611
        %v1230 = vunpack.c.l.b16 %v612
        %v1231 = vunpack.c.h.b16 %v612
        %v1232 = vunpack.c.l.b16 %v613
        %v1233 = vunpack.c.h.b16 %v613
        %v1234 = vunpack.c.l.b16 %v614
        %v1235 = vunpack.c.h.b16 %v614
        %v1236 = vunpack.c.l.b16 %v615
        %v1237 = vunpack.c.h.b16 %v615
        %v1238 = vunpack.c.l.b16 %v616
        %v1239 = vunpack.c.h.b16 %v616
        %v1240 = vunpack.c.l.b16 %v617
        %v1241 = vunpack.c.h.b16 %v617
        %v1242 = vunpack.c.l.b16 %v618
        %v1243 = vunpack.c.h.b16 %v618
        %v1244 = vunpack.c.l.b16 %v619
        %v1245 = vunpack.c.h.b16 %v619
        %v1246 = vunpack.c.l.b16 %v620
        %v1247 = vunpack.c.h.b16 %v620
        %v1248 = vunpack.c.l.b16 %v621
        %v1249 = vunpack.c.h.b16 %v621
        %v1250 = vunpack.c.l.b16 %v622
        %v1251 = vunpack.c.h.b16 %v622
        %v1252 = vunpack.c.l.b16 %v623
        %v1253 = vunpack.c.h.b16 %v623
        %v1254 = vunpack.c.l.b16 %v624
        %v1255 = vunpack.c.h.b16 %v624
        %v1256 = vunpack.c.l.b16 %v625
        %v1257 = vunpack.c.h.b16 %v625
        %v1258 = vunpack.c.l.b16 %v626
        %v1259 = vunpack.c.h.b16 %v626
        %v1260 = vunpack.c.l.b16 %v627
        %v1261 = vunpack.c.h.b16 %v627
        %v1262 = vunpack.c.l.b16 %v628
        %v1263 = vunpack.c.h.b16 %v628
        %v1264 = vunpack.c.l.b16 %v629
        %v1265 = vunpack.c.h.b16 %v629
        %v1266 = vunpack.c.l.b16 %v630
        %v1267 = vunpack.c.h.b16 %v630
        %v1268 = vunpack.c.l.b16 %v631
        %v1269 = vunpack.c.h.b16 %v631
        %v1270 = vunpack.c.l.b16 %v632
        %v1271 = vunpack.c.h.b16 %v632
        %v1272 = vunpack.c.l.b16 %v633
        %v1273 = vunpack.c.h.b16 %v633
        %v1274 = vunpack.c.l.b16 %v634
        %v1275 = vunpack.c.h.b16 %v634
        %v1276 = vunpack.c.l.b16 %v635
        %v1277 = vunpack.c.h.b16 %v635
        %v1278 = vunpack.c.l.b16 %v636
        %v1279 = vunpack.c.h.b16 %v636
        %v1280 = vunpack.c.l.b16 %v637
        %v1281 = vunpack.c.h.b16 %v637
        %v1282 = vunpack.c.l.b16 %v638
        %v1283 = vunpack.c.h.b16 %v638
        %v1284 = vunpack.c.l.b16 %v639
        %v1285 = vunpack.c.h.b16 %v639
        %v1286 = vunpack.c.l.b16 %v640
        %v1287 = vunpack.c.h.b16 %v640
        %v1288 = vunpack.c.l.b16 %v641
        %v1289 = vunpack.c.h.b16 %v641
        %v1290 = vunpack.c.l.b16 %v642
        %v1291 = vunpack.c.h.b16 %v642
        %v1292 = vunpack.c.l.b16 %v643
        %v1293 = vunpack.c.h.b16 %v643
        %v1294 = vunpack.c.l.b16 %v644
        %v1295 = vunpack.c.h.b16 %v644
        %v1296 = vunpack.c.l.b16 %v645
        %v1297 = vunpack.c.h.b16 %v645
        %v1298 = vunpack.c.l.b16 %v646
        %v1299 = vunpack.c.h.b16 %v646
        %v1300 = vunpack.c.l.b16 %v647
        %v1301 = vunpack.c.h.b16 %v647
        %v1302 = vunpack.c.l.b16 %v648
        %v1303 = vunpack.c.h.b16 %v648
        %v1304 = vunpack.c.l.b16 %v649
        %v1305 = vunpack.c.h.b16 %v649
        %v1306 = vunpack.c.l.b16 %v650
        %v1307 = vunpack.c.h.b16 %v650
        %v1308 = vunpack.c.l.b16 %v651
        %v1309 = vunpack.c.h.b16 %v651
        %v1310 = vunpack.c.l.b16 %v652
        %v1311 = vunpack.c.h.b16 %v652
        %v1312 = vunpack.c.l.b16 %v653
        %v1313 = vunpack.c.h.b16 %v653
        %v1314 = vunpack.c.l.b16 %v654
        %v1315 = vunpack.c.h.b16 %v654
        %v1316 = vunpack.c.l.b16 %v655
        %v1317 = vunpack.c.h.b16 %v655
        %v1318 = vunpack.c.l.b16 %v656
        %v1319 = vunpack.c.h.b16 %v656
        %v1320 = vunpack.c.l.b16 %v657
        %v1321 = vunpack.c.h.b16 %v657
        %v1322 = vunpack.c.l.b16 %v658
        %v1323 = vunpack.c.h.b16 %v658
        %v1324 = vunpack.c.l.b16 %v659
        %v1325 = vunpack.c.h.b16 %v659
        %v1326 = vunpack.c.l.b16 %v660
        %v1327 = vunpack.c.h.b16 %v660
        %v1328 = vunpack.c.l.b16 %v661
        %v1329 = vunpack.c.h.b16 %v661
        %v1330 = vunpack.c.l.b16 %v662
        %v1331 = vunpack.c.h.b16 %v662
        %v1332 = vunpack.c.l.b16 %v663
        %v1333 = vunpack.c.h.b16 %v663
        %v1334 = vunpack.c.l.b16 %v664
        %v1335 = vunpack.c.h.b16 %v664
        %v1336 = vunpack.c.l.b16 %v665
        %v1337 = vunpack.c.h.b16 %v665
        %v1338 = vunpack.c.l.b16 %v666
        %v1339 = vunpack.c.h.b16 %v666
        %v1340 = vunpack.c.l.b16 %v667
        %v1341 = vunpack.c.h.b16 %v667
        %v1342 = vunpack.c.l.b16 %v668
        %v1343 = vunpack.c.h.b16 %v668
        %v1344 = vunpack.c.l.b16 %v669
        %v1345 = vunpack.c.h.b16 %v669
        %v1346 = vunpack.c.l.b16 %v670
        %v1347 = vunpack.c.h.b16 %v670
        %v1348 = vunpack.c.l.b16 %v671
        %v1349 = vunpack.c.h.b16 %v671
        %v1350 = vunpack.c.l.b16 %v672
        %v1351 = vunpack.c.h.b16 %v672
        %v1352 = vunpack.c.l.b16 %v673
        %v1353 = vunpack.c.h.b16 %v673
        %v1354 = vunpack.c.l.b16 %v674
        %v1355 = vunpack.c.h.b16 %v674
        %v1356 = vunpack.c.l.b16 %v675
        %v1357 = vunpack.c.h.b16 %v675
        %v1358 = vunpack.c.l.b16 %v676
        %v1359 = vunpack.c.h.b16 %v676
        %v1360 = vunpack.c.l.b16 %v677
        %v1361 = vunpack.c.h.b16 %v677
        %v1362 = vunpack.c.l.b16 %v678
        %v1363 = vunpack.c.h.b16 %v678
        %v1364 = vunpack.c.l.b16 %v679
        %v1365 = vunpack.c.h.b16 %v679
        %v1366 = vunpack.c.l.b16 %v680
        %v1367 = vunpack.c.h.b16 %v680
        %v1368 = vunpack.c.l.b16 %v681
        %v1369 = vunpack.c.h.b16 %v681
        %v1370 = vunpack.c.l.b16 %v682
        %v1371 = vunpack.c.h.b16 %v682
        %v1372 = vunpack.c.l.b16 %v683
        %v1373 = vunpack.c.h.b16 %v683
        %v1374 = vunpack.c.l.b16 %v684
        %v1375 = vunpack.c.h.b16 %v684
        %v1376 = vunpack.c.l.b16 %v685
        %v1377 = vunpack.c.h.b16 %v685
        %v1378 = vunpack.c.l.b16 %v686
        %v1379 = vunpack.c.h.b16 %v686
        %v1380 = vunpack.c.l.b16 %v687
        %v1381 = vunpack.c.h.b16 %v687
        %v1382 = vunpack.c.l.b16 %v688
        %v1383 = vunpack.c.h.b16 %v688
        %v1384 = vunpack.c.l.b16 %v689
        %v1385 = vunpack.c.h.b16 %v689
        %v1386 = vunpack.c.l.b16 %v690
        %v1387 = vunpack.c.h.b16 %v690
        %v1388 = vunpack.c.l.b16 %v691
        %v1389 = vunpack.c.h.b16 %v691
        %v1390 = vunpack.c.l.b16 %v692
        %v1391 = vunpack.c.h.b16 %v692
        %v1392 = vunpack.c.l.b16 %v693
        %v1393 = vunpack.c.h.b16 %v693
        %v1394 = vunpack.c.l.b16 %v694
        %v1395 = vunpack.c.h.b16 %v694
        %v1396 = vunpack.c.l.b16 %v695
        %v1397 = vunpack.c.h.b16 %v695
        %v1398 = vunpack.c.l.b16 %v696
        %v1399 = vunpack.c.h.b16 %v696
        %v1400 = vunpack.c.l.b16 %v697
        %v1401 = vunpack.c.h.b16 %v697
        %v1402 = vunpack.c.l.b16 %v698
        %v1403 = vunpack.c.h.b16 %v698
        %v1404 = vunpack.c.l.b16 %v699
        %v1405 = vunpack.c.h.b16 %v699
        %v1406 = vunpack.c.l.b16 %v700
        %v1407 = vunpack.c.h.b16 %v700
        %v1408 = vunpack.c.l.b16 %v701
        %v1409 = vunpack.c.h.b16 %v701
        %v1410 = vunpack.c.l.b16 %v702
        %v1411 = vunpack.c.h.b16 %v702
        %v1412 = vunpack.c.l.b16 %v703
        %v1413 = vunpack.c.h.b16 %v703
        %v1414 = vunpack.c.l.b16 %v704
        %v1415 = vunpack.c.h.b16 %v704
        %v1416 = vunpack.c.l.b16 %v705
        %v1417 = vunpack.c.h.b16 %v705
        %v1418 = vunpack.c.l.b16 %v706
        %v1419 = vunpack.c.h.b16 %v706
        %v1420 = vunpack.c.l.b16 %v707
        %v1421 = vunpack.c.h.b16 %v707
        %v1422 = vunpack.c.l.b16 %v708
        %v1423 = vunpack.c.h.b16 %v708
        %v1424 = vunpack.c.l.b16 %v709
        %v1425 = vunpack.c.h.b16 %v709
        %v1426 = vunpack.c.l.b16 %v710
        %v1427 = vunpack.c.h.b16 %v710
        %v1428 = vunpack.c.l.b16 %v711
        %v1429 = vunpack.c.h.b16 %v711
        %v1430 = vunpack.c.l.b16 %v712
        %v1431 = vunpack.c.h.b16 %v712
        %v1432 = vunpack.c.l.b16 %v713
        %v1433 = vunpack.c.h.b16 %v713
        %v1434 = vunpack.c.l.b16 %v714
        %v1435 = vunpack.c.h.b16 %v714
        %v1436 = vunpack.c.l.b16 %v715
        %v1437 = vunpack.c.h.b16 %v715
        %v1438 = vunpack.c.l.b16 %v716
        %v1439 = vunpack.c.h.b16 %v716
        %v1440 = vunpack.c.l.b16 %v717
        %v1441 = vunpack.c.h.b16 %v717
        %v1442 = vunpack.c.l.b16 %v718
        %v1443 = vunpack.c.h.b16 %v718
        %v1444 = vunpack.c.l.b16 %v719
        %v1445 = vunpack.c.h.b16 %v719
        %v1446 = vunpack.c.l.b16 %v720
        %v1447 = vunpack.c.h.b16 %v720
        %v1448 = vunpack.c.l.b16 %v721
        %v1449 = vunpack.c.h.b16 %v721
        %v1450 = vunpack.c.l.b16 %v722
        %v1451 = vunpack.c.h.b16 %v722
        %v1452 = vunpack.c.l.b16 %v723
        %v1453 = vunpack.c.h.b16 %v723
        %v1454 = vunpack.c.l.b16 %v724
        %v1455 = vunpack.c.h.b16 %v724
        %v1456 = vunpack.c.l.b16 %v725
        %v1457 = vunpack.c.h.b16 %v725
        %v1458 = vunpack.c.l.b16 %v726
        %v1459 = vunpack.c.h.b16 %v726
        %v1460 = vunpack.c.l.b16 %v727
        %v1461 = vunpack.c.h.b16 %v727
        %v1462 = vunpack.c.l.b16 %v728
        %v1463 = vunpack.c.h.b16 %v728
        %v1464 = vunpack.c.l.b16 %v729
        %v1465 = vunpack.c.h.b16 %v729
        %v1466 = vunpack.c.l.b16 %v730
        %v1467 = vunpack.c.h.b16 %v730
        %v1468 = vunpack.c.l.b16 %v731
        %v1469 = vunpack.c.h.b16 %v731
        %v1470 = vunpack.c.l.b16 %v732
        %v1471 = vunpack.c.h.b16 %v732
        %v1472 = vunpack.c.l.b16 %v733
        %v1473 = vunpack.c.h.b16 %v733
        %v1474 = vunpack.c.l.b16 %v734
        %v1475 = vunpack.c.h.b16 %v734
        %v1476 = vunpack.c.l.b16 %v735
        %v1477 = vunpack.c.h.b16 %v735
        %v1478 = vunpack.c.l.b16 %v736
        %v1479 = vunpack.c.h.b16 %v736
        %v1480 = vunpack.c.l.b16 %v737
        %v1481 = vunpack.c.h.b16 %v737
        %v1482 = vunpack.c.l.b16 %v738
        %v1483 = vunpack.c.h.b16 %v738
        %v1484 = vunpack.c.l.b16 %v739
        %v1485 = vunpack.c.h.b16 %v739
        %v1486 = vunpack.c.l.b16 %v740
        %v1487 = vunpack.c.h.b16 %v740
        %v1488 = vunpack.c.l.b16 %v741
        %v1489 = vunpack.c.h.b16 %v741
        %v1490 = vunpack.c.l.b16 %v742
        %v1491 = vunpack.c.h.b16 %v742
        %v1492 = vunpack.c.l.b16 %v743
        %v1493 = vunpack.c.h.b16 %v743
        %v1494 = vunpack.c.l.b16 %v744
        %v1495 = vunpack.c.h.b16 %v744
        %v1496 = vunpack.c.l.b16 %v745
        %v1497 = vunpack.c.h.b16 %v745
        %v1498 = vunpack.c.l.b16 %v746
        %v1499 = vunpack.c.h.b16 %v746
        %v1500 = vunpack.c.l.b16 %v747
        %v1501 = vunpack.c.h.b16 %v747
        %v1502 = vunpack.c.l.b16 %v748
        %v1503 = vunpack.c.h.b16 %v748
        %v1504 = vunpack.c.l.b16 %v749
        %v1505 = vunpack.c.h.b16 %v749
        %v1506 = vunpack.c.l.b16 %v750
        %v1507 = vunpack.c.h.b16 %v750
        %v1508 = vunpack.c.l.b16 %v751
        %v1509 = vunpack.c.h.b16 %v751
        %v1510 = vunpack.c.l.b16 %v752
        %v1511 = vunpack.c.h.b16 %v752
        %v1512 = vunpack.c.l.b16 %v753
        %v1513 = vunpack.c.h.b16 %v753
        %v1514 = vunpack.c.l.b16 %v754
        %v1515 = vunpack.c.h.b16 %v754
        %v1516 = vunpack.c.l.b16 %v755
        %v1517 = vunpack.c.h.b16 %v755
        %v1518 = vunpack.c.l.b16 %v756
        %v1519 = vunpack.c.h.b16 %v756
        %v1520 = vunpack.c.l.b16 %v757
        %v1521 = vunpack.c.h.b16 %v757
        %v1522 = vunpack.c.l.b16 %v758
        %v1523 = vunpack.c.h.b16 %v758
        %v1524 = vunpack.c.l.b16 %v759
        %v1525 = vunpack.c.h.b16 %v759
        %v1526 = vunpack.c.l.b16 %v760
        %v1527 = vunpack.c.h.b16 %v760
        %v1528 = vunpack.c.l.b16 %v761
        %v1529 = vunpack.c.h.b16 %v761
        %v1530 = vunpack.c.l.b16 %v762
        %v1531 = vunpack.c.h.b16 %v762
        %v1532 = vunpack.c.l.b16 %v763
        %v1533 = vunpack.c.h.b16 %v763
        %v1534 = vunpack.c.l.b16 %v764
        %v1535 = vunpack.c.h.b16 %v764
        %v1536 = vunpack.c.l.b16 %v765
        %v1537 = vunpack.c.h.b16 %v765
        %v1538 = vunpack.c.l.b16 %v766
        %v1539 = vunpack.c.h.b16 %v766
        %v1540 = vunpack.c.l.b16 %v767
        %v1541 = vunpack.c.h.b16 %v767
        %v1542 = vunpack.c.l.b16 %v768
        %v1543 = vunpack.c.h.b16 %v768
        %v1544 = vunpack.c.l.b16 %v769
        %v1545 = vunpack.c.h.b16 %v769
        %v1546 = vunpack.c.l.b16 %v770
        %v1547 = vunpack.c.h.b16 %v770
        %v1548 = vunpack.c.l.b16 %v771
        %v1549 = vunpack.c.h.b16 %v771
        %v1550 = vunpack.c.l.b16 %v772
        %v1551 = vunpack.c.h.b16 %v772
        %v1552 = vunpack.c.l.b16 %v773
        %v1553 = vunpack.c.h.b16 %v773
        %v1554 = vunpack.c.l.b16 %v774
        %v1555 = vunpack.c.h.b16 %v774
        %v1556 = vunpack.c.l.b16 %v775
        %v1557 = vunpack.c.h.b16 %v775
        %v1558 = vunpack.c.l.b16 %v776
        %v1559 = vunpack.c.h.b16 %v776
        %v1560 = vunpack.c.l.b16 %v777
        %v1561 = vunpack.c.h.b16 %v777
        %v1562 = vunpack.c.l.b16 %v778
        %v1563 = vunpack.c.h.b16 %v778
        %v1564 = vunpack.c.l.b16 %v779
        %v1565 = vunpack.c.h.b16 %v779
        %v1566 = vunpack.c.l.b16 %v780
        %v1567 = vunpack.c.h.b16 %v780
        %v1568 = vunpack.c.l.b16 %v781
        %v1569 = vunpack.c.h.b16 %v781
        %v1570 = vunpack.c.l.b16 %v782
        %v1571 = vunpack.c.h.b16 %v782
        %v1572 = vunpack.c.l.b16 %v783
        %v1573 = vunpack.c.h.b16 %v783
        %v1574 = vpack.c.b16 %v1066, %v1062
        %v1575 = vpack.c.b16 %v1067, %v1063
        %v1576 = vpack.c.b16 %v1068, %v1064
        %v1577 = vpack.c.b16 %v1069, %v1065
        %v1578 = vpack.c.b16 %v1074, %v1070
        %v1579 = vpack.c.b16 %v1075, %v1071
        %v1580 = vpack.c.b16 %v1076, %v1072
        %v1581 = vpack.c.b16 %v1077, %v1073
        %v1582 = vpack.c.b16 %v1082, %v1078
        %v1583 = vpack.c.b16 %v1083, %v1079
        %v1584 = vpack.c.b16 %v1084, %v1080
        %v1585 = vpack.c.b16 %v1085, %v1081
        %v1586 = vpack.c.b16 %v1090, %v1086
        %v1587 = vpack.c.b16 %v1091, %v1087
        %v1588 = vpack.c.b16 %v1092, %v1088
        %v1589 = vpack.c.b16 %v1093, %v1089
        %v1590 = vpack.c.b16 %v1098, %v1094
        %v1591 = vpack.c.b16 %v1099, %v1095
        %v1592 = vpack.c.b16 %v1100, %v1096
        %v1593 = vpack.c.b16 %v1101, %v1097
        %v1594 = vpack.c.b16 %v1106, %v1102
        %v1595 = vpack.c.b16 %v1107, %v1103
        %v1596 = vpack.c.b16 %v1108, %v1104
        %v1597 = vpack.c.b16 %v1109, %v1105
        %v1598 = vpack.c.b16 %v1114, %v1110
        %v1599 = vpack.c.b16 %v1115, %v1111
        %v1600 = vpack.c.b16 %v1116, %v1112
        %v1601 = vpack.c.b16 %v1117, %v1113
        %v1602 = vpack.c.b16 %v1122, %v1118
        %v1603 = vpack.c.b16 %v1123, %v1119
        %v1604 = vpack.c.b16 %v1124, %v1120
        %v1605 = vpack.c.b16 %v1125, %v1121
        %v1606 = vpack.c.b16 %v1130, %v1126
        %v1607 = vpack.c.b16 %v1131, %v1127
        %v1608 = vpack.c.b16 %v1132, %v1128
        %v1609 = vpack.c.b16 %v1133, %v1129
        %v1610 = vpack.c.b16 %v1138, %v1134
        %v1611 = vpack.c.b16 %v1139, %v1135
        %v1612 = vpack.c.b16 %v1140, %v1136
        %v1613 = vpack.c.b16 %v1141, %v1137
        %v1614 = vpack.c.b16 %v1146, %v1142
        %v1615 = vpack.c.b16 %v1147, %v1143
        %v1616 = vpack.c.b16 %v1148, %v1144
        %v1617 = vpack.c.b16 %v1149, %v1145
        %v1618 = vpack.c.b16 %v1154, %v1150
        %v1619 = vpack.c.b16 %v1155, %v1151
        %v1620 = vpack.c.b16 %v1156, %v1152
        %v1621 = vpack.c.b16 %v1157, %v1153
        %v1622 = vpack.c.b16 %v1162, %v1158
        %v1623 = vpack.c.b16 %v1163, %v1159
        %v1624 = vpack.c.b16 %v1164, %v1160
        %v1625 = vpack.c.b16 %v1165, %v1161
        %v1626 = vpack.c.b16 %v1170, %v1166
        %v1627 = vpack.c.b16 %v1171, %v1167
        %v1628 = vpack.c.b16 %v1172, %v1168
        %v1629 = vpack.c.b16 %v1173, %v1169
        %v1630 = vpack.c.b16 %v1178, %v1174
        %v1631 = vpack.c.b16 %v1179, %v1175
        %v1632 = vpack.c.b16 %v1180, %v1176
        %v1633 = vpack.c.b16 %v1181, %v1177
        %v1634 = vpack.c.b16 %v1186, %v1182
        %v1635 = vpack.c.b16 %v1187, %v1183
        %v1636 = vpack.c.b16 %v1188, %v1184
        %v1637 = vpack.c.b16 %v1189, %v1185
        %v1638 = vpack.c.b16 %v1194, %v1190
        %v1639 = vpack.c.b16 %v1195, %v1191
        %v1640 = vpack.c.b16 %v1196, %v1192
        %v1641 = vpack.c.b16 %v1197, %v1193
        %v1642 = vpack.c.b16 %v1202, %v1198
        %v1643 = vpack.c.b16 %v1203, %v1199
        %v1644 = vpack.c.b16 %v1204, %v1200
        %v1645 = vpack.c.b16 %v1205, %v1201
        %v1646 = vpack.c.b16 %v1210, %v1206
        %v1647 = vpack.c.b16 %v1211, %v1207
        %v1648 = vpack.c.b16 %v1212, %v1208
        %v1649 = vpack.c.b16 %v1213, %v1209
        %v1650 = vpack.c.b16 %v1218, %v1214
        %v1651 = vpack.c.b16 %v1219, %v1215
        %v1652 = vpack.c.b16 %v1220, %v1216
        %v1653 = vpack.c.b16 %v1221, %v1217
        %v1654 = vpack.c.b16 %v1226, %v1222
        %v1655 = vpack.c.b16 %v1227, %v1223
        %v1656 = vpack.c.b16 %v1228, %v1224
        %v1657 = vpack.c.b16 %v1229, %v1225
        %v1658 = vpack.c.b16 %v1234, %v1230
        %v1659 = vpack.c.b16 %v1235, %v1231
        %v1660 = vpack.c.b16 %v1236, %v1232
        %v1661 = vpack.c.b16 %v1237, %v1233
        %v1662 = vpack.c.b16 %v1242, %v1238
        %v1663 = vpack.c.b16 %v1243, %v1239
        %v1664 = vpack.c.b16 %v1244, %v1240
        %v1665 = vpack.c.b16 %v1245, %v1241
        %v1666 = vpack.c.b16 %v1250, %v1246
        %v1667 = vpack.c.b16 %v1251, %v1247
        %v1668 = vpack.c.b16 %v1252, %v1248
        %v1669 = vpack.c.b16 %v1253, %v1249
        %v1670 = vpack.c.b16 %v1258, %v1254
        %v1671 = vpack.c.b16 %v1259, %v1255
        %v1672 = vpack.c.b16 %v1260, %v1256
        %v1673 = vpack.c.b16 %v1261, %v1257
        %v1674 = vpack.c.b16 %v1266, %v1262
        %v1675 = vpack.c.b16 %v1267, %v1263
        %v1676 = vpack.c.b16 %v1268, %v1264
        %v1677 = vpack.c.b16 %v1269, %v1265
        %v1678 = vpack.c.b16 %v1274, %v1270
        %v1679 = vpack.c.b16 %v1275, %v1271
        %v1680 = vpack.c.b16 %v1276, %v1272
        %v1681 = vpack.c.b16 %v1277, %v1273
        %v1682 = vpack.c.b16 %v1282, %v1278
        %v1683 = vpack.c.b16 %v1283, %v1279
        %v1684 = vpack.c.b16 %v1284, %v1280
        %v1685 = vpack.c.b16 %v1285, %v1281
        %v1686 = vpack.c.b16 %v1290, %v1286
        %v1687 = vpack.c.b16 %v1291, %v1287
        %v1688 = vpack.c.b16 %v1292, %v1288
        %v1689 = vpack.c.b16 %v1293, %v1289
        %v1690 = vpack.c.b16 %v1298, %v1294
        %v1691 = vpack.c.b16 %v1299, %v1295
        %v1692 = vpack.c.b16 %v1300, %v1296
        %v1693 = vpack.c.b16 %v1301, %v1297
        %v1694 = vpack.c.b16 %v1306, %v1302
        %v1695 = vpack.c.b16 %v1307, %v1303
        %v1696 = vpack.c.b16 %v1308, %v1304
        %v1697 = vpack.c.b16 %v1309, %v1305
        %v1698 = vpack.c.b16 %v1314, %v1310
        %v1699 = vpack.c.b16 %v1315, %v1311
        %v1700 = vpack.c.b16 %v1316, %v1312
        %v1701 = vpack.c.b16 %v1317, %v1313
        %v1702 = vpack.c.b16 %v1322, %v1318
        %v1703 = vpack.c.b16 %v1323, %v1319
        %v1704 = vpack.c.b16 %v1324, %v1320
        %v1705 = vpack.c.b16 %v1325, %v1321
        %v1706 = vpack.c.b16 %v1330, %v1326
        %v1707 = vpack.c.b16 %v1331, %v1327
        %v1708 = vpack.c.b16 %v1332, %v1328
        %v1709 = vpack.c.b16 %v1333, %v1329
        %v1710 = vpack.c.b16 %v1338, %v1334
        %v1711 = vpack.c.b16 %v1339, %v1335
        %v1712 = vpack.c.b16 %v1340, %v1336
        %v1713 = vpack.c.b16 %v1341, %v1337
        %v1714 = vpack.c.b16 %v1346, %v1342
        %v1715 = vpack.c.b16 %v1347, %v1343
        %v1716 = vpack.c.b16 %v1348, %v1344
        %v1717 = vpack.c.b16 %v1349, %v1345
        %v1718 = vpack.c.b16 %v1354, %v1350
        %v1719 = vpack.c.b16 %v1355, %v1351
        %v1720 = vpack.c.b16 %v1356, %v1352
        %v1721 = vpack.c.b16 %v1357, %v1353
        %v1722 = vpack.c.b16 %v1362, %v1358
        %v1723 = vpack.c.b16 %v1363, %v1359
        %v1724 = vpack.c.b16 %v1364, %v1360
        %v1725 = vpack.c.b16 %v1365, %v1361
        %v1726 = vpack.c.b16 %v1370, %v1366
        %v1727 = vpack.c.b16 %v1371, %v1367
        %v1728 = vpack.c.b16 %v1372, %v1368
        %v1729 = vpack.c.b16 %v1373, %v1369
        %v1730 = vpack.c.b16 %v1378, %v1374
        %v1731 = vpack.c.b16 %v1379, %v1375
        %v1732 = vpack.c.b16 %v1380, %v1376
        %v1733 = vpack.c.b16 %v1381, %v1377
        %v1734 = vpack.c.b16 %v1386, %v1382
        %v1735 = vpack.c.b16 %v1387, %v1383
        %v1736 = vpack.c.b16 %v1388, %v1384
        %v1737 = vpack.c.b16 %v1389, %v1385
        %v1738 = vpack.c.b16 %v1394, %v1390
        %v1739 = vpack.c.b16 %v1395, %v1391
        %v1740 = vpack.c.b16 %v1396, %v1392
        %v1741 = vpack.c.b16 %v1397, %v1393
        %v1742 = vpack.c.b16 %v1402, %v1398
        %v1743 = vpack.c.b16 %v1403, %v1399
        %v1744 = vpack.c.b16 %v1404, %v1400
        %v1745 = vpack.c.b16 %v1405, %v1401
        %v1746 = vpack.c.b16 %v1410, %v1406
        %v1747 = vpack.c.b16 %v1411, %v1407
        %v1748 = vpack.c.b16 %v1412, %v1408
        %v1749 = vpack.c.b16 %v1413, %v1409
        %v1750 = vpack.c.b16 %v1418, %v1414
        %v1751 = vpack.c.b16 %v1419, %v1415
        %v1752 = vpack.c.b16 %v1420, %v1416
        %v1753 = vpack.c.b16 %v1421, %v1417
        %v1754 = vpack.c.b16 %v1426, %v1422
        %v1755 = vpack.c.b16 %v1427, %v1423
        %v1756 = vpack.c.b16 %v1428, %v1424
        %v1757 = vpack.c.b16 %v1429, %v1425
        %v1758 = vpack.c.b16 %v1434, %v1430
        %v1759 = vpack.c.b16 %v1435, %v1431
        %v1760 = vpack.c.b16 %v1436, %v1432
        %v1761 = vpack.c.b16 %v1437, %v1433
        %v1762 = vpack.c.b16 %v1442, %v1438
        %v1763 = vpack.c.b16 %v1443, %v1439
        %v1764 = vpack.c.b16 %v1444, %v1440
        %v1765 = vpack.c.b16 %v1445, %v1441
        %v1766 = vpack.c.b16 %v1450, %v1446
        %v1767 = vpack.c.b16 %v1451, %v1447
        %v1768 = vpack.c.b16 %v1452, %v1448
        %v1769 = vpack.c.b16 %v1453, %v1449
        %v1770 = vpack.c.b16 %v1458, %v1454
        %v1771 = vpack.c.b16 %v1459, %v1455
        %v1772 = vpack.c.b16 %v1460, %v1456
        %v1773 = vpack.c.b16 %v1461, %v1457
        %v1774 = vpack.c.b16 %v1466, %v1462
        %v1775 = vpack.c.b16 %v1467, %v1463
        %v1776 = vpack.c.b16 %v1468, %v1464
        %v1777 = vpack.c.b16 %v1469, %v1465
        %v1778 = vpack.c.b16 %v1474, %v1470
        %v1779 = vpack.c.b16 %v1475, %v1471
        %v1780 = vpack.c.b16 %v1476, %v1472
        %v1781 = vpack.c.b16 %v1477, %v1473
        %v1782 = vpack.c.b16 %v1482, %v1478
        %v1783 = vpack.c.b16 %v1483, %v1479
        %v1784 = vpack.c.b16 %v1484, %v1480
        %v1785 = vpack.c.b16 %v1485, %v1481
        %v1786 = vpack.c.b16 %v1490, %v1486
        %v1787 = vpack.c.b16 %v1491, %v1487
        %v1788 = vpack.c.b16 %v1492, %v1488
        %v1789 = vpack.c.b16 %v1493, %v1489
        %v1790 = vpack.c.b16 %v1498, %v1494
        %v1791 = vpack.c.b16 %v1499, %v1495
        %v1792 = vpack.c.b16 %v1500, %v1496
        %v1793 = vpack.c.b16 %v1501, %v1497
        %v1794 = vpack.c.b16 %v1506, %v1502
        %v1795 = vpack.c.b16 %v1507, %v1503
        %v1796 = vpack.c.b16 %v1508, %v1504
        %v1797 = vpack.c.b16 %v1509, %v1505
        %v1798 = vpack.c.b16 %v1514, %v1510
        %v1799 = vpack.c.b16 %v1515, %v1511
        %v1800 = vpack.c.b16 %v1516, %v1512
        %v1801 = vpack.c.b16 %v1517, %v1513
        %v1802 = vpack.c.b16 %v1522, %v1518
        %v1803 = vpack.c.b16 %v1523, %v1519
        %v1804 = vpack.c.b16 %v1524, %v1520
        %v1805 = vpack.c.b16 %v1525, %v1521
        %v1806 = vpack.c.b16 %v1530, %v1526
        %v1807 = vpack.c.b16 %v1531, %v1527
        %v1808 = vpack.c.b16 %v1532, %v1528
        %v1809 = vpack.c.b16 %v1533, %v1529
        %v1810 = vpack.c.b16 %v1538, %v1534
        %v1811 = vpack.c.b16 %v1539, %v1535
        %v1812 = vpack.c.b16 %v1540, %v1536
        %v1813 = vpack.c.b16 %v1541, %v1537
        %v1814 = vpack.c.b16 %v1546, %v1542
        %v1815 = vpack.c.b16 %v1547, %v1543
        %v1816 = vpack.c.b16 %v1548, %v1544
        %v1817 = vpack.c.b16 %v1549, %v1545
        %v1818 = vpack.c.b16 %v1554, %v1550
        %v1819 = vpack.c.b16 %v1555, %v1551
        %v1820 = vpack.c.b16 %v1556, %v1552
        %v1821 = vpack.c.b16 %v1557, %v1553
        %v1822 = vpack.c.b16 %v1562, %v1558
        %v1823 = vpack.c.b16 %v1563, %v1559
        %v1824 = vpack.c.b16 %v1564, %v1560
        %v1825 = vpack.c.b16 %v1565, %v1561
        %v1826 = vpack.c.b16 %v1570, %v1566
        %v1827 = vpack.c.b16 %v1571, %v1567
        %v1828 = vpack.c.b16 %v1572, %v1568
        %v1829 = vpack.c.b16 %v1573, %v1569
        %2086 = vmatprep.subr.bf16.mxu0 %v1603
        %2087 = vmatpush1.bf16.msra.mxu0 %v1602
        %2088 = vmatprep.subr.bf16.mxu0 %v1599
        %2089 = vmatpush1.bf16.msra.mxu0 %v1598
        %2090 = vmatprep.subr.bf16.mxu0 %v1595
        %2091 = vmatpush1.bf16.msra.mxu0 %v1594
        %2092 = vmatprep.subr.bf16.mxu0 %v1591
        %2093 = vmatpush1.bf16.msra.mxu0 %v1590
        %2094 = vmatprep.subr.bf16.mxu0 %v1587
        %2095 = vmatpush1.bf16.msra.mxu0 %v1586
        %2096 = vmatprep.subr.bf16.mxu0 %v1583
        %2097 = vmatpush1.bf16.msra.mxu0 %v1582
        %2098 = vmatprep.subr.bf16.mxu0 %v1579
        %2099 = vmatpush1.bf16.msra.mxu0 %v1578
        %2100 = vmatprep.subr.bf16.mxu0 %v1575
        %2101 = vmatpush1.bf16.msra.mxu0 %v1574
        %2102 = vmatprep.subr.bf16.mxu0 %v1635
        %2103 = vmatpush2.bf16.msra.mxu0 %v1634
        %2104 = vmatprep.subr.bf16.mxu0 %v1631
        %2105 = vmatpush2.bf16.msra.mxu0 %v1630
        %2106 = vmatprep.subr.bf16.mxu0 %v1627
        %2107 = vmatpush2.bf16.msra.mxu0 %v1626
        %2108 = vmatprep.subr.bf16.mxu0 %v1623
        %2109 = vmatpush2.bf16.msra.mxu0 %v1622
        %2110 = vmatprep.subr.bf16.mxu0 %v1619
        %2111 = vmatpush2.bf16.msra.mxu0 %v1618
        %2112 = vmatprep.subr.bf16.mxu0 %v1615
        %2113 = vmatpush2.bf16.msra.mxu0 %v1614
        %2114 = vmatprep.subr.bf16.mxu0 %v1611
        %2115 = vmatpush2.bf16.msra.mxu0 %v1610
        %2116 = vmatprep.subr.bf16.mxu0 %v1607
        %2117 = vmatpush2.bf16.msra.mxu0 %v1606
        %2118 = vmatprep.mubr.bf16.mxu0 %v449
        %2119 = vmatmul.mubr.bf16.gmra.mxu0 %v448
        %v2120 = vpop.f32.mrf.mxu0
        %v2121 = vadd.f32 %v789, %v2120
        %v2122 = vpop.f32.mrf.mxu0
        %v2123 = vadd.f32 %v793, %v2122
        %v2124 = vpop.f32.mrf.mxu0
        %v2125 = vadd.f32 %v789, %v2124
        %v2126 = vpop.f32.mrf.mxu0
        %v2127 = vadd.f32 %v793, %v2126
        %2128 = vmatprep.mubr.bf16.mxu0 %v457
        %2129 = vmatmul.mubr.bf16.gmra.mxu0 %v456
        %v2130 = vpop.f32.mrf.mxu0
        %v2131 = vadd.f32 %v789, %v2130
        %v2132 = vpop.f32.mrf.mxu0
        %v2133 = vadd.f32 %v793, %v2132
        %v2134 = vpop.f32.mrf.mxu0
        %v2135 = vadd.f32 %v789, %v2134
        %v2136 = vpop.f32.mrf.mxu0
        %v2137 = vadd.f32 %v793, %v2136
        %2138 = vmatprep.mubr.bf16.mxu0 %v465
        %2139 = vmatmul.mubr.bf16.gmra.mxu0 %v464
        %v2140 = vpop.f32.mrf.mxu0
        %v2141 = vadd.f32 %v789, %v2140
        %v2142 = vpop.f32.mrf.mxu0
        %v2143 = vadd.f32 %v793, %v2142
        %v2144 = vpop.f32.mrf.mxu0
        %v2145 = vadd.f32 %v789, %v2144
        %v2146 = vpop.f32.mrf.mxu0
        %v2147 = vadd.f32 %v793, %v2146
        %2148 = vmatprep.mubr.bf16.mxu0 %v473
        %2149 = vmatmul.mubr.bf16.gmra.mxu0 %v472
        %v2150 = vpop.f32.mrf.mxu0
        %v2151 = vadd.f32 %v789, %v2150
        %v2152 = vpop.f32.mrf.mxu0
        %v2153 = vadd.f32 %v793, %v2152
        %v2154 = vpop.f32.mrf.mxu0
        %v2155 = vadd.f32 %v789, %v2154
        %v2156 = vpop.f32.mrf.mxu0
        %v2157 = vadd.f32 %v793, %v2156
        %2158 = vmatprep.mubr.bf16.mxu0 %v481
        %2159 = vmatmul.mubr.bf16.gmra.mxu0 %v480
        %v2160 = vpop.f32.mrf.mxu0
        %v2161 = vadd.f32 %v789, %v2160
        %v2162 = vpop.f32.mrf.mxu0
        %v2163 = vadd.f32 %v793, %v2162
        %v2164 = vpop.f32.mrf.mxu0
        %v2165 = vadd.f32 %v789, %v2164
        %v2166 = vpop.f32.mrf.mxu0
        %v2167 = vadd.f32 %v793, %v2166
        %2168 = vmatprep.mubr.bf16.mxu0 %v489
        %2169 = vmatmul.mubr.bf16.gmra.mxu0 %v488
        %v2170 = vpop.f32.mrf.mxu0
        %v2171 = vadd.f32 %v789, %v2170
        %v2172 = vpop.f32.mrf.mxu0
        %v2173 = vadd.f32 %v793, %v2172
        %v2174 = vpop.f32.mrf.mxu0
        %v2175 = vadd.f32 %v789, %v2174
        %v2176 = vpop.f32.mrf.mxu0
        %v2177 = vadd.f32 %v793, %v2176
        %2178 = vmatprep.mubr.bf16.mxu0 %v497
        %2179 = vmatmul.mubr.bf16.gmra.mxu0 %v496
        %v2180 = vpop.f32.mrf.mxu0
        %v2181 = vadd.f32 %v789, %v2180
        %v2182 = vpop.f32.mrf.mxu0
        %v2183 = vadd.f32 %v793, %v2182
        %v2184 = vpop.f32.mrf.mxu0
        %v2185 = vadd.f32 %v789, %v2184
        %v2186 = vpop.f32.mrf.mxu0
        %v2187 = vadd.f32 %v793, %v2186
        %2188 = vmatprep.mubr.bf16.mxu0 %v505
        %2189 = vmatmul.mubr.bf16.gmra.mxu0 %v504
        %v2190 = vpop.f32.mrf.mxu0
        %v2191 = vadd.f32 %v789, %v2190
        %v2192 = vpop.f32.mrf.mxu0
        %v2193 = vadd.f32 %v793, %v2192
        %v2194 = vpop.f32.mrf.mxu0
        %v2195 = vadd.f32 %v789, %v2194
        %v2196 = vpop.f32.mrf.mxu0
        %v2197 = vadd.f32 %v793, %v2196
        %2198 = vmatprep.mubr.bf16.mxu0 %v513
        %2199 = vmatmul.mubr.bf16.gmra.mxu0 %v512
        %v2200 = vpop.f32.mrf.mxu0
        %v2201 = vadd.f32 %v789, %v2200
        %v2202 = vpop.f32.mrf.mxu0
        %v2203 = vadd.f32 %v793, %v2202
        %v2204 = vpop.f32.mrf.mxu0
        %v2205 = vadd.f32 %v789, %v2204
        %v2206 = vpop.f32.mrf.mxu0
        %v2207 = vadd.f32 %v793, %v2206
        %2208 = vmatprep.mubr.bf16.mxu0 %v521
        %2209 = vmatmul.mubr.bf16.gmra.mxu0 %v520
        %v2210 = vpop.f32.mrf.mxu0
        %v2211 = vadd.f32 %v789, %v2210
        %v2212 = vpop.f32.mrf.mxu0
        %v2213 = vadd.f32 %v793, %v2212
        %v2214 = vpop.f32.mrf.mxu0
        %v2215 = vadd.f32 %v789, %v2214
        %v2216 = vpop.f32.mrf.mxu0
        %v2217 = vadd.f32 %v793, %v2216
        %2218 = vdwg.mxu0
        %2219 = vmatprep.subr.bf16.mxu0 %v1667
        %2220 = vmatpush1.bf16.msra.mxu0 %v1666
        %2221 = vmatprep.subr.bf16.mxu0 %v1663
        %2222 = vmatpush1.bf16.msra.mxu0 %v1662
        %2223 = vmatprep.subr.bf16.mxu0 %v1659
        %2224 = vmatpush1.bf16.msra.mxu0 %v1658
        %2225 = vmatprep.subr.bf16.mxu0 %v1655
        %2226 = vmatpush1.bf16.msra.mxu0 %v1654
        %2227 = vmatprep.subr.bf16.mxu0 %v1651
        %2228 = vmatpush1.bf16.msra.mxu0 %v1650
        %2229 = vmatprep.subr.bf16.mxu0 %v1647
        %2230 = vmatpush1.bf16.msra.mxu0 %v1646
        %2231 = vmatprep.subr.bf16.mxu0 %v1643
        %2232 = vmatpush1.bf16.msra.mxu0 %v1642
        %2233 = vmatprep.subr.bf16.mxu0 %v1639
        %2234 = vmatpush1.bf16.msra.mxu0 %v1638
        %2235 = vmatprep.subr.bf16.mxu0 %v1699
        %2236 = vmatpush2.bf16.msra.mxu0 %v1698
        %2237 = vmatprep.subr.bf16.mxu0 %v1695
        %2238 = vmatpush2.bf16.msra.mxu0 %v1694
        %2239 = vmatprep.subr.bf16.mxu0 %v1691
        %2240 = vmatpush2.bf16.msra.mxu0 %v1690
        %2241 = vmatprep.subr.bf16.mxu0 %v1687
        %2242 = vmatpush2.bf16.msra.mxu0 %v1686
        %2243 = vmatprep.subr.bf16.mxu0 %v1683
        %2244 = vmatpush2.bf16.msra.mxu0 %v1682
        %2245 = vmatprep.subr.bf16.mxu0 %v1679
        %2246 = vmatpush2.bf16.msra.mxu0 %v1678
        %2247 = vmatprep.subr.bf16.mxu0 %v1675
        %2248 = vmatpush2.bf16.msra.mxu0 %v1674
        %2249 = vmatprep.subr.bf16.mxu0 %v1671
        %2250 = vmatpush2.bf16.msra.mxu0 %v1670
        %2251 = vmatprep.mubr.bf16.mxu0 %v451
        %2252 = vmatmul.mubr.bf16.gmra.mxu0 %v450
        %v2253 = vpop.f32.mrf.mxu0
        %v2254 = vadd.f32 %v2121, %v2253
        %v2255 = vpop.f32.mrf.mxu0
        %v2256 = vadd.f32 %v2123, %v2255
        %v2257 = vpop.f32.mrf.mxu0
        %v2258 = vadd.f32 %v2125, %v2257
        %v2259 = vpop.f32.mrf.mxu0
        %v2260 = vadd.f32 %v2127, %v2259
        %2261 = vmatprep.mubr.bf16.mxu0 %v459
        %2262 = vmatmul.mubr.bf16.gmra.mxu0 %v458
        %v2263 = vpop.f32.mrf.mxu0
        %v2264 = vadd.f32 %v2131, %v2263
        %v2265 = vpop.f32.mrf.mxu0
        %v2266 = vadd.f32 %v2133, %v2265
        %v2267 = vpop.f32.mrf.mxu0
        %v2268 = vadd.f32 %v2135, %v2267
        %v2269 = vpop.f32.mrf.mxu0
        %v2270 = vadd.f32 %v2137, %v2269
        %2271 = vmatprep.mubr.bf16.mxu0 %v467
        %2272 = vmatmul.mubr.bf16.gmra.mxu0 %v466
        %v2273 = vpop.f32.mrf.mxu0
        %v2274 = vadd.f32 %v2141, %v2273
        %v2275 = vpop.f32.mrf.mxu0
        %v2276 = vadd.f32 %v2143, %v2275
        %v2277 = vpop.f32.mrf.mxu0
        %v2278 = vadd.f32 %v2145, %v2277
        %v2279 = vpop.f32.mrf.mxu0
        %v2280 = vadd.f32 %v2147, %v2279
        %2281 = vmatprep.mubr.bf16.mxu0 %v475
        %2282 = vmatmul.mubr.bf16.gmra.mxu0 %v474
        %v2283 = vpop.f32.mrf.mxu0
        %v2284 = vadd.f32 %v2151, %v2283
        %v2285 = vpop.f32.mrf.mxu0
        %v2286 = vadd.f32 %v2153, %v2285
        %v2287 = vpop.f32.mrf.mxu0
        %v2288 = vadd.f32 %v2155, %v2287
        %v2289 = vpop.f32.mrf.mxu0
        %v2290 = vadd.f32 %v2157, %v2289
        %2291 = vmatprep.mubr.bf16.mxu0 %v483
        %2292 = vmatmul.mubr.bf16.gmra.mxu0 %v482
        %v2293 = vpop.f32.mrf.mxu0
        %v2294 = vadd.f32 %v2161, %v2293
        %v2295 = vpop.f32.mrf.mxu0
        %v2296 = vadd.f32 %v2163, %v2295
        %v2297 = vpop.f32.mrf.mxu0
        %v2298 = vadd.f32 %v2165, %v2297
        %v2299 = vpop.f32.mrf.mxu0
        %v2300 = vadd.f32 %v2167, %v2299
        %2301 = vmatprep.mubr.bf16.mxu0 %v491
        %2302 = vmatmul.mubr.bf16.gmra.mxu0 %v490
        %v2303 = vpop.f32.mrf.mxu0
        %v2304 = vadd.f32 %v2171, %v2303
        %v2305 = vpop.f32.mrf.mxu0
        %v2306 = vadd.f32 %v2173, %v2305
        %v2307 = vpop.f32.mrf.mxu0
        %v2308 = vadd.f32 %v2175, %v2307
        %v2309 = vpop.f32.mrf.mxu0
        %v2310 = vadd.f32 %v2177, %v2309
        %2311 = vmatprep.mubr.bf16.mxu0 %v499
        %2312 = vmatmul.mubr.bf16.gmra.mxu0 %v498
        %v2313 = vpop.f32.mrf.mxu0
        %v2314 = vadd.f32 %v2181, %v2313
        %v2315 = vpop.f32.mrf.mxu0
        %v2316 = vadd.f32 %v2183, %v2315
        %v2317 = vpop.f32.mrf.mxu0
        %v2318 = vadd.f32 %v2185, %v2317
        %v2319 = vpop.f32.mrf.mxu0
        %v2320 = vadd.f32 %v2187, %v2319
        %2321 = vmatprep.mubr.bf16.mxu0 %v507
        %2322 = vmatmul.mubr.bf16.gmra.mxu0 %v506
        %v2323 = vpop.f32.mrf.mxu0
        %v2324 = vadd.f32 %v2191, %v2323
        %v2325 = vpop.f32.mrf.mxu0
        %v2326 = vadd.f32 %v2193, %v2325
        %v2327 = vpop.f32.mrf.mxu0
        %v2328 = vadd.f32 %v2195, %v2327
        %v2329 = vpop.f32.mrf.mxu0
        %v2330 = vadd.f32 %v2197, %v2329
        %2331 = vmatprep.mubr.bf16.mxu0 %v515
        %2332 = vmatmul.mubr.bf16.gmra.mxu0 %v514
        %v2333 = vpop.f32.mrf.mxu0
        %v2334 = vadd.f32 %v2201, %v2333
        %v2335 = vpop.f32.mrf.mxu0
        %v2336 = vadd.f32 %v2203, %v2335
        %v2337 = vpop.f32.mrf.mxu0
        %v2338 = vadd.f32 %v2205, %v2337
        %v2339 = vpop.f32.mrf.mxu0
        %v2340 = vadd.f32 %v2207, %v2339
        %2341 = vmatprep.mubr.bf16.mxu0 %v523
        %2342 = vmatmul.mubr.bf16.gmra.mxu0 %v522
        %v2343 = vpop.f32.mrf.mxu0
        %v2344 = vadd.f32 %v2211, %v2343
        %v2345 = vpop.f32.mrf.mxu0
        %v2346 = vadd.f32 %v2213, %v2345
        %v2347 = vpop.f32.mrf.mxu0
        %v2348 = vadd.f32 %v2215, %v2347
        %v2349 = vpop.f32.mrf.mxu0
        %v2350 = vadd.f32 %v2217, %v2349
        %2351 = vdwg.mxu0
        %2352 = vmatprep.subr.bf16.mxu0 %v1731
        %2353 = vmatpush1.bf16.msra.mxu0 %v1730
        %2354 = vmatprep.subr.bf16.mxu0 %v1727
        %2355 = vmatpush1.bf16.msra.mxu0 %v1726
        %2356 = vmatprep.subr.bf16.mxu0 %v1723
        %2357 = vmatpush1.bf16.msra.mxu0 %v1722
        %2358 = vmatprep.subr.bf16.mxu0 %v1719
        %2359 = vmatpush1.bf16.msra.mxu0 %v1718
        %2360 = vmatprep.subr.bf16.mxu0 %v1715
        %2361 = vmatpush1.bf16.msra.mxu0 %v1714
        %2362 = vmatprep.subr.bf16.mxu0 %v1711
        %2363 = vmatpush1.bf16.msra.mxu0 %v1710
        %2364 = vmatprep.subr.bf16.mxu0 %v1707
        %2365 = vmatpush1.bf16.msra.mxu0 %v1706
        %2366 = vmatprep.subr.bf16.mxu0 %v1703
        %2367 = vmatpush1.bf16.msra.mxu0 %v1702
        %2368 = vmatprep.subr.bf16.mxu0 %v1763
        %2369 = vmatpush2.bf16.msra.mxu0 %v1762
        %2370 = vmatprep.subr.bf16.mxu0 %v1759
        %2371 = vmatpush2.bf16.msra.mxu0 %v1758
        %2372 = vmatprep.subr.bf16.mxu0 %v1755
        %2373 = vmatpush2.bf16.msra.mxu0 %v1754
        %2374 = vmatprep.subr.bf16.mxu0 %v1751
        %2375 = vmatpush2.bf16.msra.mxu0 %v1750
        %2376 = vmatprep.subr.bf16.mxu0 %v1747
        %2377 = vmatpush2.bf16.msra.mxu0 %v1746
        %2378 = vmatprep.subr.bf16.mxu0 %v1743
        %2379 = vmatpush2.bf16.msra.mxu0 %v1742
        %2380 = vmatprep.subr.bf16.mxu0 %v1739
        %2381 = vmatpush2.bf16.msra.mxu0 %v1738
        %2382 = vmatprep.subr.bf16.mxu0 %v1735
        %2383 = vmatpush2.bf16.msra.mxu0 %v1734
        %2384 = vmatprep.mubr.bf16.mxu0 %v453
        %2385 = vmatmul.mubr.bf16.gmra.mxu0 %v452
        %v2386 = vpop.f32.mrf.mxu0
        %v2387 = vadd.f32 %v2254, %v2386
        %v2388 = vpop.f32.mrf.mxu0
        %v2389 = vadd.f32 %v2256, %v2388
        %v2390 = vpop.f32.mrf.mxu0
        %v2391 = vadd.f32 %v2258, %v2390
        %v2392 = vpop.f32.mrf.mxu0
        %v2393 = vadd.f32 %v2260, %v2392
        %2394 = vmatprep.mubr.bf16.mxu0 %v461
        %2395 = vmatmul.mubr.bf16.gmra.mxu0 %v460
        %v2396 = vpop.f32.mrf.mxu0
        %v2397 = vadd.f32 %v2264, %v2396
        %v2398 = vpop.f32.mrf.mxu0
        %v2399 = vadd.f32 %v2266, %v2398
        %v2400 = vpop.f32.mrf.mxu0
        %v2401 = vadd.f32 %v2268, %v2400
        %v2402 = vpop.f32.mrf.mxu0
        %v2403 = vadd.f32 %v2270, %v2402
        %2404 = vmatprep.mubr.bf16.mxu0 %v469
        %2405 = vmatmul.mubr.bf16.gmra.mxu0 %v468
        %v2406 = vpop.f32.mrf.mxu0
        %v2407 = vadd.f32 %v2274, %v2406
        %v2408 = vpop.f32.mrf.mxu0
        %v2409 = vadd.f32 %v2276, %v2408
        %v2410 = vpop.f32.mrf.mxu0
        %v2411 = vadd.f32 %v2278, %v2410
        %v2412 = vpop.f32.mrf.mxu0
        %v2413 = vadd.f32 %v2280, %v2412
        %2414 = vmatprep.mubr.bf16.mxu0 %v477
        %2415 = vmatmul.mubr.bf16.gmra.mxu0 %v476
        %v2416 = vpop.f32.mrf.mxu0
        %v2417 = vadd.f32 %v2284, %v2416
        %v2418 = vpop.f32.mrf.mxu0
        %v2419 = vadd.f32 %v2286, %v2418
        %v2420 = vpop.f32.mrf.mxu0
        %v2421 = vadd.f32 %v2288, %v2420
        %v2422 = vpop.f32.mrf.mxu0
        %v2423 = vadd.f32 %v2290, %v2422
        %2424 = vmatprep.mubr.bf16.mxu0 %v485
        %2425 = vmatmul.mubr.bf16.gmra.mxu0 %v484
        %v2426 = vpop.f32.mrf.mxu0
        %v2427 = vadd.f32 %v2294, %v2426
        %v2428 = vpop.f32.mrf.mxu0
        %v2429 = vadd.f32 %v2296, %v2428
        %v2430 = vpop.f32.mrf.mxu0
        %v2431 = vadd.f32 %v2298, %v2430
        %v2432 = vpop.f32.mrf.mxu0
        %v2433 = vadd.f32 %v2300, %v2432
        %2434 = vmatprep.mubr.bf16.mxu0 %v493
        %2435 = vmatmul.mubr.bf16.gmra.mxu0 %v492
        %v2436 = vpop.f32.mrf.mxu0
        %v2437 = vadd.f32 %v2304, %v2436
        %v2438 = vpop.f32.mrf.mxu0
        %v2439 = vadd.f32 %v2306, %v2438
        %v2440 = vpop.f32.mrf.mxu0
        %v2441 = vadd.f32 %v2308, %v2440
        %v2442 = vpop.f32.mrf.mxu0
        %v2443 = vadd.f32 %v2310, %v2442
        %2444 = vmatprep.mubr.bf16.mxu0 %v501
        %2445 = vmatmul.mubr.bf16.gmra.mxu0 %v500
        %v2446 = vpop.f32.mrf.mxu0
        %v2447 = vadd.f32 %v2314, %v2446
        %v2448 = vpop.f32.mrf.mxu0
        %v2449 = vadd.f32 %v2316, %v2448
        %v2450 = vpop.f32.mrf.mxu0
        %v2451 = vadd.f32 %v2318, %v2450
        %v2452 = vpop.f32.mrf.mxu0
        %v2453 = vadd.f32 %v2320, %v2452
        %2454 = vmatprep.mubr.bf16.mxu0 %v509
        %2455 = vmatmul.mubr.bf16.gmra.mxu0 %v508
        %v2456 = vpop.f32.mrf.mxu0
        %v2457 = vadd.f32 %v2324, %v2456
        %v2458 = vpop.f32.mrf.mxu0
        %v2459 = vadd.f32 %v2326, %v2458
        %v2460 = vpop.f32.mrf.mxu0
        %v2461 = vadd.f32 %v2328, %v2460
        %v2462 = vpop.f32.mrf.mxu0
        %v2463 = vadd.f32 %v2330, %v2462
        %2464 = vmatprep.mubr.bf16.mxu0 %v517
        %2465 = vmatmul.mubr.bf16.gmra.mxu0 %v516
        %v2466 = vpop.f32.mrf.mxu0
        %v2467 = vadd.f32 %v2334, %v2466
        %v2468 = vpop.f32.mrf.mxu0
        %v2469 = vadd.f32 %v2336, %v2468
        %v2470 = vpop.f32.mrf.mxu0
        %v2471 = vadd.f32 %v2338, %v2470
        %v2472 = vpop.f32.mrf.mxu0
        %v2473 = vadd.f32 %v2340, %v2472
        %2474 = vmatprep.mubr.bf16.mxu0 %v525
        %2475 = vmatmul.mubr.bf16.gmra.mxu0 %v524
        %v2476 = vpop.f32.mrf.mxu0
        %v2477 = vadd.f32 %v2344, %v2476
        %v2478 = vpop.f32.mrf.mxu0
        %v2479 = vadd.f32 %v2346, %v2478
        %v2480 = vpop.f32.mrf.mxu0
        %v2481 = vadd.f32 %v2348, %v2480
        %v2482 = vpop.f32.mrf.mxu0
        %v2483 = vadd.f32 %v2350, %v2482
        %2484 = vdwg.mxu0
        %2485 = vmatprep.subr.bf16.mxu0 %v1795
        %2486 = vmatpush1.bf16.msra.mxu0 %v1794
        %2487 = vmatprep.subr.bf16.mxu0 %v1791
        %2488 = vmatpush1.bf16.msra.mxu0 %v1790
        %2489 = vmatprep.subr.bf16.mxu0 %v1787
        %2490 = vmatpush1.bf16.msra.mxu0 %v1786
        %2491 = vmatprep.subr.bf16.mxu0 %v1783
        %2492 = vmatpush1.bf16.msra.mxu0 %v1782
        %2493 = vmatprep.subr.bf16.mxu0 %v1779
        %2494 = vmatpush1.bf16.msra.mxu0 %v1778
        %2495 = vmatprep.subr.bf16.mxu0 %v1775
        %2496 = vmatpush1.bf16.msra.mxu0 %v1774
        %2497 = vmatprep.subr.bf16.mxu0 %v1771
        %2498 = vmatpush1.bf16.msra.mxu0 %v1770
        %2499 = vmatprep.subr.bf16.mxu0 %v1767
        %2500 = vmatpush1.bf16.msra.mxu0 %v1766
        %2501 = vmatprep.subr.bf16.mxu0 %v1827
        %2502 = vmatpush2.bf16.msra.mxu0 %v1826
        %2503 = vmatprep.subr.bf16.mxu0 %v1823
        %2504 = vmatpush2.bf16.msra.mxu0 %v1822
        %2505 = vmatprep.subr.bf16.mxu0 %v1819
        %2506 = vmatpush2.bf16.msra.mxu0 %v1818
        %2507 = vmatprep.subr.bf16.mxu0 %v1815
        %2508 = vmatpush2.bf16.msra.mxu0 %v1814
        %2509 = vmatprep.subr.bf16.mxu0 %v1811
        %2510 = vmatpush2.bf16.msra.mxu0 %v1810
        %2511 = vmatprep.subr.bf16.mxu0 %v1807
        %2512 = vmatpush2.bf16.msra.mxu0 %v1806
        %2513 = vmatprep.subr.bf16.mxu0 %v1803
        %2514 = vmatpush2.bf16.msra.mxu0 %v1802
        %2515 = vmatprep.subr.bf16.mxu0 %v1799
        %2516 = vmatpush2.bf16.msra.mxu0 %v1798
        %2517 = vmatprep.mubr.bf16.mxu0 %v455
        %2518 = vmatmul.mubr.bf16.gmra.mxu0 %v454
        %v2519 = vpop.f32.mrf.mxu0
        %v2520 = vadd.f32 %v2387, %v2519
        %v2521 = vpop.f32.mrf.mxu0
        %v2522 = vadd.f32 %v2389, %v2521
        %v2523 = vpop.f32.mrf.mxu0
        %v2524 = vadd.f32 %v2391, %v2523
        %v2525 = vpop.f32.mrf.mxu0
        %v2526 = vadd.f32 %v2393, %v2525
        %2527 = vmatprep.mubr.bf16.mxu0 %v463
        %2528 = vmatmul.mubr.bf16.gmra.mxu0 %v462
        %v2529 = vpop.f32.mrf.mxu0
        %v2530 = vadd.f32 %v2397, %v2529
        %v2531 = vpop.f32.mrf.mxu0
        %v2532 = vadd.f32 %v2399, %v2531
        %v2533 = vpop.f32.mrf.mxu0
        %v2534 = vadd.f32 %v2401, %v2533
        %v2535 = vpop.f32.mrf.mxu0
        %v2536 = vadd.f32 %v2403, %v2535
        %2537 = vmatprep.mubr.bf16.mxu0 %v471
        %2538 = vmatmul.mubr.bf16.gmra.mxu0 %v470
        %v2539 = vpop.f32.mrf.mxu0
        %v2540 = vadd.f32 %v2407, %v2539
        %v2541 = vpop.f32.mrf.mxu0
        %v2542 = vadd.f32 %v2409, %v2541
        %v2543 = vpop.f32.mrf.mxu0
        %v2544 = vadd.f32 %v2411, %v2543
        %v2545 = vpop.f32.mrf.mxu0
        %v2546 = vadd.f32 %v2413, %v2545
        %2547 = vmatprep.mubr.bf16.mxu0 %v479
        %2548 = vmatmul.mubr.bf16.gmra.mxu0 %v478
        %v2549 = vpop.f32.mrf.mxu0
        %v2550 = vadd.f32 %v2417, %v2549
        %v2551 = vpop.f32.mrf.mxu0
        %v2552 = vadd.f32 %v2419, %v2551
        %v2553 = vpop.f32.mrf.mxu0
        %v2554 = vadd.f32 %v2421, %v2553
        %v2555 = vpop.f32.mrf.mxu0
        %v2556 = vadd.f32 %v2423, %v2555
        %2557 = vmatprep.mubr.bf16.mxu0 %v487
        %2558 = vmatmul.mubr.bf16.gmra.mxu0 %v486
        %v2559 = vpop.f32.mrf.mxu0
        %v2560 = vadd.f32 %v2427, %v2559
        %v2561 = vpop.f32.mrf.mxu0
        %v2562 = vadd.f32 %v2429, %v2561
        %v2563 = vpop.f32.mrf.mxu0
        %v2564 = vadd.f32 %v2431, %v2563
        %v2565 = vpop.f32.mrf.mxu0
        %v2566 = vadd.f32 %v2433, %v2565
        %2567 = vmatprep.mubr.bf16.mxu0 %v495
        %2568 = vmatmul.mubr.bf16.gmra.mxu0 %v494
        %v2569 = vpop.f32.mrf.mxu0
        %v2570 = vadd.f32 %v2437, %v2569
        %v2571 = vpop.f32.mrf.mxu0
        %v2572 = vadd.f32 %v2439, %v2571
        %v2573 = vpop.f32.mrf.mxu0
        %v2574 = vadd.f32 %v2441, %v2573
        %v2575 = vpop.f32.mrf.mxu0
        %v2576 = vadd.f32 %v2443, %v2575
        %2577 = vmatprep.mubr.bf16.mxu0 %v503
        %2578 = vmatmul.mubr.bf16.gmra.mxu0 %v502
        %v2579 = vpop.f32.mrf.mxu0
        %v2580 = vadd.f32 %v2447, %v2579
        %v2581 = vpop.f32.mrf.mxu0
        %v2582 = vadd.f32 %v2449, %v2581
        %v2583 = vpop.f32.mrf.mxu0
        %v2584 = vadd.f32 %v2451, %v2583
        %v2585 = vpop.f32.mrf.mxu0
        %v2586 = vadd.f32 %v2453, %v2585
        %2587 = vmatprep.mubr.bf16.mxu0 %v511
        %2588 = vmatmul.mubr.bf16.gmra.mxu0 %v510
        %v2589 = vpop.f32.mrf.mxu0
        %v2590 = vadd.f32 %v2457, %v2589
        %v2591 = vpop.f32.mrf.mxu0
        %v2592 = vadd.f32 %v2459, %v2591
        %v2593 = vpop.f32.mrf.mxu0
        %v2594 = vadd.f32 %v2461, %v2593
        %v2595 = vpop.f32.mrf.mxu0
        %v2596 = vadd.f32 %v2463, %v2595
        %2597 = vmatprep.mubr.bf16.mxu0 %v519
        %2598 = vmatmul.mubr.bf16.gmra.mxu0 %v518
        %v2599 = vpop.f32.mrf.mxu0
        %v2600 = vadd.f32 %v2467, %v2599
        %v2601 = vpop.f32.mrf.mxu0
        %v2602 = vadd.f32 %v2469, %v2601
        %v2603 = vpop.f32.mrf.mxu0
        %v2604 = vadd.f32 %v2471, %v2603
        %v2605 = vpop.f32.mrf.mxu0
        %v2606 = vadd.f32 %v2473, %v2605
        %2607 = vmatprep.mubr.bf16.mxu0 %v527
        %2608 = vmatmul.mubr.bf16.gmra.mxu0 %v526
        %v2609 = vpop.f32.mrf.mxu0
        %v2610 = vadd.f32 %v2477, %v2609
        %v2611 = vpop.f32.mrf.mxu0
        %v2612 = vadd.f32 %v2479, %v2611
        %v2613 = vpop.f32.mrf.mxu0
        %v2614 = vadd.f32 %v2481, %v2613
        %v2615 = vpop.f32.mrf.mxu0
        %v2616 = vadd.f32 %v2483, %v2615
        %2617 = vdwg.mxu0
        %2618 = vmatprep.subr.bf16.mxu0 %v1605
        %2619 = vmatpush1.bf16.msra.mxu0 %v1604
        %2620 = vmatprep.subr.bf16.mxu0 %v1601
        %2621 = vmatpush1.bf16.msra.mxu0 %v1600
        %2622 = vmatprep.subr.bf16.mxu0 %v1597
        %2623 = vmatpush1.bf16.msra.mxu0 %v1596
        %2624 = vmatprep.subr.bf16.mxu0 %v1593
        %2625 = vmatpush1.bf16.msra.mxu0 %v1592
        %2626 = vmatprep.subr.bf16.mxu0 %v1589
        %2627 = vmatpush1.bf16.msra.mxu0 %v1588
        %2628 = vmatprep.subr.bf16.mxu0 %v1585
        %2629 = vmatpush1.bf16.msra.mxu0 %v1584
        %2630 = vmatprep.subr.bf16.mxu0 %v1581
        %2631 = vmatpush1.bf16.msra.mxu0 %v1580
        %2632 = vmatprep.subr.bf16.mxu0 %v1577
        %2633 = vmatpush1.bf16.msra.mxu0 %v1576
        %2634 = vmatprep.subr.bf16.mxu0 %v1637
        %2635 = vmatpush2.bf16.msra.mxu0 %v1636
        %2636 = vmatprep.subr.bf16.mxu0 %v1633
        %2637 = vmatpush2.bf16.msra.mxu0 %v1632
        %2638 = vmatprep.subr.bf16.mxu0 %v1629
        %2639 = vmatpush2.bf16.msra.mxu0 %v1628
        %2640 = vmatprep.subr.bf16.mxu0 %v1625
        %2641 = vmatpush2.bf16.msra.mxu0 %v1624
        %2642 = vmatprep.subr.bf16.mxu0 %v1621
        %2643 = vmatpush2.bf16.msra.mxu0 %v1620
        %2644 = vmatprep.subr.bf16.mxu0 %v1617
        %2645 = vmatpush2.bf16.msra.mxu0 %v1616
        %2646 = vmatprep.subr.bf16.mxu0 %v1613
        %2647 = vmatpush2.bf16.msra.mxu0 %v1612
        %2648 = vmatprep.subr.bf16.mxu0 %v1609
        %2649 = vmatpush2.bf16.msra.mxu0 %v1608
        %2650 = vmatprep.mubr.bf16.mxu0 %v449
        %2651 = vmatmul.mubr.bf16.gmra.mxu0 %v448
        %v2652 = vpop.f32.mrf.mxu0
        %v2653 = vadd.f32 %v797, %v2652
        %v2654 = vpop.f32.mrf.mxu0
        %v2655 = vadd.f32 %v801, %v2654
        %v2656 = vpop.f32.mrf.mxu0
        %v2657 = vadd.f32 %v797, %v2656
        %v2658 = vpop.f32.mrf.mxu0
        %v2659 = vadd.f32 %v801, %v2658
        %2660 = vmatprep.mubr.bf16.mxu0 %v457
        %2661 = vmatmul.mubr.bf16.gmra.mxu0 %v456
        %v2662 = vpop.f32.mrf.mxu0
        %v2663 = vadd.f32 %v797, %v2662
        %v2664 = vpop.f32.mrf.mxu0
        %v2665 = vadd.f32 %v801, %v2664
        %v2666 = vpop.f32.mrf.mxu0
        %v2667 = vadd.f32 %v797, %v2666
        %v2668 = vpop.f32.mrf.mxu0
        %v2669 = vadd.f32 %v801, %v2668
        %2670 = vmatprep.mubr.bf16.mxu0 %v465
        %2671 = vmatmul.mubr.bf16.gmra.mxu0 %v464
        %v2672 = vpop.f32.mrf.mxu0
        %v2673 = vadd.f32 %v797, %v2672
        %v2674 = vpop.f32.mrf.mxu0
        %v2675 = vadd.f32 %v801, %v2674
        %v2676 = vpop.f32.mrf.mxu0
        %v2677 = vadd.f32 %v797, %v2676
        %v2678 = vpop.f32.mrf.mxu0
        %v2679 = vadd.f32 %v801, %v2678
        %2680 = vmatprep.mubr.bf16.mxu0 %v473
        %2681 = vmatmul.mubr.bf16.gmra.mxu0 %v472
        %v2682 = vpop.f32.mrf.mxu0
        %v2683 = vadd.f32 %v797, %v2682
        %v2684 = vpop.f32.mrf.mxu0
        %v2685 = vadd.f32 %v801, %v2684
        %v2686 = vpop.f32.mrf.mxu0
        %v2687 = vadd.f32 %v797, %v2686
        %v2688 = vpop.f32.mrf.mxu0
        %v2689 = vadd.f32 %v801, %v2688
        %2690 = vmatprep.mubr.bf16.mxu0 %v481
        %2691 = vmatmul.mubr.bf16.gmra.mxu0 %v480
        %v2692 = vpop.f32.mrf.mxu0
        %v2693 = vadd.f32 %v797, %v2692
        %v2694 = vpop.f32.mrf.mxu0
        %v2695 = vadd.f32 %v801, %v2694
        %v2696 = vpop.f32.mrf.mxu0
        %v2697 = vadd.f32 %v797, %v2696
        %v2698 = vpop.f32.mrf.mxu0
        %v2699 = vadd.f32 %v801, %v2698
        %2700 = vmatprep.mubr.bf16.mxu0 %v489
        %2701 = vmatmul.mubr.bf16.gmra.mxu0 %v488
        %v2702 = vpop.f32.mrf.mxu0
        %v2703 = vadd.f32 %v797, %v2702
        %v2704 = vpop.f32.mrf.mxu0
        %v2705 = vadd.f32 %v801, %v2704
        %v2706 = vpop.f32.mrf.mxu0
        %v2707 = vadd.f32 %v797, %v2706
        %v2708 = vpop.f32.mrf.mxu0
        %v2709 = vadd.f32 %v801, %v2708
        %2710 = vmatprep.mubr.bf16.mxu0 %v497
        %2711 = vmatmul.mubr.bf16.gmra.mxu0 %v496
        %v2712 = vpop.f32.mrf.mxu0
        %v2713 = vadd.f32 %v797, %v2712
        %v2714 = vpop.f32.mrf.mxu0
        %v2715 = vadd.f32 %v801, %v2714
        %v2716 = vpop.f32.mrf.mxu0
        %v2717 = vadd.f32 %v797, %v2716
        %v2718 = vpop.f32.mrf.mxu0
        %v2719 = vadd.f32 %v801, %v2718
        %2720 = vmatprep.mubr.bf16.mxu0 %v505
        %2721 = vmatmul.mubr.bf16.gmra.mxu0 %v504
        %v2722 = vpop.f32.mrf.mxu0
        %v2723 = vadd.f32 %v797, %v2722
        %v2724 = vpop.f32.mrf.mxu0
        %v2725 = vadd.f32 %v801, %v2724
        %v2726 = vpop.f32.mrf.mxu0
        %v2727 = vadd.f32 %v797, %v2726
        %v2728 = vpop.f32.mrf.mxu0
        %v2729 = vadd.f32 %v801, %v2728
        %2730 = vmatprep.mubr.bf16.mxu0 %v513
        %2731 = vmatmul.mubr.bf16.gmra.mxu0 %v512
        %v2732 = vpop.f32.mrf.mxu0
        %v2733 = vadd.f32 %v797, %v2732
        %v2734 = vpop.f32.mrf.mxu0
        %v2735 = vadd.f32 %v801, %v2734
        %v2736 = vpop.f32.mrf.mxu0
        %v2737 = vadd.f32 %v797, %v2736
        %v2738 = vpop.f32.mrf.mxu0
        %v2739 = vadd.f32 %v801, %v2738
        %2740 = vmatprep.mubr.bf16.mxu0 %v521
        %2741 = vmatmul.mubr.bf16.gmra.mxu0 %v520
        %v2742 = vpop.f32.mrf.mxu0
        %v2743 = vadd.f32 %v797, %v2742
        %v2744 = vpop.f32.mrf.mxu0
        %v2745 = vadd.f32 %v801, %v2744
        %v2746 = vpop.f32.mrf.mxu0
        %v2747 = vadd.f32 %v797, %v2746
        %v2748 = vpop.f32.mrf.mxu0
        %v2749 = vadd.f32 %v801, %v2748
        %2750 = vdwg.mxu0
        %2751 = vmatprep.subr.bf16.mxu0 %v1669
        %2752 = vmatpush1.bf16.msra.mxu0 %v1668
        %2753 = vmatprep.subr.bf16.mxu0 %v1665
        %2754 = vmatpush1.bf16.msra.mxu0 %v1664
        %2755 = vmatprep.subr.bf16.mxu0 %v1661
        %2756 = vmatpush1.bf16.msra.mxu0 %v1660
        %2757 = vmatprep.subr.bf16.mxu0 %v1657
        %2758 = vmatpush1.bf16.msra.mxu0 %v1656
        %2759 = vmatprep.subr.bf16.mxu0 %v1653
        %2760 = vmatpush1.bf16.msra.mxu0 %v1652
        %2761 = vmatprep.subr.bf16.mxu0 %v1649
        %2762 = vmatpush1.bf16.msra.mxu0 %v1648
        %2763 = vmatprep.subr.bf16.mxu0 %v1645
        %2764 = vmatpush1.bf16.msra.mxu0 %v1644
        %2765 = vmatprep.subr.bf16.mxu0 %v1641
        %2766 = vmatpush1.bf16.msra.mxu0 %v1640
        %2767 = vmatprep.subr.bf16.mxu0 %v1701
        %2768 = vmatpush2.bf16.msra.mxu0 %v1700
        %2769 = vmatprep.subr.bf16.mxu0 %v1697
        %2770 = vmatpush2.bf16.msra.mxu0 %v1696
        %2771 = vmatprep.subr.bf16.mxu0 %v1693
        %2772 = vmatpush2.bf16.msra.mxu0 %v1692
        %2773 = vmatprep.subr.bf16.mxu0 %v1689
        %2774 = vmatpush2.bf16.msra.mxu0 %v1688
        %2775 = vmatprep.subr.bf16.mxu0 %v1685
        %2776 = vmatpush2.bf16.msra.mxu0 %v1684
        %2777 = vmatprep.subr.bf16.mxu0 %v1681
        %2778 = vmatpush2.bf16.msra.mxu0 %v1680
        %2779 = vmatprep.subr.bf16.mxu0 %v1677
        %2780 = vmatpush2.bf16.msra.mxu0 %v1676
        %2781 = vmatprep.subr.bf16.mxu0 %v1673
        %2782 = vmatpush2.bf16.msra.mxu0 %v1672
        %2783 = vmatprep.mubr.bf16.mxu0 %v451
        %2784 = vmatmul.mubr.bf16.gmra.mxu0 %v450
        %v2785 = vpop.f32.mrf.mxu0
        %v2786 = vadd.f32 %v2653, %v2785
        %v2787 = vpop.f32.mrf.mxu0
        %v2788 = vadd.f32 %v2655, %v2787
        %v2789 = vpop.f32.mrf.mxu0
        %v2790 = vadd.f32 %v2657, %v2789
        %v2791 = vpop.f32.mrf.mxu0
        %v2792 = vadd.f32 %v2659, %v2791
        %2793 = vmatprep.mubr.bf16.mxu0 %v459
        %2794 = vmatmul.mubr.bf16.gmra.mxu0 %v458
        %v2795 = vpop.f32.mrf.mxu0
        %v2796 = vadd.f32 %v2663, %v2795
        %v2797 = vpop.f32.mrf.mxu0
        %v2798 = vadd.f32 %v2665, %v2797
        %v2799 = vpop.f32.mrf.mxu0
        %v2800 = vadd.f32 %v2667, %v2799
        %v2801 = vpop.f32.mrf.mxu0
        %v2802 = vadd.f32 %v2669, %v2801
        %2803 = vmatprep.mubr.bf16.mxu0 %v467
        %2804 = vmatmul.mubr.bf16.gmra.mxu0 %v466
        %v2805 = vpop.f32.mrf.mxu0
        %v2806 = vadd.f32 %v2673, %v2805
        %v2807 = vpop.f32.mrf.mxu0
        %v2808 = vadd.f32 %v2675, %v2807
        %v2809 = vpop.f32.mrf.mxu0
        %v2810 = vadd.f32 %v2677, %v2809
        %v2811 = vpop.f32.mrf.mxu0
        %v2812 = vadd.f32 %v2679, %v2811
        %2813 = vmatprep.mubr.bf16.mxu0 %v475
        %2814 = vmatmul.mubr.bf16.gmra.mxu0 %v474
        %v2815 = vpop.f32.mrf.mxu0
        %v2816 = vadd.f32 %v2683, %v2815
        %v2817 = vpop.f32.mrf.mxu0
        %v2818 = vadd.f32 %v2685, %v2817
        %v2819 = vpop.f32.mrf.mxu0
        %v2820 = vadd.f32 %v2687, %v2819
        %v2821 = vpop.f32.mrf.mxu0
        %v2822 = vadd.f32 %v2689, %v2821
        %2823 = vmatprep.mubr.bf16.mxu0 %v483
        %2824 = vmatmul.mubr.bf16.gmra.mxu0 %v482
        %v2825 = vpop.f32.mrf.mxu0
        %v2826 = vadd.f32 %v2693, %v2825
        %v2827 = vpop.f32.mrf.mxu0
        %v2828 = vadd.f32 %v2695, %v2827
        %v2829 = vpop.f32.mrf.mxu0
        %v2830 = vadd.f32 %v2697, %v2829
        %v2831 = vpop.f32.mrf.mxu0
        %v2832 = vadd.f32 %v2699, %v2831
        %2833 = vmatprep.mubr.bf16.mxu0 %v491
        %2834 = vmatmul.mubr.bf16.gmra.mxu0 %v490
        %v2835 = vpop.f32.mrf.mxu0
        %v2836 = vadd.f32 %v2703, %v2835
        %v2837 = vpop.f32.mrf.mxu0
        %v2838 = vadd.f32 %v2705, %v2837
        %v2839 = vpop.f32.mrf.mxu0
        %v2840 = vadd.f32 %v2707, %v2839
        %v2841 = vpop.f32.mrf.mxu0
        %v2842 = vadd.f32 %v2709, %v2841
        %2843 = vmatprep.mubr.bf16.mxu0 %v499
        %2844 = vmatmul.mubr.bf16.gmra.mxu0 %v498
        %v2845 = vpop.f32.mrf.mxu0
        %v2846 = vadd.f32 %v2713, %v2845
        %v2847 = vpop.f32.mrf.mxu0
        %v2848 = vadd.f32 %v2715, %v2847
        %v2849 = vpop.f32.mrf.mxu0
        %v2850 = vadd.f32 %v2717, %v2849
        %v2851 = vpop.f32.mrf.mxu0
        %v2852 = vadd.f32 %v2719, %v2851
        %2853 = vmatprep.mubr.bf16.mxu0 %v507
        %2854 = vmatmul.mubr.bf16.gmra.mxu0 %v506
        %v2855 = vpop.f32.mrf.mxu0
        %v2856 = vadd.f32 %v2723, %v2855
        %v2857 = vpop.f32.mrf.mxu0
        %v2858 = vadd.f32 %v2725, %v2857
        %v2859 = vpop.f32.mrf.mxu0
        %v2860 = vadd.f32 %v2727, %v2859
        %v2861 = vpop.f32.mrf.mxu0
        %v2862 = vadd.f32 %v2729, %v2861
        %2863 = vmatprep.mubr.bf16.mxu0 %v515
        %2864 = vmatmul.mubr.bf16.gmra.mxu0 %v514
        %v2865 = vpop.f32.mrf.mxu0
        %v2866 = vadd.f32 %v2733, %v2865
        %v2867 = vpop.f32.mrf.mxu0
        %v2868 = vadd.f32 %v2735, %v2867
        %v2869 = vpop.f32.mrf.mxu0
        %v2870 = vadd.f32 %v2737, %v2869
        %v2871 = vpop.f32.mrf.mxu0
        %v2872 = vadd.f32 %v2739, %v2871
        %2873 = vmatprep.mubr.bf16.mxu0 %v523
        %2874 = vmatmul.mubr.bf16.gmra.mxu0 %v522
        %v2875 = vpop.f32.mrf.mxu0
        %v2876 = vadd.f32 %v2743, %v2875
        %v2877 = vpop.f32.mrf.mxu0
        %v2878 = vadd.f32 %v2745, %v2877
        %v2879 = vpop.f32.mrf.mxu0
        %v2880 = vadd.f32 %v2747, %v2879
        %v2881 = vpop.f32.mrf.mxu0
        %v2882 = vadd.f32 %v2749, %v2881
        %2883 = vdwg.mxu0
        %2884 = vmatprep.subr.bf16.mxu0 %v1733
        %2885 = vmatpush1.bf16.msra.mxu0 %v1732
        %2886 = vmatprep.subr.bf16.mxu0 %v1729
        %2887 = vmatpush1.bf16.msra.mxu0 %v1728
        %2888 = vmatprep.subr.bf16.mxu0 %v1725
        %2889 = vmatpush1.bf16.msra.mxu0 %v1724
        %2890 = vmatprep.subr.bf16.mxu0 %v1721
        %2891 = vmatpush1.bf16.msra.mxu0 %v1720
        %2892 = vmatprep.subr.bf16.mxu0 %v1717
        %2893 = vmatpush1.bf16.msra.mxu0 %v1716
        %2894 = vmatprep.subr.bf16.mxu0 %v1713
        %2895 = vmatpush1.bf16.msra.mxu0 %v1712
        %2896 = vmatprep.subr.bf16.mxu0 %v1709
        %2897 = vmatpush1.bf16.msra.mxu0 %v1708
        %2898 = vmatprep.subr.bf16.mxu0 %v1705
        %2899 = vmatpush1.bf16.msra.mxu0 %v1704
        %2900 = vmatprep.subr.bf16.mxu0 %v1765
        %2901 = vmatpush2.bf16.msra.mxu0 %v1764
        %2902 = vmatprep.subr.bf16.mxu0 %v1761
        %2903 = vmatpush2.bf16.msra.mxu0 %v1760
        %2904 = vmatprep.subr.bf16.mxu0 %v1757
        %2905 = vmatpush2.bf16.msra.mxu0 %v1756
        %2906 = vmatprep.subr.bf16.mxu0 %v1753
        %2907 = vmatpush2.bf16.msra.mxu0 %v1752
        %2908 = vmatprep.subr.bf16.mxu0 %v1749
        %2909 = vmatpush2.bf16.msra.mxu0 %v1748
        %2910 = vmatprep.subr.bf16.mxu0 %v1745
        %2911 = vmatpush2.bf16.msra.mxu0 %v1744
        %2912 = vmatprep.subr.bf16.mxu0 %v1741
        %2913 = vmatpush2.bf16.msra.mxu0 %v1740
        %2914 = vmatprep.subr.bf16.mxu0 %v1737
        %2915 = vmatpush2.bf16.msra.mxu0 %v1736
        %2916 = vmatprep.mubr.bf16.mxu0 %v453
        %2917 = vmatmul.mubr.bf16.gmra.mxu0 %v452
        %v2918 = vpop.f32.mrf.mxu0
        %v2919 = vadd.f32 %v2786, %v2918
        %v2920 = vpop.f32.mrf.mxu0
        %v2921 = vadd.f32 %v2788, %v2920
        %v2922 = vpop.f32.mrf.mxu0
        %v2923 = vadd.f32 %v2790, %v2922
        %v2924 = vpop.f32.mrf.mxu0
        %v2925 = vadd.f32 %v2792, %v2924
        %2926 = vmatprep.mubr.bf16.mxu0 %v461
        %2927 = vmatmul.mubr.bf16.gmra.mxu0 %v460
        %v2928 = vpop.f32.mrf.mxu0
        %v2929 = vadd.f32 %v2796, %v2928
        %v2930 = vpop.f32.mrf.mxu0
        %v2931 = vadd.f32 %v2798, %v2930
        %v2932 = vpop.f32.mrf.mxu0
        %v2933 = vadd.f32 %v2800, %v2932
        %v2934 = vpop.f32.mrf.mxu0
        %v2935 = vadd.f32 %v2802, %v2934
        %2936 = vmatprep.mubr.bf16.mxu0 %v469
        %2937 = vmatmul.mubr.bf16.gmra.mxu0 %v468
        %v2938 = vpop.f32.mrf.mxu0
        %v2939 = vadd.f32 %v2806, %v2938
        %v2940 = vpop.f32.mrf.mxu0
        %v2941 = vadd.f32 %v2808, %v2940
        %v2942 = vpop.f32.mrf.mxu0
        %v2943 = vadd.f32 %v2810, %v2942
        %v2944 = vpop.f32.mrf.mxu0
        %v2945 = vadd.f32 %v2812, %v2944
        %2946 = vmatprep.mubr.bf16.mxu0 %v477
        %2947 = vmatmul.mubr.bf16.gmra.mxu0 %v476
        %v2948 = vpop.f32.mrf.mxu0
        %v2949 = vadd.f32 %v2816, %v2948
        %v2950 = vpop.f32.mrf.mxu0
        %v2951 = vadd.f32 %v2818, %v2950
        %v2952 = vpop.f32.mrf.mxu0
        %v2953 = vadd.f32 %v2820, %v2952
        %v2954 = vpop.f32.mrf.mxu0
        %v2955 = vadd.f32 %v2822, %v2954
        %2956 = vmatprep.mubr.bf16.mxu0 %v485
        %2957 = vmatmul.mubr.bf16.gmra.mxu0 %v484
        %v2958 = vpop.f32.mrf.mxu0
        %v2959 = vadd.f32 %v2826, %v2958
        %v2960 = vpop.f32.mrf.mxu0
        %v2961 = vadd.f32 %v2828, %v2960
        %v2962 = vpop.f32.mrf.mxu0
        %v2963 = vadd.f32 %v2830, %v2962
        %v2964 = vpop.f32.mrf.mxu0
        %v2965 = vadd.f32 %v2832, %v2964
        %2966 = vmatprep.mubr.bf16.mxu0 %v493
        %2967 = vmatmul.mubr.bf16.gmra.mxu0 %v492
        %v2968 = vpop.f32.mrf.mxu0
        %v2969 = vadd.f32 %v2836, %v2968
        %v2970 = vpop.f32.mrf.mxu0
        %v2971 = vadd.f32 %v2838, %v2970
        %v2972 = vpop.f32.mrf.mxu0
        %v2973 = vadd.f32 %v2840, %v2972
        %v2974 = vpop.f32.mrf.mxu0
        %v2975 = vadd.f32 %v2842, %v2974
        %2976 = vmatprep.mubr.bf16.mxu0 %v501
        %2977 = vmatmul.mubr.bf16.gmra.mxu0 %v500
        %v2978 = vpop.f32.mrf.mxu0
        %v2979 = vadd.f32 %v2846, %v2978
        %v2980 = vpop.f32.mrf.mxu0
        %v2981 = vadd.f32 %v2848, %v2980
        %v2982 = vpop.f32.mrf.mxu0
        %v2983 = vadd.f32 %v2850, %v2982
        %v2984 = vpop.f32.mrf.mxu0
        %v2985 = vadd.f32 %v2852, %v2984
        %2986 = vmatprep.mubr.bf16.mxu0 %v509
        %2987 = vmatmul.mubr.bf16.gmra.mxu0 %v508
        %v2988 = vpop.f32.mrf.mxu0
        %v2989 = vadd.f32 %v2856, %v2988
        %v2990 = vpop.f32.mrf.mxu0
        %v2991 = vadd.f32 %v2858, %v2990
        %v2992 = vpop.f32.mrf.mxu0
        %v2993 = vadd.f32 %v2860, %v2992
        %v2994 = vpop.f32.mrf.mxu0
        %v2995 = vadd.f32 %v2862, %v2994
        %2996 = vmatprep.mubr.bf16.mxu0 %v517
        %2997 = vmatmul.mubr.bf16.gmra.mxu0 %v516
        %v2998 = vpop.f32.mrf.mxu0
        %v2999 = vadd.f32 %v2866, %v2998
        %v3000 = vpop.f32.mrf.mxu0
        %v3001 = vadd.f32 %v2868, %v3000
        %v3002 = vpop.f32.mrf.mxu0
        %v3003 = vadd.f32 %v2870, %v3002
        %v3004 = vpop.f32.mrf.mxu0
        %v3005 = vadd.f32 %v2872, %v3004
        %3006 = vmatprep.mubr.bf16.mxu0 %v525
        %3007 = vmatmul.mubr.bf16.gmra.mxu0 %v524
        %v3008 = vpop.f32.mrf.mxu0
        %v3009 = vadd.f32 %v2876, %v3008
        %v3010 = vpop.f32.mrf.mxu0
        %v3011 = vadd.f32 %v2878, %v3010
        %v3012 = vpop.f32.mrf.mxu0
        %v3013 = vadd.f32 %v2880, %v3012
        %v3014 = vpop.f32.mrf.mxu0
        %v3015 = vadd.f32 %v2882, %v3014
        %3016 = vdwg.mxu0
        %3017 = vmatprep.subr.bf16.mxu0 %v1797
        %3018 = vmatpush1.bf16.msra.mxu0 %v1796
        %3019 = vmatprep.subr.bf16.mxu0 %v1793
        %3020 = vmatpush1.bf16.msra.mxu0 %v1792
        %3021 = vmatprep.subr.bf16.mxu0 %v1789
        %3022 = vmatpush1.bf16.msra.mxu0 %v1788
        %3023 = vmatprep.subr.bf16.mxu0 %v1785
        %3024 = vmatpush1.bf16.msra.mxu0 %v1784
        %3025 = vmatprep.subr.bf16.mxu0 %v1781
        %3026 = vmatpush1.bf16.msra.mxu0 %v1780
        %3027 = vmatprep.subr.bf16.mxu0 %v1777
        %3028 = vmatpush1.bf16.msra.mxu0 %v1776
        %3029 = vmatprep.subr.bf16.mxu0 %v1773
        %3030 = vmatpush1.bf16.msra.mxu0 %v1772
        %3031 = vmatprep.subr.bf16.mxu0 %v1769
        %3032 = vmatpush1.bf16.msra.mxu0 %v1768
        %3033 = vmatprep.subr.bf16.mxu0 %v1829
        %3034 = vmatpush2.bf16.msra.mxu0 %v1828
        %3035 = vmatprep.subr.bf16.mxu0 %v1825
        %3036 = vmatpush2.bf16.msra.mxu0 %v1824
        %3037 = vmatprep.subr.bf16.mxu0 %v1821
        %3038 = vmatpush2.bf16.msra.mxu0 %v1820
        %3039 = vmatprep.subr.bf16.mxu0 %v1817
        %3040 = vmatpush2.bf16.msra.mxu0 %v1816
        %3041 = vmatprep.subr.bf16.mxu0 %v1813
        %3042 = vmatpush2.bf16.msra.mxu0 %v1812
        %3043 = vmatprep.subr.bf16.mxu0 %v1809
        %3044 = vmatpush2.bf16.msra.mxu0 %v1808
        %3045 = vmatprep.subr.bf16.mxu0 %v1805
        %3046 = vmatpush2.bf16.msra.mxu0 %v1804
        %3047 = vmatprep.subr.bf16.mxu0 %v1801
        %3048 = vmatpush2.bf16.msra.mxu0 %v1800
        %3049 = vmatprep.mubr.bf16.mxu0 %v455
        %3050 = vmatmul.mubr.bf16.gmra.mxu0 %v454
        %v3051 = vpop.f32.mrf.mxu0
        %v3052 = vadd.f32 %v2919, %v3051
        %v3053 = vpop.f32.mrf.mxu0
        %v3054 = vadd.f32 %v2921, %v3053
        %v3055 = vpop.f32.mrf.mxu0
        %v3056 = vadd.f32 %v2923, %v3055
        %v3057 = vpop.f32.mrf.mxu0
        %v3058 = vadd.f32 %v2925, %v3057
        %3059 = vmatprep.mubr.bf16.mxu0 %v463
        %3060 = vmatmul.mubr.bf16.gmra.mxu0 %v462
        %v3061 = vpop.f32.mrf.mxu0
        %v3062 = vadd.f32 %v2929, %v3061
        %v3063 = vpop.f32.mrf.mxu0
        %v3064 = vadd.f32 %v2931, %v3063
        %v3065 = vpop.f32.mrf.mxu0
        %v3066 = vadd.f32 %v2933, %v3065
        %v3067 = vpop.f32.mrf.mxu0
        %v3068 = vadd.f32 %v2935, %v3067
        %3069 = vmatprep.mubr.bf16.mxu0 %v471
        %3070 = vmatmul.mubr.bf16.gmra.mxu0 %v470
        %v3071 = vpop.f32.mrf.mxu0
        %v3072 = vadd.f32 %v2939, %v3071
        %v3073 = vpop.f32.mrf.mxu0
        %v3074 = vadd.f32 %v2941, %v3073
        %v3075 = vpop.f32.mrf.mxu0
        %v3076 = vadd.f32 %v2943, %v3075
        %v3077 = vpop.f32.mrf.mxu0
        %v3078 = vadd.f32 %v2945, %v3077
        %3079 = vmatprep.mubr.bf16.mxu0 %v479
        %3080 = vmatmul.mubr.bf16.gmra.mxu0 %v478
        %v3081 = vpop.f32.mrf.mxu0
        %v3082 = vadd.f32 %v2949, %v3081
        %v3083 = vpop.f32.mrf.mxu0
        %v3084 = vadd.f32 %v2951, %v3083
        %v3085 = vpop.f32.mrf.mxu0
        %v3086 = vadd.f32 %v2953, %v3085
        %v3087 = vpop.f32.mrf.mxu0
        %v3088 = vadd.f32 %v2955, %v3087
        %3089 = vmatprep.mubr.bf16.mxu0 %v487
        %3090 = vmatmul.mubr.bf16.gmra.mxu0 %v486
        %v3091 = vpop.f32.mrf.mxu0
        %v3092 = vadd.f32 %v2959, %v3091
        %v3093 = vpop.f32.mrf.mxu0
        %v3094 = vadd.f32 %v2961, %v3093
        %v3095 = vpop.f32.mrf.mxu0
        %v3096 = vadd.f32 %v2963, %v3095
        %v3097 = vpop.f32.mrf.mxu0
        %v3098 = vadd.f32 %v2965, %v3097
        %3099 = vmatprep.mubr.bf16.mxu0 %v495
        %3100 = vmatmul.mubr.bf16.gmra.mxu0 %v494
        %v3101 = vpop.f32.mrf.mxu0
        %v3102 = vadd.f32 %v2969, %v3101
        %v3103 = vpop.f32.mrf.mxu0
        %v3104 = vadd.f32 %v2971, %v3103
        %v3105 = vpop.f32.mrf.mxu0
        %v3106 = vadd.f32 %v2973, %v3105
        %v3107 = vpop.f32.mrf.mxu0
        %v3108 = vadd.f32 %v2975, %v3107
        %3109 = vmatprep.mubr.bf16.mxu0 %v503
        %3110 = vmatmul.mubr.bf16.gmra.mxu0 %v502
        %v3111 = vpop.f32.mrf.mxu0
        %v3112 = vadd.f32 %v2979, %v3111
        %v3113 = vpop.f32.mrf.mxu0
        %v3114 = vadd.f32 %v2981, %v3113
        %v3115 = vpop.f32.mrf.mxu0
        %v3116 = vadd.f32 %v2983, %v3115
        %v3117 = vpop.f32.mrf.mxu0
        %v3118 = vadd.f32 %v2985, %v3117
        %3119 = vmatprep.mubr.bf16.mxu0 %v511
        %3120 = vmatmul.mubr.bf16.gmra.mxu0 %v510
        %v3121 = vpop.f32.mrf.mxu0
        %v3122 = vadd.f32 %v2989, %v3121
        %v3123 = vpop.f32.mrf.mxu0
        %v3124 = vadd.f32 %v2991, %v3123
        %v3125 = vpop.f32.mrf.mxu0
        %v3126 = vadd.f32 %v2993, %v3125
        %v3127 = vpop.f32.mrf.mxu0
        %v3128 = vadd.f32 %v2995, %v3127
        %3129 = vmatprep.mubr.bf16.mxu0 %v519
        %3130 = vmatmul.mubr.bf16.gmra.mxu0 %v518
        %v3131 = vpop.f32.mrf.mxu0
        %v3132 = vadd.f32 %v2999, %v3131
        %v3133 = vpop.f32.mrf.mxu0
        %v3134 = vadd.f32 %v3001, %v3133
        %v3135 = vpop.f32.mrf.mxu0
        %v3136 = vadd.f32 %v3003, %v3135
        %v3137 = vpop.f32.mrf.mxu0
        %v3138 = vadd.f32 %v3005, %v3137
        %3139 = vmatprep.mubr.bf16.mxu0 %v527
        %3140 = vmatmul.mubr.bf16.gmra.mxu0 %v526
        %v3141 = vpop.f32.mrf.mxu0
        %v3142 = vadd.f32 %v3009, %v3141
        %v3143 = vpop.f32.mrf.mxu0
        %v3144 = vadd.f32 %v3011, %v3143
        %v3145 = vpop.f32.mrf.mxu0
        %v3146 = vadd.f32 %v3013, %v3145
        %v3147 = vpop.f32.mrf.mxu0
        %v3148 = vadd.f32 %v3015, %v3147
        %3149 = vdwg.mxu0
        %v3150 = vtanh.pop %v2520
        %v3151 = vtanh.pop %v2522
        %v3152 = vtanh.pop %v2524
        %v3153 = vtanh.pop %v2526
        %v3154 = vtanh.pop %v2530
        %v3155 = vtanh.pop %v2532
        %v3156 = vtanh.pop %v2534
        %v3157 = vtanh.pop %v2536
        %v3158 = vtanh.pop %v2540
        %v3159 = vtanh.pop %v2542
        %v3160 = vtanh.pop %v2544
        %v3161 = vtanh.pop %v2546
        %v3162 = vtanh.pop %v2550
        %v3163 = vtanh.pop %v2552
        %v3164 = vtanh.pop %v2554
        %v3165 = vtanh.pop %v2556
        %v3166 = vtanh.pop %v2560
        %v3167 = vtanh.pop %v2562
        %v3168 = vtanh.pop %v2564
        %v3169 = vtanh.pop %v2566
        %v3170 = vtanh.pop %v2570
        %v3171 = vtanh.pop %v2572
        %v3172 = vtanh.pop %v2574
        %v3173 = vtanh.pop %v2576
        %v3174 = vtanh.pop %v2580
        %v3175 = vtanh.pop %v2582
        %v3176 = vtanh.pop %v2584
        %v3177 = vtanh.pop %v2586
        %v3178 = vtanh.pop %v2590
        %v3179 = vtanh.pop %v2592
        %v3180 = vtanh.pop %v2594
        %v3181 = vtanh.pop %v2596
        %v3182 = vtanh.pop %v2600
        %v3183 = vtanh.pop %v2602
        %v3184 = vtanh.pop %v2604
        %v3185 = vtanh.pop %v2606
        %v3186 = vtanh.pop %v2610
        %v3187 = vtanh.pop %v2612
        %v3188 = vtanh.pop %v2614
        %v3189 = vtanh.pop %v2616
        %v3190 = vxor.u32 %v3052, 2147483648
        %v3191 = vxor.u32 %v3054, 2147483648
        %v3192 = vxor.u32 %v3056, 2147483648
        %v3193 = vxor.u32 %v3058, 2147483648
        %v3194 = vxor.u32 %v3062, 2147483648
        %v3195 = vxor.u32 %v3064, 2147483648
        %v3196 = vxor.u32 %v3066, 2147483648
        %v3197 = vxor.u32 %v3068, 2147483648
        %v3198 = vxor.u32 %v3072, 2147483648
        %v3199 = vxor.u32 %v3074, 2147483648
        %v3200 = vxor.u32 %v3076, 2147483648
        %v3201 = vxor.u32 %v3078, 2147483648
        %v3202 = vxor.u32 %v3082, 2147483648
        %v3203 = vxor.u32 %v3084, 2147483648
        %v3204 = vxor.u32 %v3086, 2147483648
        %v3205 = vxor.u32 %v3088, 2147483648
        %v3206 = vxor.u32 %v3092, 2147483648
        %v3207 = vxor.u32 %v3094, 2147483648
        %v3208 = vxor.u32 %v3096, 2147483648
        %v3209 = vxor.u32 %v3098, 2147483648
        %v3210 = vxor.u32 %v3102, 2147483648
        %v3211 = vxor.u32 %v3104, 2147483648
        %v3212 = vxor.u32 %v3106, 2147483648
        %v3213 = vxor.u32 %v3108, 2147483648
        %v3214 = vxor.u32 %v3112, 2147483648
        %v3215 = vxor.u32 %v3114, 2147483648
        %v3216 = vxor.u32 %v3116, 2147483648
        %v3217 = vxor.u32 %v3118, 2147483648
        %v3218 = vxor.u32 %v3122, 2147483648
        %v3219 = vxor.u32 %v3124, 2147483648
        %v3220 = vxor.u32 %v3126, 2147483648
        %v3221 = vxor.u32 %v3128, 2147483648
        %v3222 = vxor.u32 %v3132, 2147483648
        %v3223 = vxor.u32 %v3134, 2147483648
        %v3224 = vxor.u32 %v3136, 2147483648
        %v3225 = vxor.u32 %v3138, 2147483648
        %v3226 = vxor.u32 %v3142, 2147483648
        %v3227 = vxor.u32 %v3144, 2147483648
        %v3228 = vxor.u32 %v3146, 2147483648
        %v3229 = vxor.u32 %v3148, 2147483648
        %v3230 = vmul.f32 %v3190, 1.442695
        %v3231 = vpow.pop %v3230
        %v3232 = vmul.f32 %v3191, 1.442695
        %v3233 = vpow.pop %v3232
        %v3234 = vmul.f32 %v3192, 1.442695
        %v3235 = vpow.pop %v3234
        %v3236 = vmul.f32 %v3193, 1.442695
        %v3237 = vpow.pop %v3236
        %v3238 = vmul.f32 %v3194, 1.442695
        %v3239 = vpow.pop %v3238
        %v3240 = vmul.f32 %v3195, 1.442695
        %v3241 = vpow.pop %v3240
        %v3242 = vmul.f32 %v3196, 1.442695
        %v3243 = vpow.pop %v3242
        %v3244 = vmul.f32 %v3197, 1.442695
        %v3245 = vpow.pop %v3244
        %v3246 = vmul.f32 %v3198, 1.442695
        %v3247 = vpow.pop %v3246
        %v3248 = vmul.f32 %v3199, 1.442695
        %v3249 = vpow.pop %v3248
        %v3250 = vmul.f32 %v3200, 1.442695
        %v3251 = vpow.pop %v3250
        %v3252 = vmul.f32 %v3201, 1.442695
        %v3253 = vpow.pop %v3252
        %v3254 = vmul.f32 %v3202, 1.442695
        %v3255 = vpow.pop %v3254
        %v3256 = vmul.f32 %v3203, 1.442695
        %v3257 = vpow.pop %v3256
        %v3258 = vmul.f32 %v3204, 1.442695
        %v3259 = vpow.pop %v3258
        %v3260 = vmul.f32 %v3205, 1.442695
        %v3261 = vpow.pop %v3260
        %v3262 = vmul.f32 %v3206, 1.442695
        %v3263 = vpow.pop %v3262
        %v3264 = vmul.f32 %v3207, 1.442695
        %v3265 = vpow.pop %v3264
        %v3266 = vmul.f32 %v3208, 1.442695
        %v3267 = vpow.pop %v3266
        %v3268 = vmul.f32 %v3209, 1.442695
        %v3269 = vpow.pop %v3268
        %v3270 = vmul.f32 %v3210, 1.442695
        %v3271 = vpow.pop %v3270
        %v3272 = vmul.f32 %v3211, 1.442695
        %v3273 = vpow.pop %v3272
        %v3274 = vmul.f32 %v3212, 1.442695
        %v3275 = vpow.pop %v3274
        %v3276 = vmul.f32 %v3213, 1.442695
        %v3277 = vpow.pop %v3276
        %v3278 = vmul.f32 %v3214, 1.442695
        %v3279 = vpow.pop %v3278
        %v3280 = vmul.f32 %v3215, 1.442695
        %v3281 = vpow.pop %v3280
        %v3282 = vmul.f32 %v3216, 1.442695
        %v3283 = vpow.pop %v3282
        %v3284 = vmul.f32 %v3217, 1.442695
        %v3285 = vpow.pop %v3284
        %v3286 = vmul.f32 %v3218, 1.442695
        %v3287 = vpow.pop %v3286
        %v3288 = vmul.f32 %v3219, 1.442695
        %v3289 = vpow.pop %v3288
        %v3290 = vmul.f32 %v3220, 1.442695
        %v3291 = vpow.pop %v3290
        %v3292 = vmul.f32 %v3221, 1.442695
        %v3293 = vpow.pop %v3292
        %v3294 = vmul.f32 %v3222, 1.442695
        %v3295 = vpow.pop %v3294
        %v3296 = vmul.f32 %v3223, 1.442695
        %v3297 = vpow.pop %v3296
        %v3298 = vmul.f32 %v3224, 1.442695
        %v3299 = vpow.pop %v3298
        %v3300 = vmul.f32 %v3225, 1.442695
        %v3301 = vpow.pop %v3300
        %v3302 = vmul.f32 %v3226, 1.442695
        %v3303 = vpow.pop %v3302
        %v3304 = vmul.f32 %v3227, 1.442695
        %v3305 = vpow.pop %v3304
        %v3306 = vmul.f32 %v3228, 1.442695
        %v3307 = vpow.pop %v3306
        %v3308 = vmul.f32 %v3229, 1.442695
        %v3309 = vpow.pop %v3308
        %v3310 = vadd.f32 %v3231, 1.0
        %v3311 = vadd.f32 %v3233, 1.0
        %v3312 = vadd.f32 %v3235, 1.0
        %v3313 = vadd.f32 %v3237, 1.0
        %v3314 = vadd.f32 %v3239, 1.0
        %v3315 = vadd.f32 %v3241, 1.0
        %v3316 = vadd.f32 %v3243, 1.0
        %v3317 = vadd.f32 %v3245, 1.0
        %v3318 = vadd.f32 %v3247, 1.0
        %v3319 = vadd.f32 %v3249, 1.0
        %v3320 = vadd.f32 %v3251, 1.0
        %v3321 = vadd.f32 %v3253, 1.0
        %v3322 = vadd.f32 %v3255, 1.0
        %v3323 = vadd.f32 %v3257, 1.0
        %v3324 = vadd.f32 %v3259, 1.0
        %v3325 = vadd.f32 %v3261, 1.0
        %v3326 = vadd.f32 %v3263, 1.0
        %v3327 = vadd.f32 %v3265, 1.0
        %v3328 = vadd.f32 %v3267, 1.0
        %v3329 = vadd.f32 %v3269, 1.0
        %v3330 = vadd.f32 %v3271, 1.0
        %v3331 = vadd.f32 %v3273, 1.0
        %v3332 = vadd.f32 %v3275, 1.0
        %v3333 = vadd.f32 %v3277, 1.0
        %v3334 = vadd.f32 %v3279, 1.0
        %v3335 = vadd.f32 %v3281, 1.0
        %v3336 = vadd.f32 %v3283, 1.0
        %v3337 = vadd.f32 %v3285, 1.0
        %v3338 = vadd.f32 %v3287, 1.0
        %v3339 = vadd.f32 %v3289, 1.0
        %v3340 = vadd.f32 %v3291, 1.0
        %v3341 = vadd.f32 %v3293, 1.0
        %v3342 = vadd.f32 %v3295, 1.0
        %v3343 = vadd.f32 %v3297, 1.0
        %v3344 = vadd.f32 %v3299, 1.0
        %v3345 = vadd.f32 %v3301, 1.0
        %v3346 = vadd.f32 %v3303, 1.0
        %v3347 = vadd.f32 %v3305, 1.0
        %v3348 = vadd.f32 %v3307, 1.0
        %v3349 = vadd.f32 %v3309, 1.0
        %v3350 = vrcp.pop %v3310
        %v3351 = vmul.f32 1.0, %v3350
        %v3352 = vrcp.pop %v3311
        %v3353 = vmul.f32 1.0, %v3352
        %v3354 = vrcp.pop %v3312
        %v3355 = vmul.f32 1.0, %v3354
        %v3356 = vrcp.pop %v3313
        %v3357 = vmul.f32 1.0, %v3356
        %v3358 = vrcp.pop %v3314
        %v3359 = vmul.f32 1.0, %v3358
        %v3360 = vrcp.pop %v3315
        %v3361 = vmul.f32 1.0, %v3360
        %v3362 = vrcp.pop %v3316
        %v3363 = vmul.f32 1.0, %v3362
        %v3364 = vrcp.pop %v3317
        %v3365 = vmul.f32 1.0, %v3364
        %v3366 = vrcp.pop %v3318
        %v3367 = vmul.f32 1.0, %v3366
        %v3368 = vrcp.pop %v3319
        %v3369 = vmul.f32 1.0, %v3368
        %v3370 = vrcp.pop %v3320
        %v3371 = vmul.f32 1.0, %v3370
        %v3372 = vrcp.pop %v3321
        %v3373 = vmul.f32 1.0, %v3372
        %v3374 = vrcp.pop %v3322
        %v3375 = vmul.f32 1.0, %v3374
        %v3376 = vrcp.pop %v3323
        %v3377 = vmul.f32 1.0, %v3376
        %v3378 = vrcp.pop %v3324
        %v3379 = vmul.f32 1.0, %v3378
        %v3380 = vrcp.pop %v3325
        %v3381 = vmul.f32 1.0, %v3380
        %v3382 = vrcp.pop %v3326
        %v3383 = vmul.f32 1.0, %v3382
        %v3384 = vrcp.pop %v3327
        %v3385 = vmul.f32 1.0, %v3384
        %v3386 = vrcp.pop %v3328
        %v3387 = vmul.f32 1.0, %v3386
        %v3388 = vrcp.pop %v3329
        %v3389 = vmul.f32 1.0, %v3388
        %v3390 = vrcp.pop %v3330
        %v3391 = vmul.f32 1.0, %v3390
        %v3392 = vrcp.pop %v3331
        %v3393 = vmul.f32 1.0, %v3392
        %v3394 = vrcp.pop %v3332
        %v3395 = vmul.f32 1.0, %v3394
        %v3396 = vrcp.pop %v3333
        %v3397 = vmul.f32 1.0, %v3396
        %v3398 = vrcp.pop %v3334
        %v3399 = vmul.f32 1.0, %v3398
        %v3400 = vrcp.pop %v3335
        %v3401 = vmul.f32 1.0, %v3400
        %v3402 = vrcp.pop %v3336
        %v3403 = vmul.f32 1.0, %v3402
        %v3404 = vrcp.pop %v3337
        %v3405 = vmul.f32 1.0, %v3404
        %v3406 = vrcp.pop %v3338
        %v3407 = vmul.f32 1.0, %v3406
        %v3408 = vrcp.pop %v3339
        %v3409 = vmul.f32 1.0, %v3408
        %v3410 = vrcp.pop %v3340
        %v3411 = vmul.f32 1.0, %v3410
        %v3412 = vrcp.pop %v3341
        %v3413 = vmul.f32 1.0, %v3412
        %v3414 = vrcp.pop %v3342
        %v3415 = vmul.f32 1.0, %v3414
        %v3416 = vrcp.pop %v3343
        %v3417 = vmul.f32 1.0, %v3416
        %v3418 = vrcp.pop %v3344
        %v3419 = vmul.f32 1.0, %v3418
        %v3420 = vrcp.pop %v3345
        %v3421 = vmul.f32 1.0, %v3420
        %v3422 = vrcp.pop %v3346
        %v3423 = vmul.f32 1.0, %v3422
        %v3424 = vrcp.pop %v3347
        %v3425 = vmul.f32 1.0, %v3424
        %v3426 = vrcp.pop %v3348
        %v3427 = vmul.f32 1.0, %v3426
        %v3428 = vrcp.pop %v3349
        %v3429 = vmul.f32 1.0, %v3428
        %v3430 = vmul.f32 %v3150, %v3351
        %v3431 = vmul.f32 %v3151, %v3353
        %v3432 = vmul.f32 %v3152, %v3355
        %v3433 = vmul.f32 %v3153, %v3357
        %v3434 = vmul.f32 %v3154, %v3359
        %v3435 = vmul.f32 %v3155, %v3361
        %v3436 = vmul.f32 %v3156, %v3363
        %v3437 = vmul.f32 %v3157, %v3365
        %v3438 = vmul.f32 %v3158, %v3367
        %v3439 = vmul.f32 %v3159, %v3369
        %v3440 = vmul.f32 %v3160, %v3371
        %v3441 = vmul.f32 %v3161, %v3373
        %v3442 = vmul.f32 %v3162, %v3375
        %v3443 = vmul.f32 %v3163, %v3377
        %v3444 = vmul.f32 %v3164, %v3379
        %v3445 = vmul.f32 %v3165, %v3381
        %v3446 = vmul.f32 %v3166, %v3383
        %v3447 = vmul.f32 %v3167, %v3385
        %v3448 = vmul.f32 %v3168, %v3387
        %v3449 = vmul.f32 %v3169, %v3389
        %v3450 = vmul.f32 %v3170, %v3391
        %v3451 = vmul.f32 %v3171, %v3393
        %v3452 = vmul.f32 %v3172, %v3395
        %v3453 = vmul.f32 %v3173, %v3397
        %v3454 = vmul.f32 %v3174, %v3399
        %v3455 = vmul.f32 %v3175, %v3401
        %v3456 = vmul.f32 %v3176, %v3403
        %v3457 = vmul.f32 %v3177, %v3405
        %v3458 = vmul.f32 %v3178, %v3407
        %v3459 = vmul.f32 %v3179, %v3409
        %v3460 = vmul.f32 %v3180, %v3411
        %v3461 = vmul.f32 %v3181, %v3413
        %v3462 = vmul.f32 %v3182, %v3415
        %v3463 = vmul.f32 %v3183, %v3417
        %v3464 = vmul.f32 %v3184, %v3419
        %v3465 = vmul.f32 %v3185, %v3421
        %v3466 = vmul.f32 %v3186, %v3423
        %v3467 = vmul.f32 %v3187, %v3425
        %v3468 = vmul.f32 %v3188, %v3427
        %v3469 = vmul.f32 %v3189, %v3429
        %v3470 = vpack.c.bf16 %v3432, %v3430
        %v3471 = vpack.c.bf16 %v3433, %v3431
        %v3472 = vpack.c.bf16 %v3436, %v3434
        %v3473 = vpack.c.bf16 %v3437, %v3435
        %v3474 = vpack.c.bf16 %v3440, %v3438
        %v3475 = vpack.c.bf16 %v3441, %v3439
        %v3476 = vpack.c.bf16 %v3444, %v3442
        %v3477 = vpack.c.bf16 %v3445, %v3443
        %v3478 = vpack.c.bf16 %v3448, %v3446
        %v3479 = vpack.c.bf16 %v3449, %v3447
        %v3480 = vpack.c.bf16 %v3452, %v3450
        %v3481 = vpack.c.bf16 %v3453, %v3451
        %v3482 = vpack.c.bf16 %v3456, %v3454
        %v3483 = vpack.c.bf16 %v3457, %v3455
        %v3484 = vpack.c.bf16 %v3460, %v3458
        %v3485 = vpack.c.bf16 %v3461, %v3459
        %v3486 = vpack.c.bf16 %v3464, %v3462
        %v3487 = vpack.c.bf16 %v3465, %v3463
        %v3488 = vpack.c.bf16 %v3468, %v3466
        %v3489 = vpack.c.bf16 %v3469, %v3467
        %v3490 = vld [vmem:[%s3] sm:$0xf]
        %v3491 = vld [vmem:[%s3 + $0x4] sm:$0xf]
        %v3492 = vld [vmem:[%s3 + $0x8] sm:$0xf]
        %v3493 = vld [vmem:[%s3 + $0xc] sm:$0xf]
        %v3494 = vld [vmem:[%s3 + $0x10] sm:$0xf]
        %v3495 = vld [vmem:[%s3 + $0x14] sm:$0xf]
        %v3496 = vld [vmem:[%s3 + $0x18] sm:$0xf]
        %v3497 = vld [vmem:[%s3 + $0x1c] sm:$0xf]
        %v3498 = vld [vmem:[%s3 + $0x20] sm:$0xf]
        %v3499 = vld [vmem:[%s3 + $0x24] sm:$0xf]
        %v3500 = vld [vmem:[%s3 + $0x28] sm:$0xf]
        %v3501 = vld [vmem:[%s3 + $0x2c] sm:$0xf]
        %v3502 = vld [vmem:[%s3 + $0x30] sm:$0xf]
        %v3503 = vld [vmem:[%s3 + $0x34] sm:$0xf]
        %v3504 = vld [vmem:[%s3 + $0x38] sm:$0xf]
        %v3505 = vld [vmem:[%s3 + $0x3c] sm:$0xf]
        %v3506 = vld [vmem:[%s3 + $0x40] sm:$0xf]
        %v3507 = vld [vmem:[%s3 + $0x44] sm:$0xf]
        %v3508 = vld [vmem:[%s3 + $0x48] sm:$0xf]
        %v3509 = vld [vmem:[%s3 + $0x4c] sm:$0xf]
        %v3510 = vld [vmem:[%s3 + $0x50] sm:$0xf]
        %v3511 = vld [vmem:[%s3 + $0x54] sm:$0xf]
        %v3512 = vld [vmem:[%s3 + $0x58] sm:$0xf]
        %v3513 = vld [vmem:[%s3 + $0x5c] sm:$0xf]
        %v3514 = vld [vmem:[%s3 + $0x60] sm:$0xf]
        %v3515 = vld [vmem:[%s3 + $0x64] sm:$0xf]
        %v3516 = vld [vmem:[%s3 + $0x68] sm:$0xf]
        %v3517 = vld [vmem:[%s3 + $0x6c] sm:$0xf]
        %v3518 = vld [vmem:[%s3 + $0x70] sm:$0xf]
        %v3519 = vld [vmem:[%s3 + $0x74] sm:$0xf]
        %v3520 = vld [vmem:[%s3 + $0x78] sm:$0xf]
        %v3521 = vld [vmem:[%s3 + $0x7c] sm:$0xf]
        %v3522 = vld [vmem:[#allocation2] sm:$0x1]
        %v3524 = vlaneseq
        %v3525 = vshrl.u32 %v3524, 7
        %v3526 = vsub.s32 0, %v3525
        %v3527 = vrot.slane %v3522, %v3526
        %v3561 = vunpack.c.l.b16 %v3490
        %v3562 = vunpack.c.l.b16 %v3491
        %v3563 = vunpack.c.l.b16 %v3492
        %v3564 = vunpack.c.l.b16 %v3493
        %v3565 = vunpack.c.l.b16 %v3494
        %v3566 = vunpack.c.l.b16 %v3495
        %v3567 = vunpack.c.l.b16 %v3496
        %v3568 = vunpack.c.l.b16 %v3497
        %v3569 = vunpack.c.l.b16 %v3498
        %v3570 = vunpack.c.l.b16 %v3499
        %v3571 = vunpack.c.l.b16 %v3500
        %v3572 = vunpack.c.l.b16 %v3501
        %v3573 = vunpack.c.l.b16 %v3502
        %v3574 = vunpack.c.l.b16 %v3503
        %v3575 = vunpack.c.l.b16 %v3504
        %v3576 = vunpack.c.l.b16 %v3505
        %v3577 = vunpack.c.l.b16 %v3506
        %v3578 = vunpack.c.l.b16 %v3507
        %v3579 = vunpack.c.l.b16 %v3508
        %v3580 = vunpack.c.l.b16 %v3509
        %v3581 = vunpack.c.l.b16 %v3510
        %v3582 = vunpack.c.l.b16 %v3511
        %v3583 = vunpack.c.l.b16 %v3512
        %v3584 = vunpack.c.l.b16 %v3513
        %v3585 = vunpack.c.l.b16 %v3514
        %v3586 = vunpack.c.l.b16 %v3515
        %v3587 = vunpack.c.l.b16 %v3516
        %v3588 = vunpack.c.l.b16 %v3517
        %v3589 = vunpack.c.l.b16 %v3518
        %v3590 = vunpack.c.l.b16 %v3519
        %v3591 = vunpack.c.l.b16 %v3520
        %v3592 = vunpack.c.l.b16 %v3521
        %v3593 = vpack.c.b16 %v3562, %v3561
        %v3594 = vpack.c.b16 %v3564, %v3563
        %v3595 = vpack.c.b16 %v3566, %v3565
        %v3596 = vpack.c.b16 %v3568, %v3567
        %v3597 = vpack.c.b16 %v3570, %v3569
        %v3598 = vpack.c.b16 %v3572, %v3571
        %v3599 = vpack.c.b16 %v3574, %v3573
        %v3600 = vpack.c.b16 %v3576, %v3575
        %v3601 = vpack.c.b16 %v3578, %v3577
        %v3602 = vpack.c.b16 %v3580, %v3579
        %v3603 = vpack.c.b16 %v3582, %v3581
        %v3604 = vpack.c.b16 %v3584, %v3583
        %v3605 = vpack.c.b16 %v3586, %v3585
        %v3606 = vpack.c.b16 %v3588, %v3587
        %v3607 = vpack.c.b16 %v3590, %v3589
        %v3608 = vpack.c.b16 %v3592, %v3591
        %3625 = vmatprep.subr.bf16.mxu0 0
        %3626 = vmatpush1.bf16.msra.mxu0 %v3600
        %3627 = vmatprep.subr.bf16.mxu0 0
        %3628 = vmatpush1.bf16.msra.mxu0 %v3599
        %3629 = vmatprep.subr.bf16.mxu0 0
        %3630 = vmatpush1.bf16.msra.mxu0 %v3598
        %3631 = vmatprep.subr.bf16.mxu0 0
        %3632 = vmatpush1.bf16.msra.mxu0 %v3597
        %3633 = vmatprep.subr.bf16.mxu0 0
        %3634 = vmatpush1.bf16.msra.mxu0 %v3596
        %3635 = vmatprep.subr.bf16.mxu0 0
        %3636 = vmatpush1.bf16.msra.mxu0 %v3595
        %3637 = vmatprep.subr.bf16.mxu0 0
        %3638 = vmatpush1.bf16.msra.mxu0 %v3594
        %3639 = vmatprep.subr.bf16.mxu0 0
        %3640 = vmatpush1.bf16.msra.mxu0 %v3593
        %3641 = vmatprep.subr.bf16.mxu0 0
        %3642 = vmatpush2.bf16.msra.mxu0 %v3608
        %3643 = vmatprep.subr.bf16.mxu0 0
        %3644 = vmatpush2.bf16.msra.mxu0 %v3607
        %3645 = vmatprep.subr.bf16.mxu0 0
        %3646 = vmatpush2.bf16.msra.mxu0 %v3606
        %3647 = vmatprep.subr.bf16.mxu0 0
        %3648 = vmatpush2.bf16.msra.mxu0 %v3605
        %3649 = vmatprep.subr.bf16.mxu0 0
        %3650 = vmatpush2.bf16.msra.mxu0 %v3604
        %3651 = vmatprep.subr.bf16.mxu0 0
        %3652 = vmatpush2.bf16.msra.mxu0 %v3603
        %3653 = vmatprep.subr.bf16.mxu0 0
        %3654 = vmatpush2.bf16.msra.mxu0 %v3602
        %3655 = vmatprep.subr.bf16.mxu0 0
        %3656 = vmatpush2.bf16.msra.mxu0 %v3601
        %3657 = vmatprep.mubr.bf16.mxu0 %v3471
        %3658 = vmatmul.mubr.bf16.gmra.mxu0 %v3470
        %v3659 = vpop.f32.mrf.mxu0
        %v3660 = vadd.f32 %v3527, %v3659
        %v3661 = vpop.f32.mrf.mxu0
        %v3662 = vpop.f32.mrf.mxu0
        %v3663 = vadd.f32 %v3527, %v3662
        %v3664 = vpop.f32.mrf.mxu0
        %3665 = vmatprep.mubr.bf16.mxu0 %v3473
        %3666 = vmatmul.mubr.bf16.gmra.mxu0 %v3472
        %v3667 = vpop.f32.mrf.mxu0
        %v3668 = vadd.f32 %v3527, %v3667
        %v3669 = vpop.f32.mrf.mxu0
        %v3670 = vpop.f32.mrf.mxu0
        %v3671 = vadd.f32 %v3527, %v3670
        %v3672 = vpop.f32.mrf.mxu0
        %3673 = vmatprep.mubr.bf16.mxu0 %v3475
        %3674 = vmatmul.mubr.bf16.gmra.mxu0 %v3474
        %v3675 = vpop.f32.mrf.mxu0
        %v3676 = vadd.f32 %v3527, %v3675
        %v3677 = vpop.f32.mrf.mxu0
        %v3678 = vpop.f32.mrf.mxu0
        %v3679 = vadd.f32 %v3527, %v3678
        %v3680 = vpop.f32.mrf.mxu0
        %3681 = vmatprep.mubr.bf16.mxu0 %v3477
        %3682 = vmatmul.mubr.bf16.gmra.mxu0 %v3476
        %v3683 = vpop.f32.mrf.mxu0
        %v3684 = vadd.f32 %v3527, %v3683
        %v3685 = vpop.f32.mrf.mxu0
        %v3686 = vpop.f32.mrf.mxu0
        %v3687 = vadd.f32 %v3527, %v3686
        %v3688 = vpop.f32.mrf.mxu0
        %3689 = vmatprep.mubr.bf16.mxu0 %v3479
        %3690 = vmatmul.mubr.bf16.gmra.mxu0 %v3478
        %v3691 = vpop.f32.mrf.mxu0
        %v3692 = vadd.f32 %v3527, %v3691
        %v3693 = vpop.f32.mrf.mxu0
        %v3694 = vpop.f32.mrf.mxu0
        %v3695 = vadd.f32 %v3527, %v3694
        %v3696 = vpop.f32.mrf.mxu0
        %3697 = vmatprep.mubr.bf16.mxu0 %v3481
        %3698 = vmatmul.mubr.bf16.gmra.mxu0 %v3480
        %v3699 = vpop.f32.mrf.mxu0
        %v3700 = vadd.f32 %v3527, %v3699
        %v3701 = vpop.f32.mrf.mxu0
        %v3702 = vpop.f32.mrf.mxu0
        %v3703 = vadd.f32 %v3527, %v3702
        %v3704 = vpop.f32.mrf.mxu0
        %3705 = vmatprep.mubr.bf16.mxu0 %v3483
        %3706 = vmatmul.mubr.bf16.gmra.mxu0 %v3482
        %v3707 = vpop.f32.mrf.mxu0
        %v3708 = vadd.f32 %v3527, %v3707
        %v3709 = vpop.f32.mrf.mxu0
        %v3710 = vpop.f32.mrf.mxu0
        %v3711 = vadd.f32 %v3527, %v3710
        %v3712 = vpop.f32.mrf.mxu0
        %3713 = vmatprep.mubr.bf16.mxu0 %v3485
        %3714 = vmatmul.mubr.bf16.gmra.mxu0 %v3484
        %v3715 = vpop.f32.mrf.mxu0
        %v3716 = vadd.f32 %v3527, %v3715
        %v3717 = vpop.f32.mrf.mxu0
        %v3718 = vpop.f32.mrf.mxu0
        %v3719 = vadd.f32 %v3527, %v3718
        %v3720 = vpop.f32.mrf.mxu0
        %3721 = vmatprep.mubr.bf16.mxu0 %v3487
        %3722 = vmatmul.mubr.bf16.gmra.mxu0 %v3486
        %v3723 = vpop.f32.mrf.mxu0
        %v3724 = vadd.f32 %v3527, %v3723
        %v3725 = vpop.f32.mrf.mxu0
        %v3726 = vpop.f32.mrf.mxu0
        %v3727 = vadd.f32 %v3527, %v3726
        %v3728 = vpop.f32.mrf.mxu0
        %3729 = vmatprep.mubr.bf16.mxu0 %v3489
        %3730 = vmatmul.mubr.bf16.gmra.mxu0 %v3488
        %v3731 = vpop.f32.mrf.mxu0
        %v3732 = vadd.f32 %v3527, %v3731
        %v3733 = vpop.f32.mrf.mxu0
        %v3734 = vpop.f32.mrf.mxu0
        %v3735 = vadd.f32 %v3527, %v3734
        %v3736 = vpop.f32.mrf.mxu0
        %3737 = vdwg.mxu0
        %vm3738 = vcmask 7168
        %3739 = vst.msk [vmem:[%s275] sm:$0xff] %vm3738, %v3660
        %3740 = vst.msk [vmem:[%s275 + $0x8] sm:$0xff] %vm3738, %v3663
        %3741 = vst.msk [vmem:[%s275 + $0x10] sm:$0xff] %vm3738, %v3668
        %3742 = vst.msk [vmem:[%s275 + $0x18] sm:$0xff] %vm3738, %v3671
        %3743 = vst.msk [vmem:[%s275 + $0x20] sm:$0xff] %vm3738, %v3676
        %3744 = vst.msk [vmem:[%s275 + $0x28] sm:$0xff] %vm3738, %v3679
        %3745 = vst.msk [vmem:[%s275 + $0x30] sm:$0xff] %vm3738, %v3684
        %3746 = vst.msk [vmem:[%s275 + $0x38] sm:$0xff] %vm3738, %v3687
        %3747 = vst.msk [vmem:[%s275 + $0x40] sm:$0xff] %vm3738, %v3692
        %3748 = vst.msk [vmem:[%s275 + $0x48] sm:$0xff] %vm3738, %v3695
        %3749 = vst.msk [vmem:[%s275 + $0x50] sm:$0xff] %vm3738, %v3700
        %3750 = vst.msk [vmem:[%s275 + $0x58] sm:$0xff] %vm3738, %v3703
        %3751 = vst.msk [vmem:[%s275 + $0x60] sm:$0xff] %vm3738, %v3708
        %3752 = vst.msk [vmem:[%s275 + $0x68] sm:$0xff] %vm3738, %v3711
        %3753 = vst.msk [vmem:[%s275 + $0x70] sm:$0xff] %vm3738, %v3716
        %3754 = vst.msk [vmem:[%s275 + $0x78] sm:$0xff] %vm3738, %v3719
        %3755 = vst.msk [vmem:[%s275 + $0x80] sm:$0xff] %vm3738, %v3724
        %3756 = vst.msk [vmem:[%s275 + $0x88] sm:$0xff] %vm3738, %v3727
        %3757 = vst.msk [vmem:[%s275 + $0x90] sm:$0xff] %vm3738, %v3732
        %3758 = vst.msk [vmem:[%s275 + $0x98] sm:$0xff] %vm3738, %v3735
        %s3759 = sand.u32 %s140, 1
        %s3760 = sand.u32 %s140, 1
        %s3761 = smul.addr %s3760, 160
        %s3762 = scalar_lea.vmem [#allocation8], %s3761
        // Predicated region
        $region53: #{tpu_custom_call.1} parent=39 // pred_check
          %p3763 = pneg %p150
        $region54: #{tpu_custom_call.1} parent=39 // pred_check_branch
          %3765 = sbr.rel (%p3763) target = $region56
        $region55: #{tpu_custom_call.1} parent=39 // pred_region
          %s3766 = smul.u32 20, %s22
          %s3767 = ssub.s32 38, %s3766
          %p3768 = scmp.lt.s32.totalorder %s3767, 20
          %s3769 = scalar_select %p3768, %s3767, 20
          %s3770 = smul.u32 128, %s3769
          %p3771 = scmp.ne.s32.totalorder 0, %s3770
          %s3772 = smul.addr %s3766, 8
          %s3773 = scalar_lea.vmem %s5, %s3772
          // Predicated region
          $region57: #{tpu_custom_call.1} parent=55 // pred_check
            %p3774 = pneg %p3771
          $region58: #{tpu_custom_call.1} parent=55 // pred_check_branch
            %3776 = sbr.rel (%p3774) target = $region60
          $region59: #{tpu_custom_call.1} parent=55 // pred_region
            // Predicated region
            $region61: #{tpu_custom_call.1} parent=59 // pred_check
              _
            $region62: #{tpu_custom_call.1} parent=59 // pred_check_branch
              %3778 = sbr.rel (0) target = $region64
            $region63: #{tpu_custom_call.1} parent=59 // pred_region
              // Predicated region
              $region83: #{tpu_custom_call.1} parent=63 // pred_check
                _
              $region84: #{tpu_custom_call.1} parent=63 // pred_check_branch
                %3867 = sbr.rel (0) target = $region86
              $region85: #{tpu_custom_call.1} parent=63 // pred_region
                %s3868 = sdiv.u32.pop %s3769, 20
                %s3869 = srem.u32.pop %s3769, 20
                // While loop
                $region87: #{tpu_custom_call.1} parent=85 // loop_pre_header
                  _
                $region88: #{tpu_custom_call.1} parent=85 // loop_header
                  %s3871 = sphi 0, %s3873
                  %p3872 = scmp.ge.s32.totalorder %s3871, %s3868
                  %s3876 = sphi 0, %s3921
                  %s3877 = sphi %s3762, %s3924
                  %s3878 = sphi %s3773, %s3925
                $region89: #{tpu_custom_call.1} parent=85 // loop_header_branch
                  %3875 = sbr.rel (%p3872) target = $region93
                $region90: #{tpu_custom_call.1} parent=85 // loop_body
                  %v3879 = vld [vmem:[%s3877] sm:$0xff]
                  %3880 = vst [vmem:[%s3878] sm:$0xff] %v3879
                  %v3881 = vld [vmem:[%s3877 + $0x8] sm:$0xff]
                  %3882 = vst [vmem:[%s3878 + $0x8] sm:$0xff] %v3881
                  %v3883 = vld [vmem:[%s3877 + $0x10] sm:$0xff]
                  %3884 = vst [vmem:[%s3878 + $0x10] sm:$0xff] %v3883
                  %v3885 = vld [vmem:[%s3877 + $0x18] sm:$0xff]
                  %3886 = vst [vmem:[%s3878 + $0x18] sm:$0xff] %v3885
                  %v3887 = vld [vmem:[%s3877 + $0x20] sm:$0xff]
                  %3888 = vst [vmem:[%s3878 + $0x20] sm:$0xff] %v3887
                  %v3889 = vld [vmem:[%s3877 + $0x28] sm:$0xff]
                  %3890 = vst [vmem:[%s3878 + $0x28] sm:$0xff] %v3889
                  %v3891 = vld [vmem:[%s3877 + $0x30] sm:$0xff]
                  %3892 = vst [vmem:[%s3878 + $0x30] sm:$0xff] %v3891
                  %v3893 = vld [vmem:[%s3877 + $0x38] sm:$0xff]
                  %3894 = vst [vmem:[%s3878 + $0x38] sm:$0xff] %v3893
                  %v3895 = vld [vmem:[%s3877 + $0x40] sm:$0xff]
                  %3896 = vst [vmem:[%s3878 + $0x40] sm:$0xff] %v3895
                  %v3897 = vld [vmem:[%s3877 + $0x48] sm:$0xff]
                  %3898 = vst [vmem:[%s3878 + $0x48] sm:$0xff] %v3897
                  %v3899 = vld [vmem:[%s3877 + $0x50] sm:$0xff]
                  %3900 = vst [vmem:[%s3878 + $0x50] sm:$0xff] %v3899
                  %v3901 = vld [vmem:[%s3877 + $0x58] sm:$0xff]
                  %3902 = vst [vmem:[%s3878 + $0x58] sm:$0xff] %v3901
                  %v3903 = vld [vmem:[%s3877 + $0x60] sm:$0xff]
                  %3904 = vst [vmem:[%s3878 + $0x60] sm:$0xff] %v3903
                  %v3905 = vld [vmem:[%s3877 + $0x68] sm:$0xff]
                  %3906 = vst [vmem:[%s3878 + $0x68] sm:$0xff] %v3905
                  %v3907 = vld [vmem:[%s3877 + $0x70] sm:$0xff]
                  %3908 = vst [vmem:[%s3878 + $0x70] sm:$0xff] %v3907
                  %v3909 = vld [vmem:[%s3877 + $0x78] sm:$0xff]
                  %3910 = vst [vmem:[%s3878 + $0x78] sm:$0xff] %v3909
                  %v3911 = vld [vmem:[%s3877 + $0x80] sm:$0xff]
                  %3912 = vst [vmem:[%s3878 + $0x80] sm:$0xff] %v3911
                  %v3913 = vld [vmem:[%s3877 + $0x88] sm:$0xff]
                  %3914 = vst [vmem:[%s3878 + $0x88] sm:$0xff] %v3913
                  %v3915 = vld [vmem:[%s3877 + $0x90] sm:$0xff]
                  %3916 = vst [vmem:[%s3878 + $0x90] sm:$0xff] %v3915
                  %v3917 = vld [vmem:[%s3877 + $0x98] sm:$0xff]
                  %3918 = vst [vmem:[%s3878 + $0x98] sm:$0xff] %v3917
                  %s3919 = sadd.s32 1, %s3876
                  %p3920 = scmp.ge.s32.totalorder %s3919, %s3868
                  %s3921 = scalar_select %p3920, 0, %s3919
                  %s3922 = smul.u32 %s3921, 160
                  %s3923 = smul.u32 %s3921, 160
                  %s3924 = scalar_lea.vmem %s3762, %s3922 [#allocation8]
                  %s3925 = scalar_lea.vmem %s3773, %s3923
                $region91: #{tpu_custom_call.1} parent=85 // loop_footer
                  %s3873 = sadd.s32 %s3871, 1
                $region92: #{tpu_custom_call.1} parent=85 // loop_footer_branch
                  %3870 = sbr.rel target = $region88
                $region93: #{tpu_custom_call.1} parent=85 // loop_exit
                  _
                %s3926 = sdiv.u32.pop %s3769, 20
                %s3927 = srem.u32.pop %s3769, 20
                %s3928 = smul.u32 %s3926, 20
                %s3929 = smul.u32 8, %s3928
                %s3930 = scalar_lea.vmem %s3762, %s3929 [#allocation8]
                %s3931 = smul.u32 8, %s3928
                %s3932 = scalar_lea.vmem %s3773, %s3931
                // While loop
                $region94: #{tpu_custom_call.1} parent=85 // loop_pre_header
                  _
                $region95: #{tpu_custom_call.1} parent=85 // loop_header
                  %s3934 = sphi 0, %s3936
                  %p3935 = scmp.ge.s32.totalorder %s3934, %s3927
                  %s3939 = sphi 0, %s3946
                  %s3940 = sphi %s3930, %s3949
                  %s3941 = sphi %s3932, %s3950
                $region96: #{tpu_custom_call.1} parent=85 // loop_header_branch
                  %3938 = sbr.rel (%p3935) target = $region100
                $region97: #{tpu_custom_call.1} parent=85 // loop_body
                  %v3942 = vld [vmem:[%s3940] sm:$0xff]
                  %3943 = vst [vmem:[%s3941] sm:$0xff] %v3942
                  %s3944 = sadd.s32 1, %s3939
                  %p3945 = scmp.ge.s32.totalorder %s3944, %s3927
                  %s3946 = scalar_select %p3945, 0, %s3944
                  %s3947 = smul.u32 %s3946, 8
                  %s3948 = smul.u32 %s3946, 8
                  %s3949 = scalar_lea.vmem %s3930, %s3947 [#allocation8]
                  %s3950 = scalar_lea.vmem %s3932, %s3948
                $region98: #{tpu_custom_call.1} parent=85 // loop_footer
                  %s3936 = sadd.s32 %s3934, 1
                $region99: #{tpu_custom_call.1} parent=85 // loop_footer_branch
                  %3933 = sbr.rel target = $region95
                $region100: #{tpu_custom_call.1} parent=85 // loop_exit
                  _
              $region86: #{tpu_custom_call.1} parent=63 // pred_fallthru
                _
              // Predicated region
              $region101: #{tpu_custom_call.1} parent=63 // pred_check
                _
              $region102: #{tpu_custom_call.1} parent=63 // pred_check_branch
                %3952 = sbr.rel target = $region104
              $region103: #{tpu_custom_call.1} parent=63 // pred_region
                _
              $region104: #{tpu_custom_call.1} parent=63 // pred_fallthru
                _
            $region64: #{tpu_custom_call.1} parent=59 // pred_fallthru
              _
            // Predicated region
            $region65: #{tpu_custom_call.1} parent=59 // pred_check
              _
            $region66: #{tpu_custom_call.1} parent=59 // pred_check_branch
              %3780 = sbr.rel target = $region68
            $region67: #{tpu_custom_call.1} parent=59 // pred_region
              %s3782 = ssub.s32 256, 1
              %s3783 = sdiv.u32.pop %s3769, 20
              %s3784 = srem.u32.pop %s3769, 20
              // While loop
              $region69: #{tpu_custom_call.1} parent=67 // loop_pre_header
                _
              $region70: #{tpu_custom_call.1} parent=67 // loop_header
                %s3786 = sphi 0, %s3788
                %p3787 = scmp.ge.s32.totalorder %s3786, %s3783
                %s3791 = sphi 0, %s3836
                %s3792 = sphi %s3762, %s3839
                %s3793 = sphi %s3773, %s3840
              $region71: #{tpu_custom_call.1} parent=67 // loop_header_branch
                %3790 = sbr.rel (%p3787) target = $region75
              $region72: #{tpu_custom_call.1} parent=67 // loop_body
                %v3794 = vld [vmem:[%s3792] sm:%s3782]
                %3795 = vst [vmem:[%s3793] sm:%s3782] %v3794
                %v3796 = vld [vmem:[%s3792 + $0x8] sm:%s3782]
                %3797 = vst [vmem:[%s3793 + $0x8] sm:%s3782] %v3796
                %v3798 = vld [vmem:[%s3792 + $0x10] sm:%s3782]
                %3799 = vst [vmem:[%s3793 + $0x10] sm:%s3782] %v3798
                %v3800 = vld [vmem:[%s3792 + $0x18] sm:%s3782]
                %3801 = vst [vmem:[%s3793 + $0x18] sm:%s3782] %v3800
                %v3802 = vld [vmem:[%s3792 + $0x20] sm:%s3782]
                %3803 = vst [vmem:[%s3793 + $0x20] sm:%s3782] %v3802
                %v3804 = vld [vmem:[%s3792 + $0x28] sm:%s3782]
                %3805 = vst [vmem:[%s3793 + $0x28] sm:%s3782] %v3804
                %v3806 = vld [vmem:[%s3792 + $0x30] sm:%s3782]
                %3807 = vst [vmem:[%s3793 + $0x30] sm:%s3782] %v3806
                %v3808 = vld [vmem:[%s3792 + $0x38] sm:%s3782]
                %3809 = vst [vmem:[%s3793 + $0x38] sm:%s3782] %v3808
                %v3810 = vld [vmem:[%s3792 + $0x40] sm:%s3782]
                %3811 = vst [vmem:[%s3793 + $0x40] sm:%s3782] %v3810
                %v3812 = vld [vmem:[%s3792 + $0x48] sm:%s3782]
                %3813 = vst [vmem:[%s3793 + $0x48] sm:%s3782] %v3812
                %v3814 = vld [vmem:[%s3792 + $0x50] sm:%s3782]
                %3815 = vst [vmem:[%s3793 + $0x50] sm:%s3782] %v3814
                %v3816 = vld [vmem:[%s3792 + $0x58] sm:%s3782]
                %3817 = vst [vmem:[%s3793 + $0x58] sm:%s3782] %v3816
                %v3818 = vld [vmem:[%s3792 + $0x60] sm:%s3782]
                %3819 = vst [vmem:[%s3793 + $0x60] sm:%s3782] %v3818
                %v3820 = vld [vmem:[%s3792 + $0x68] sm:%s3782]
                %3821 = vst [vmem:[%s3793 + $0x68] sm:%s3782] %v3820
                %v3822 = vld [vmem:[%s3792 + $0x70] sm:%s3782]
                %3823 = vst [vmem:[%s3793 + $0x70] sm:%s3782] %v3822
                %v3824 = vld [vmem:[%s3792 + $0x78] sm:%s3782]
                %3825 = vst [vmem:[%s3793 + $0x78] sm:%s3782] %v3824
                %v3826 = vld [vmem:[%s3792 + $0x80] sm:%s3782]
                %3827 = vst [vmem:[%s3793 + $0x80] sm:%s3782] %v3826
                %v3828 = vld [vmem:[%s3792 + $0x88] sm:%s3782]
                %3829 = vst [vmem:[%s3793 + $0x88] sm:%s3782] %v3828
                %v3830 = vld [vmem:[%s3792 + $0x90] sm:%s3782]
                %3831 = vst [vmem:[%s3793 + $0x90] sm:%s3782] %v3830
                %v3832 = vld [vmem:[%s3792 + $0x98] sm:%s3782]
                %3833 = vst [vmem:[%s3793 + $0x98] sm:%s3782] %v3832
                %s3834 = sadd.s32 1, %s3791
                %p3835 = scmp.ge.s32.totalorder %s3834, %s3783
                %s3836 = scalar_select %p3835, 0, %s3834
                %s3837 = smul.u32 %s3836, 160
                %s3838 = smul.u32 %s3836, 160
                %s3839 = scalar_lea.vmem %s3762, %s3837 [#allocation8]
                %s3840 = scalar_lea.vmem %s3773, %s3838
              $region73: #{tpu_custom_call.1} parent=67 // loop_footer
                %s3788 = sadd.s32 %s3786, 1
              $region74: #{tpu_custom_call.1} parent=67 // loop_footer_branch
                %3785 = sbr.rel target = $region70
              $region75: #{tpu_custom_call.1} parent=67 // loop_exit
                _
              %s3841 = sdiv.u32.pop %s3769, 20
              %s3842 = srem.u32.pop %s3769, 20
              %s3843 = smul.u32 %s3841, 20
              %s3844 = smul.u32 8, %s3843
              %s3845 = scalar_lea.vmem %s3762, %s3844 [#allocation8]
              %s3846 = smul.u32 8, %s3843
              %s3847 = scalar_lea.vmem %s3773, %s3846
              // While loop
              $region76: #{tpu_custom_call.1} parent=67 // loop_pre_header
                _
              $region77: #{tpu_custom_call.1} parent=67 // loop_header
                %s3849 = sphi 0, %s3851
                %p3850 = scmp.ge.s32.totalorder %s3849, %s3842
                %s3854 = sphi 0, %s3861
                %s3855 = sphi %s3845, %s3864
                %s3856 = sphi %s3847, %s3865
              $region78: #{tpu_custom_call.1} parent=67 // loop_header_branch
                %3853 = sbr.rel (%p3850) target = $region82
              $region79: #{tpu_custom_call.1} parent=67 // loop_body
                %v3857 = vld [vmem:[%s3855] sm:%s3782]
                %3858 = vst [vmem:[%s3856] sm:%s3782] %v3857
                %s3859 = sadd.s32 1, %s3854
                %p3860 = scmp.ge.s32.totalorder %s3859, %s3842
                %s3861 = scalar_select %p3860, 0, %s3859
                %s3862 = smul.u32 %s3861, 8
                %s3863 = smul.u32 %s3861, 8
                %s3864 = scalar_lea.vmem %s3845, %s3862 [#allocation8]
                %s3865 = scalar_lea.vmem %s3847, %s3863
              $region80: #{tpu_custom_call.1} parent=67 // loop_footer
                %s3851 = sadd.s32 %s3849, 1
              $region81: #{tpu_custom_call.1} parent=67 // loop_footer_branch
                %3848 = sbr.rel target = $region77
              $region82: #{tpu_custom_call.1} parent=67 // loop_exit
                _
            $region68: #{tpu_custom_call.1} parent=59 // pred_fallthru
              _
          $region60: #{tpu_custom_call.1} parent=55 // pred_fallthru
            _
          %3953 = vnop
        $region56: #{tpu_custom_call.1} parent=39 // pred_fallthru
          _
      $region40: #{tpu_custom_call.1} parent=5 // pred_fallthru
        _
      %p3954 = scmp.le.s32.totalorder 2, %s17
      // Predicated region
      $region105: #{tpu_custom_call.1} parent=5 // pred_check
        %p3955 = pneg %p3954
      $region106: #{tpu_custom_call.1} parent=5 // pred_check_branch
        %3957 = sbr.rel (%p3955) target = $region108
      $region107: #{tpu_custom_call.1} parent=5 // pred_region
        %s3958 = ssub.s32 %s17, 2
        // Predicated region
        $region109: #{tpu_custom_call.1} parent=107 // pred_check
          %p3959 = pneg %p156
        $region110: #{tpu_custom_call.1} parent=107 // pred_check_branch
          %3961 = sbr.rel (%p3959) target = $region112
        $region111: #{tpu_custom_call.1} parent=107 // pred_region
          %s3962 = sand.u32 %s141, 1
          %s3963 = sand.u32 %s141, 1
          %s3964 = smul.addr %s3963, 160
          %s3965 = scalar_lea.vmem [#allocation8], %s3964
        $region112: #{tpu_custom_call.1} parent=107 // pred_fallthru
          _
      $region108: #{tpu_custom_call.1} parent=5 // pred_fallthru
        _
    $region6: #{tpu_custom_call.1} parent=1 // loop_footer
      %s21 = sadd.s32 1, %s17
    $region7: #{tpu_custom_call.1} parent=1 // loop_footer_branch
      %16 = sbr.rel target = $region3
    $region8: #{tpu_custom_call.1} parent=1 // loop_exit
      _
    %3966 = vsyncpa [#allocation4], 1
    %s3967 = scalar_lea.sflag [#allocation4], 1
    %3968 = vsyncpa %s3967, 1
    %3969 = vsyncpa [#allocation6], 1

</llo_original>
